<compile_context>
chip_gen: v7x
topology: tpu7x:2x2x1
jax: 0.10.0
libtpu: 0.0.40
codegen_flags: <defaults>
</compile_context>

<pallas_src>
import jax
import jax.numpy as jnp
import numpy as np
from jax import lax
from jax.experimental import pallas as pl
from jax.experimental.pallas import tpu as pltpu


def _sigmoid(x):
    # exact sigmoid (EUP exp + divide); keeps kernel/reference bit-close
    return 1.0 / (1.0 + jnp.exp(-x))


def cbam_kernel(x_ref, w1_ref, b1_ref, w2_ref, b2_ref, kt_ref, shift_ref,
                out_ref):
    """One block of `nb` batch elements per grid step.

    x_ref     : (nb, H, W, C)   input block (NHWC, C lane-dense)
    w1_ref    : (C, P)          MLP layer-1 weight (torch Linear weight .T)
    b1_ref    : (1, P)          MLP layer-1 bias
    w2_ref    : (P, C)          MLP layer-2 weight (torch Linear weight .T)
    b2_ref    : (1, C)          MLP layer-2 bias
    kt_ref    : (H*W, 2*H*W)    7x7 conv (BN scale folded) as a dense matrix
    shift_ref : (1,) SMEM       BN shift (beta - running_mean * scale)
    out_ref   : (nb, H, W, C)
    """
    nb, H, W, C = x_ref.shape
    HW = H * W

    # Lane-dense flat view: C in lanes, batch*space in sublanes (trivial reshape).
    xf = x_ref[...].reshape(nb * HW, C).astype(jnp.float32)

    # ---------------- channel attention ----------------
    # Per-batch global avg / max over H*W (sublane reductions, cheap on VPU).
    avg_rows = []
    max_rows = []
    for n in range(nb):
        xn = xf[n * HW:(n + 1) * HW, :]                        # (HW, C)
        avg_rows.append(jnp.mean(xn, axis=0, keepdims=True))   # (1, C)
        max_rows.append(jnp.max(xn, axis=0, keepdims=True))    # (1, C)
    d = jnp.concatenate(avg_rows + max_rows, axis=0)           # (2*nb, C)

    # Shared MLP on all 2*nb descriptors in one MXU pass.
    h = jnp.dot(d, w1_ref[...], preferred_element_type=jnp.float32) + b1_ref[...]
    h = jnp.maximum(h, 0.0)
    m = jnp.dot(h, w2_ref[...], preferred_element_type=jnp.float32) + b2_ref[...]
    ch_att = _sigmoid(m[:nb, :] + m[nb:, :])                   # (nb, C)

    # Apply channel attention (per-batch sublane broadcast of a (1, C) row).
    x_ca = jnp.concatenate(
        [xf[n * HW:(n + 1) * HW, :] * ch_att[n:n + 1, :] for n in range(nb)],
        axis=0)                                                # (nb*HW, C)

    # ---------------- spatial attention ----------------
    # Channel-wise avg pool on the MXU (otherwise idle); max pool on the XLU.
    ones_c = jnp.full((C, 1), 1.0 / C, dtype=jnp.float32)
    avg_sp = jnp.dot(x_ca, ones_c, preferred_element_type=jnp.float32)  # (nb*HW, 1)
    max_sp = jnp.max(x_ca, axis=1, keepdims=True)                       # (nb*HW, 1)

    # Stack [avg; max] per batch element as columns -> (2*HW, nb).
    d_sp = jnp.concatenate(
        [jnp.concatenate([avg_sp[n * HW:(n + 1) * HW, :],
                          max_sp[n * HW:(n + 1) * HW, :]], axis=0)
         for n in range(nb)],
        axis=1)                                                # (2*HW, nb)

    # Whole 7x7 conv (+ folded BN scale) for the block: ONE MXU matmul.
    logits = (jnp.dot(kt_ref[...], d_sp, preferred_element_type=jnp.float32)
              + shift_ref[0])                                  # (HW, nb)
    sp_att = _sigmoid(logits)                                  # (HW, nb)

    # Apply spatial attention (lane-slice column n, broadcast over C) and store.
    for n in range(nb):
        out_n = x_ca[n * HW:(n + 1) * HW, :] * sp_att[:, n:n + 1]   # (HW, C)
        out_ref[n] = out_n.reshape(H, W, C).astype(out_ref.dtype)


def cbam_forward(x_nhwc, w1, b1, w2, b2, kt, bn_shift, *, block_n=4):
    N, H, W, C = x_nhwc.shape
    P = w1.shape[1]
    HW = H * W
    assert C % 128 == 0, "C must be a multiple of 128 (lane-dense channel axis)"
    assert W % 8 == 0, "W must be a multiple of 8 for tile-aligned reshapes"

    # Largest block size <= block_n that divides N (keeps grid length integral).
    bn_blk = max(1, min(block_n, N))
    while N % bn_blk:
        bn_blk -= 1

    return pl.pallas_call(
        cbam_kernel,
        out_shape=jax.ShapeDtypeStruct((N, H, W, C), x_nhwc.dtype),
        grid_spec=pltpu.PrefetchScalarGridSpec(
            num_scalar_prefetch=0,
            grid=(N // bn_blk,),
            in_specs=[
                pl.BlockSpec((bn_blk, H, W, C), lambda i: (i, 0, 0, 0)),
                pl.BlockSpec((C, P), lambda i: (0, 0)),
                pl.BlockSpec((1, P), lambda i: (0, 0)),
                pl.BlockSpec((P, C), lambda i: (0, 0)),
                pl.BlockSpec((1, C), lambda i: (0, 0)),
                pl.BlockSpec((HW, 2 * HW), lambda i: (0, 0)),
                pl.BlockSpec(memory_space=pltpu.MemorySpace.SMEM),
            ],
            out_specs=pl.BlockSpec((bn_blk, H, W, C), lambda i: (i, 0, 0, 0)),
        ),
        compiler_params=pltpu.CompilerParams(
            dimension_semantics=("parallel",),
            vmem_limit_bytes=32 * 1024 * 1024,
        ),
    )(x_nhwc, w1, b1, w2, b2, kt, bn_shift)


def build_spatial_conv_matrix(conv_oihw, bn_scale, H, W):
    """Dense (H*W, 2*H*W) matrix for the 7x7 SAME conv over [avg; max] maps,
    with the eval-mode BatchNorm scale folded into the taps."""
    HW = H * W
    kt = np.zeros((HW, 2 * HW), np.float32)
    w = np.asarray(conv_oihw, np.float32)[0] * float(bn_scale)   # (2, 7, 7)
    for c in range(2):
        for kh in range(7):
            for kw in range(7):
                dh, dw = kh - 3, kw - 3
                qh = np.arange(max(0, -dh), min(H, H - dh))
                qw = np.arange(max(0, -dw), min(W, W - dw))
                if qh.size == 0 or qw.size == 0:
                    continue
                ph, pw = qh + dh, qw + dw
                qi = (qh[:, None] * W + qw[None, :]).ravel()
                pi = (ph[:, None] * W + pw[None, :]).ravel()
                kt[qi, c * HW + pi] += w[c, kh, kw]
    return jnp.asarray(kt)


def ref_forward(x_nhwc, w1, b1, w2, b2, conv_oihw, bn_scale, bn_shift):
    """Pure-JAX reference (same math as the PyTorch module, eval-mode BN)."""
    avg = jnp.mean(x_nhwc, axis=(1, 2))                        # (N, C)
    mx = jnp.max(x_nhwc, axis=(1, 2))                          # (N, C)

    def mlp(v):
        h = jnp.maximum(jnp.dot(v, w1, preferred_element_type=jnp.float32) + b1, 0.0)
        return jnp.dot(h, w2, preferred_element_type=jnp.float32) + b2

    ch = 1.0 / (1.0 + jnp.exp(-(mlp(avg) + mlp(mx))))          # (N, C)
    x_ca = x_nhwc * ch[:, None, None, :]
    avg_sp = jnp.mean(x_ca, axis=-1, keepdims=True)
    max_sp = jnp.max(x_ca, axis=-1, keepdims=True)
    d = jnp.concatenate([avg_sp, max_sp], axis=-1)             # (N, H, W, 2)
    w_hwio = jnp.transpose(conv_oihw, (2, 3, 1, 0))            # (7, 7, 2, 1)
    conv = lax.conv_general_dilated(d, w_hwio, (1, 1), "SAME",
                                    dimension_numbers=("NHWC", "HWIO", "NHWC"))
    sp = 1.0 / (1.0 + jnp.exp(-(conv * bn_scale + bn_shift)))
    return x_ca * sp


if __name__ == "__main__":
    # CBAM(inplanes=C, planes=P).  C = 128 keeps the channel axis lane-dense.
    N, C, H, W = 8, 128, 16, 16
    P = 32
    BLOCK_N = 4     # v7x-safe (512 KiB blocks, grid=2); raise to 8 on v5e/v6e
    eps = 1e-5

    key = jax.random.PRNGKey(0)
    ks = jax.random.split(key, 10)

    # PyTorch-convention input (NCHW).
    x_nchw = jax.random.normal(ks[0], (N, C, H, W), jnp.float32)

    # MLP params (torch Linear weights stored transposed to (in, out)).
    w1 = 0.1 * jax.random.normal(ks[1], (C, P), jnp.float32)
    b1 = 0.1 * jax.random.normal(ks[2], (P,), jnp.float32)
    w2 = 0.1 * jax.random.normal(ks[3], (P, C), jnp.float32)
    b2 = 0.1 * jax.random.normal(ks[4], (C,), jnp.float32)

    # Spatial conv weight (torch OIHW (1, 2, 7, 7)) and BN(1) running stats.
    conv_oihw = 0.1 * jax.random.normal(ks[5], (1, 2, 7, 7), jnp.float32)
    gamma = 1.0 + 0.1 * jax.random.normal(ks[6], (1,), jnp.float32)
    beta = 0.1 * jax.random.normal(ks[7], (1,), jnp.float32)
    rmean = 0.1 * jax.random.normal(ks[8], (1,), jnp.float32)
    rvar = jax.random.uniform(ks[9], (1,), jnp.float32, 0.5, 1.5)
    bn_scale = gamma / jnp.sqrt(rvar + eps)                    # (1,)
    bn_shift = beta - rmean * bn_scale                         # (1,)

    # Layout glue: NCHW -> NHWC; fold BN scale into the conv matrix.
    x_nhwc = jnp.transpose(x_nchw, (0, 2, 3, 1))
    kt = build_spatial_conv_matrix(conv_oihw, float(bn_scale[0]), H, W)

    out = cbam_forward(x_nhwc, w1, b1.reshape(1, P), w2, b2.reshape(1, C),
                       kt, bn_shift.astype(jnp.float32), block_n=BLOCK_N)
    out = jax.block_until_ready(out)

    ref = ref_forward(x_nhwc, w1, b1, w2, b2, conv_oihw, bn_scale[0], bn_shift[0])
    ref = jax.block_until_ready(ref)

    np.testing.assert_allclose(np.asarray(out), np.asarray(ref),
                               rtol=2e-4, atol=2e-4)
    print("KERNEL_OK")
</pallas_src>

<mosaic_0001>
module attributes {stable_mosaic.version = 11 : i64} {
  func.func @cbam_kernel(%arg0: i32, %arg1: memref<4x16x16x128xf32, #tpu.memory_space<vmem>>, %arg2: memref<128x32xf32, #tpu.memory_space<vmem>>, %arg3: memref<1x32xf32, #tpu.memory_space<vmem>>, %arg4: memref<32x128xf32, #tpu.memory_space<vmem>>, %arg5: memref<1x128xf32, #tpu.memory_space<vmem>>, %arg6: memref<256x512xf32, #tpu.memory_space<vmem>>, %arg7: memref<1xf32, #tpu.memory_space<smem>>, %arg8: memref<4x16x16x128xf32, #tpu.memory_space<vmem>>) attributes {dimension_semantics = [#tpu.dimension_semantics<parallel>], iteration_bounds = array<i64: 2>, scalar_prefetch = 0 : i64, scratch_operands = 0 : i64, tpu.core_type = #tpu.core_type<tc>, window_params = [{transform_indices = @transform_0, window_bounds = array<i64: 4, 16, 16, 128>}, {pipeline_mode = #tpu.pipeline_mode<synchronous>, transform_indices = @transform_1, window_bounds = array<i64: 128, 32>}, {pipeline_mode = #tpu.pipeline_mode<synchronous>, transform_indices = @transform_2, window_bounds = array<i64: 1, 32>}, {pipeline_mode = #tpu.pipeline_mode<synchronous>, transform_indices = @transform_3, window_bounds = array<i64: 32, 128>}, {pipeline_mode = #tpu.pipeline_mode<synchronous>, transform_indices = @transform_4, window_bounds = array<i64: 1, 128>}, {pipeline_mode = #tpu.pipeline_mode<synchronous>, transform_indices = @transform_5, window_bounds = array<i64: 256, 512>}, {transform_indices = @transform_6, window_bounds = array<i64: 1>}, {transform_indices = @transform_7, window_bounds = array<i64: 4, 16, 16, 128>}]} {
    %c0 = arith.constant 0 : index
    %c0_0 = arith.constant 0 : index
    %c0_1 = arith.constant 0 : index
    %c0_2 = arith.constant 0 : index
    %0 = vector.load %arg1[%c0, %c0_0, %c0_1, %c0_2] : memref<4x16x16x128xf32, #tpu.memory_space<vmem>>, vector<4x16x16x128xf32>
    %1 = vector.shape_cast %0 : vector<4x16x16x128xf32> to vector<1024x128xf32>
    %2 = vector.extract_strided_slice %1 {offsets = [0, 0], sizes = [256, 128], strides = [1, 1]} : vector<1024x128xf32> to vector<256x128xf32>
    %cst = arith.constant dense<0.000000e+00> : vector<128xf32>
    %3 = vector.multi_reduction <add>, %2, %cst [0] : vector<256x128xf32> to vector<128xf32>
    %4 = vector.shape_cast %3 : vector<128xf32> to vector<1x128xf32>
    %cst_3 = arith.constant 2.560000e+02 : f32
    %5 = vector.broadcast %cst_3 : f32 to vector<1x128xf32>
    %6 = arith.divf %4, %5 : vector<1x128xf32>
    %cst_4 = arith.constant dense<0xFF800000> : vector<128xf32>
    %7 = vector.multi_reduction <maximumf>, %2, %cst_4 [0] : vector<256x128xf32> to vector<128xf32>
    %8 = vector.shape_cast %7 : vector<128xf32> to vector<1x128xf32>
    %9 = vector.extract_strided_slice %1 {offsets = [256, 0], sizes = [256, 128], strides = [1, 1]} : vector<1024x128xf32> to vector<256x128xf32>
    %cst_5 = arith.constant dense<0.000000e+00> : vector<128xf32>
    %10 = vector.multi_reduction <add>, %9, %cst_5 [0] : vector<256x128xf32> to vector<128xf32>
    %11 = vector.shape_cast %10 : vector<128xf32> to vector<1x128xf32>
    %cst_6 = arith.constant 2.560000e+02 : f32
    %12 = vector.broadcast %cst_6 : f32 to vector<1x128xf32>
    %13 = arith.divf %11, %12 : vector<1x128xf32>
    %cst_7 = arith.constant dense<0xFF800000> : vector<128xf32>
    %14 = vector.multi_reduction <maximumf>, %9, %cst_7 [0] : vector<256x128xf32> to vector<128xf32>
    %15 = vector.shape_cast %14 : vector<128xf32> to vector<1x128xf32>
    %16 = vector.extract_strided_slice %1 {offsets = [512, 0], sizes = [256, 128], strides = [1, 1]} : vector<1024x128xf32> to vector<256x128xf32>
    %cst_8 = arith.constant dense<0.000000e+00> : vector<128xf32>
    %17 = vector.multi_reduction <add>, %16, %cst_8 [0] : vector<256x128xf32> to vector<128xf32>
    %18 = vector.shape_cast %17 : vector<128xf32> to vector<1x128xf32>
    %cst_9 = arith.constant 2.560000e+02 : f32
    %19 = vector.broadcast %cst_9 : f32 to vector<1x128xf32>
    %20 = arith.divf %18, %19 : vector<1x128xf32>
    %cst_10 = arith.constant dense<0xFF800000> : vector<128xf32>
    %21 = vector.multi_reduction <maximumf>, %16, %cst_10 [0] : vector<256x128xf32> to vector<128xf32>
    %22 = vector.shape_cast %21 : vector<128xf32> to vector<1x128xf32>
    %23 = vector.extract_strided_slice %1 {offsets = [768, 0], sizes = [256, 128], strides = [1, 1]} : vector<1024x128xf32> to vector<256x128xf32>
    %cst_11 = arith.constant dense<0.000000e+00> : vector<128xf32>
    %24 = vector.multi_reduction <add>, %23, %cst_11 [0] : vector<256x128xf32> to vector<128xf32>
    %25 = vector.shape_cast %24 : vector<128xf32> to vector<1x128xf32>
    %cst_12 = arith.constant 2.560000e+02 : f32
    %26 = vector.broadcast %cst_12 : f32 to vector<1x128xf32>
    %27 = arith.divf %25, %26 : vector<1x128xf32>
    %cst_13 = arith.constant dense<0xFF800000> : vector<128xf32>
    %28 = vector.multi_reduction <maximumf>, %23, %cst_13 [0] : vector<256x128xf32> to vector<128xf32>
    %29 = vector.shape_cast %28 : vector<128xf32> to vector<1x128xf32>
    %30 = tpu.concatenate %6, %13, %20, %27, %8, %15, %22, %29 in 0 : vector<1x128xf32>, vector<1x128xf32>, vector<1x128xf32>, vector<1x128xf32>, vector<1x128xf32>, vector<1x128xf32>, vector<1x128xf32>, vector<1x128xf32> -> vector<8x128xf32>
    %c0_14 = arith.constant 0 : index
    %c0_15 = arith.constant 0 : index
    %31 = vector.load %arg2[%c0_14, %c0_15] : memref<128x32xf32, #tpu.memory_space<vmem>>, vector<128x32xf32>
    %cst_16 = arith.constant dense<0.000000e+00> : vector<8x32xf32>
    %32 = tpu.matmul %30, %31, %cst_16 {dimension_numbers = #tpu.dot_dimension_numbers<[1], [0], [0], [1], [0, 0, 1, 1], [], []>} : vector<8x128xf32>, vector<128x32xf32>, vector<8x32xf32> -> vector<8x32xf32>
    %c0_17 = arith.constant 0 : index
    %c0_18 = arith.constant 0 : index
    %33 = vector.load %arg3[%c0_17, %c0_18] : memref<1x32xf32, #tpu.memory_space<vmem>>, vector<1x32xf32>
    %34 = vector.broadcast %33 : vector<1x32xf32> to vector<8x32xf32>
    %35 = arith.addf %32, %34 : vector<8x32xf32>
    %cst_19 = arith.constant 0.000000e+00 : f32
    %36 = vector.broadcast %cst_19 : f32 to vector<8x32xf32>
    %37 = arith.maximumf %35, %36 : vector<8x32xf32>
    %c0_20 = arith.constant 0 : index
    %c0_21 = arith.constant 0 : index
    %38 = vector.load %arg4[%c0_20, %c0_21] : memref<32x128xf32, #tpu.memory_space<vmem>>, vector<32x128xf32>
    %cst_22 = arith.constant dense<0.000000e+00> : vector<8x128xf32>
    %39 = tpu.matmul %37, %38, %cst_22 {dimension_numbers = #tpu.dot_dimension_numbers<[1], [0], [0], [1], [0, 0, 1, 1], [], []>} : vector<8x32xf32>, vector<32x128xf32>, vector<8x128xf32> -> vector<8x128xf32>
    %c0_23 = arith.constant 0 : index
    %c0_24 = arith.constant 0 : index
    %40 = vector.load %arg5[%c0_23, %c0_24] : memref<1x128xf32, #tpu.memory_space<vmem>>, vector<1x128xf32>
    %41 = vector.broadcast %40 : vector<1x128xf32> to vector<8x128xf32>
    %42 = arith.addf %39, %41 : vector<8x128xf32>
    %43 = vector.extract_strided_slice %42 {offsets = [0, 0], sizes = [4, 128], strides = [1, 1]} : vector<8x128xf32> to vector<4x128xf32>
    %44 = vector.extract_strided_slice %42 {offsets = [4, 0], sizes = [4, 128], strides = [1, 1]} : vector<8x128xf32> to vector<4x128xf32>
    %45 = arith.addf %43, %44 : vector<4x128xf32>
    %cst_25 = arith.constant 0.000000e+00 : f32
    %46 = vector.broadcast %cst_25 : f32 to vector<4x128xf32>
    %47 = arith.subf %46, %45 : vector<4x128xf32>
    %48 = math.exp %47 : vector<4x128xf32>
    %cst_26 = arith.constant 1.000000e+00 : f32
    %49 = vector.broadcast %cst_26 : f32 to vector<4x128xf32>
    %50 = arith.addf %49, %48 : vector<4x128xf32>
    %cst_27 = arith.constant 1.000000e+00 : f32
    %51 = vector.broadcast %cst_27 : f32 to vector<4x128xf32>
    %52 = arith.divf %51, %50 : vector<4x128xf32>
    %53 = vector.extract_strided_slice %1 {offsets = [0, 0], sizes = [256, 128], strides = [1, 1]} : vector<1024x128xf32> to vector<256x128xf32>
    %54 = vector.extract_strided_slice %52 {offsets = [0, 0], sizes = [1, 128], strides = [1, 1]} : vector<4x128xf32> to vector<1x128xf32>
    %55 = vector.broadcast %54 : vector<1x128xf32> to vector<256x128xf32>
    %56 = arith.mulf %53, %55 : vector<256x128xf32>
    %57 = vector.extract_strided_slice %1 {offsets = [256, 0], sizes = [256, 128], strides = [1, 1]} : vector<1024x128xf32> to vector<256x128xf32>
    %58 = vector.extract_strided_slice %52 {offsets = [1, 0], sizes = [1, 128], strides = [1, 1]} : vector<4x128xf32> to vector<1x128xf32>
    %59 = vector.broadcast %58 : vector<1x128xf32> to vector<256x128xf32>
    %60 = arith.mulf %57, %59 : vector<256x128xf32>
    %61 = vector.extract_strided_slice %1 {offsets = [512, 0], sizes = [256, 128], strides = [1, 1]} : vector<1024x128xf32> to vector<256x128xf32>
    %62 = vector.extract_strided_slice %52 {offsets = [2, 0], sizes = [1, 128], strides = [1, 1]} : vector<4x128xf32> to vector<1x128xf32>
    %63 = vector.broadcast %62 : vector<1x128xf32> to vector<256x128xf32>
    %64 = arith.mulf %61, %63 : vector<256x128xf32>
    %65 = vector.extract_strided_slice %1 {offsets = [768, 0], sizes = [256, 128], strides = [1, 1]} : vector<1024x128xf32> to vector<256x128xf32>
    %66 = vector.extract_strided_slice %52 {offsets = [3, 0], sizes = [1, 128], strides = [1, 1]} : vector<4x128xf32> to vector<1x128xf32>
    %67 = vector.broadcast %66 : vector<1x128xf32> to vector<256x128xf32>
    %68 = arith.mulf %65, %67 : vector<256x128xf32>
    %69 = tpu.concatenate %56, %60, %64, %68 in 0 : vector<256x128xf32>, vector<256x128xf32>, vector<256x128xf32>, vector<256x128xf32> -> vector<1024x128xf32>
    %cst_28 = arith.constant 7.812500e-03 : f32
    %70 = vector.broadcast %cst_28 : f32 to vector<128x1xf32>
    %cst_29 = arith.constant dense<0.000000e+00> : vector<1024x1xf32>
    %71 = tpu.matmul %69, %70, %cst_29 {dimension_numbers = #tpu.dot_dimension_numbers<[1], [0], [0], [1], [0, 0, 1, 1], [], []>} : vector<1024x128xf32>, vector<128x1xf32>, vector<1024x1xf32> -> vector<1024x1xf32>
    %cst_30 = arith.constant dense<0xFF800000> : vector<1024xf32>
    %72 = vector.multi_reduction <maximumf>, %69, %cst_30 [1] : vector<1024x128xf32> to vector<1024xf32>
    %73 = vector.shape_cast %72 : vector<1024xf32> to vector<1024x1xf32>
    %74 = vector.extract_strided_slice %71 {offsets = [0, 0], sizes = [256, 1], strides = [1, 1]} : vector<1024x1xf32> to vector<256x1xf32>
    %75 = vector.extract_strided_slice %73 {offsets = [0, 0], sizes = [256, 1], strides = [1, 1]} : vector<1024x1xf32> to vector<256x1xf32>
    %76 = tpu.concatenate %74, %75 in 0 : vector<256x1xf32>, vector<256x1xf32> -> vector<512x1xf32>
    %77 = vector.extract_strided_slice %71 {offsets = [256, 0], sizes = [256, 1], strides = [1, 1]} : vector<1024x1xf32> to vector<256x1xf32>
    %78 = vector.extract_strided_slice %73 {offsets = [256, 0], sizes = [256, 1], strides = [1, 1]} : vector<1024x1xf32> to vector<256x1xf32>
    %79 = tpu.concatenate %77, %78 in 0 : vector<256x1xf32>, vector<256x1xf32> -> vector<512x1xf32>
    %80 = vector.extract_strided_slice %71 {offsets = [512, 0], sizes = [256, 1], strides = [1, 1]} : vector<1024x1xf32> to vector<256x1xf32>
    %81 = vector.extract_strided_slice %73 {offsets = [512, 0], sizes = [256, 1], strides = [1, 1]} : vector<1024x1xf32> to vector<256x1xf32>
    %82 = tpu.concatenate %80, %81 in 0 : vector<256x1xf32>, vector<256x1xf32> -> vector<512x1xf32>
    %83 = vector.extract_strided_slice %71 {offsets = [768, 0], sizes = [256, 1], strides = [1, 1]} : vector<1024x1xf32> to vector<256x1xf32>
    %84 = vector.extract_strided_slice %73 {offsets = [768, 0], sizes = [256, 1], strides = [1, 1]} : vector<1024x1xf32> to vector<256x1xf32>
    %85 = tpu.concatenate %83, %84 in 0 : vector<256x1xf32>, vector<256x1xf32> -> vector<512x1xf32>
    %86 = tpu.concatenate %76, %79, %82, %85 in 1 : vector<512x1xf32>, vector<512x1xf32>, vector<512x1xf32>, vector<512x1xf32> -> vector<512x4xf32>
    %c0_31 = arith.constant 0 : index
    %c0_32 = arith.constant 0 : index
    %87 = vector.load %arg6[%c0_31, %c0_32] : memref<256x512xf32, #tpu.memory_space<vmem>>, vector<256x512xf32>
    %cst_33 = arith.constant dense<0.000000e+00> : vector<256x4xf32>
    %88 = tpu.matmul %87, %86, %cst_33 {dimension_numbers = #tpu.dot_dimension_numbers<[1], [0], [0], [1], [0, 0, 1, 1], [], []>} : vector<256x512xf32>, vector<512x4xf32>, vector<256x4xf32> -> vector<256x4xf32>
    %c0_34 = arith.constant 0 : index
    %89 = memref.load %arg7[%c0_34] : memref<1xf32, #tpu.memory_space<smem>>
    %90 = vector.broadcast %89 : f32 to vector<256x4xf32>
    %91 = arith.addf %88, %90 : vector<256x4xf32>
    %cst_35 = arith.constant 0.000000e+00 : f32
    %92 = vector.broadcast %cst_35 : f32 to vector<256x4xf32>
    %93 = arith.subf %92, %91 : vector<256x4xf32>
    %94 = math.exp %93 : vector<256x4xf32>
    %cst_36 = arith.constant 1.000000e+00 : f32
    %95 = vector.broadcast %cst_36 : f32 to vector<256x4xf32>
    %96 = arith.addf %95, %94 : vector<256x4xf32>
    %cst_37 = arith.constant 1.000000e+00 : f32
    %97 = vector.broadcast %cst_37 : f32 to vector<256x4xf32>
    %98 = arith.divf %97, %96 : vector<256x4xf32>
    %99 = vector.extract_strided_slice %69 {offsets = [0, 0], sizes = [256, 128], strides = [1, 1]} : vector<1024x128xf32> to vector<256x128xf32>
    %100 = vector.extract_strided_slice %98 {offsets = [0, 0], sizes = [256, 1], strides = [1, 1]} : vector<256x4xf32> to vector<256x1xf32>
    %101 = vector.broadcast %100 : vector<256x1xf32> to vector<256x128xf32>
    %102 = arith.mulf %99, %101 : vector<256x128xf32>
    %103 = vector.shape_cast %102 : vector<256x128xf32> to vector<16x16x128xf32>
    %c0_38 = arith.constant 0 : index
    %c0_39 = arith.constant 0 : index
    %c0_40 = arith.constant 0 : index
    %c0_41 = arith.constant 0 : index
    %104 = vector.load %arg8[%c0_38, %c0_39, %c0_40, %c0_41] : memref<4x16x16x128xf32, #tpu.memory_space<vmem>>, vector<1x16x16x128xf32>
    %105 = vector.shape_cast %104 : vector<1x16x16x128xf32> to vector<16x16x128xf32>
    %106 = vector.shape_cast %103 : vector<16x16x128xf32> to vector<1x16x16x128xf32>
    tpu.vector_store %arg8[%c0_38, %c0_39, %c0_40, %c0_41], %106 {strides = array<i32>} : memref<4x16x16x128xf32, #tpu.memory_space<vmem>>, vector<1x16x16x128xf32>,
    %107 = vector.extract_strided_slice %69 {offsets = [256, 0], sizes = [256, 128], strides = [1, 1]} : vector<1024x128xf32> to vector<256x128xf32>
    %108 = vector.extract_strided_slice %98 {offsets = [0, 1], sizes = [256, 1], strides = [1, 1]} : vector<256x4xf32> to vector<256x1xf32>
    %109 = vector.broadcast %108 : vector<256x1xf32> to vector<256x128xf32>
    %110 = arith.mulf %107, %109 : vector<256x128xf32>
    %111 = vector.shape_cast %110 : vector<256x128xf32> to vector<16x16x128xf32>
    %c1 = arith.constant 1 : index
    %c0_42 = arith.constant 0 : index
    %c0_43 = arith.constant 0 : index
    %c0_44 = arith.constant 0 : index
    %112 = vector.load %arg8[%c1, %c0_42, %c0_43, %c0_44] : memref<4x16x16x128xf32, #tpu.memory_space<vmem>>, vector<1x16x16x128xf32>
    %113 = vector.shape_cast %112 : vector<1x16x16x128xf32> to vector<16x16x128xf32>
    %114 = vector.shape_cast %111 : vector<16x16x128xf32> to vector<1x16x16x128xf32>
    tpu.vector_store %arg8[%c1, %c0_42, %c0_43, %c0_44], %114 {strides = array<i32>} : memref<4x16x16x128xf32, #tpu.memory_space<vmem>>, vector<1x16x16x128xf32>,
    %115 = vector.extract_strided_slice %69 {offsets = [512, 0], sizes = [256, 128], strides = [1, 1]} : vector<1024x128xf32> to vector<256x128xf32>
    %116 = vector.extract_strided_slice %98 {offsets = [0, 2], sizes = [256, 1], strides = [1, 1]} : vector<256x4xf32> to vector<256x1xf32>
    %117 = vector.broadcast %116 : vector<256x1xf32> to vector<256x128xf32>
    %118 = arith.mulf %115, %117 : vector<256x128xf32>
    %119 = vector.shape_cast %118 : vector<256x128xf32> to vector<16x16x128xf32>
    %c2 = arith.constant 2 : index
    %c0_45 = arith.constant 0 : index
    %c0_46 = arith.constant 0 : index
    %c0_47 = arith.constant 0 : index
    %120 = vector.load %arg8[%c2, %c0_45, %c0_46, %c0_47] : memref<4x16x16x128xf32, #tpu.memory_space<vmem>>, vector<1x16x16x128xf32>
    %121 = vector.shape_cast %120 : vector<1x16x16x128xf32> to vector<16x16x128xf32>
    %122 = vector.shape_cast %119 : vector<16x16x128xf32> to vector<1x16x16x128xf32>
    tpu.vector_store %arg8[%c2, %c0_45, %c0_46, %c0_47], %122 {strides = array<i32>} : memref<4x16x16x128xf32, #tpu.memory_space<vmem>>, vector<1x16x16x128xf32>,
    %123 = vector.extract_strided_slice %69 {offsets = [768, 0], sizes = [256, 128], strides = [1, 1]} : vector<1024x128xf32> to vector<256x128xf32>
    %124 = vector.extract_strided_slice %98 {offsets = [0, 3], sizes = [256, 1], strides = [1, 1]} : vector<256x4xf32> to vector<256x1xf32>
    %125 = vector.broadcast %124 : vector<256x1xf32> to vector<256x128xf32>
    %126 = arith.mulf %123, %125 : vector<256x128xf32>
    %127 = vector.shape_cast %126 : vector<256x128xf32> to vector<16x16x128xf32>
    %c3 = arith.constant 3 : index
    %c0_48 = arith.constant 0 : index
    %c0_49 = arith.constant 0 : index
    %c0_50 = arith.constant 0 : index
    %128 = vector.load %arg8[%c3, %c0_48, %c0_49, %c0_50] : memref<4x16x16x128xf32, #tpu.memory_space<vmem>>, vector<1x16x16x128xf32>
    %129 = vector.shape_cast %128 : vector<1x16x16x128xf32> to vector<16x16x128xf32>
    %130 = vector.shape_cast %127 : vector<16x16x128xf32> to vector<1x16x16x128xf32>
    tpu.vector_store %arg8[%c3, %c0_48, %c0_49, %c0_50], %130 {strides = array<i32>} : memref<4x16x16x128xf32, #tpu.memory_space<vmem>>, vector<1x16x16x128xf32>,
    return
  }
  func.func @transform_0(%arg0: i32) -> (i32, i32, i32, i32) {
    %c0_i32 = arith.constant 0 : i32
    %c0_i32_0 = arith.constant 0 : i32
    %c0_i32_1 = arith.constant 0 : i32
    %c0_i32_2 = arith.constant 0 : i32
    return %arg0, %c0_i32, %c0_i32_0, %c0_i32_1 : i32, i32, i32, i32
  }
  func.func @transform_1(%arg0: i32) -> (i32, i32) {
    %c0_i32 = arith.constant 0 : i32
    %c0_i32_0 = arith.constant 0 : i32
    %c0_i32_1 = arith.constant 0 : i32
    return %c0_i32, %c0_i32_0 : i32, i32
  }
  func.func @transform_2(%arg0: i32) -> (i32, i32) {
    %c0_i32 = arith.constant 0 : i32
    %c0_i32_0 = arith.constant 0 : i32
    %c0_i32_1 = arith.constant 0 : i32
    return %c0_i32, %c0_i32_0 : i32, i32
  }
  func.func @transform_3(%arg0: i32) -> (i32, i32) {
    %c0_i32 = arith.constant 0 : i32
    %c0_i32_0 = arith.constant 0 : i32
    %c0_i32_1 = arith.constant 0 : i32
    return %c0_i32, %c0_i32_0 : i32, i32
  }
  func.func @transform_4(%arg0: i32) -> (i32, i32) {
    %c0_i32 = arith.constant 0 : i32
    %c0_i32_0 = arith.constant 0 : i32
    %c0_i32_1 = arith.constant 0 : i32
    return %c0_i32, %c0_i32_0 : i32, i32
  }
  func.func @transform_5(%arg0: i32) -> (i32, i32) {
    %c0_i32 = arith.constant 0 : i32
    %c0_i32_0 = arith.constant 0 : i32
    %c0_i32_1 = arith.constant 0 : i32
    return %c0_i32, %c0_i32_0 : i32, i32
  }
  func.func @transform_6(%arg0: i32) -> i32 {
    %c0_i32 = arith.constant 0 : i32
    %c0_i32_0 = arith.constant 0 : i32
    return %c0_i32 : i32
  }
  func.func @transform_7(%arg0: i32) -> (i32, i32, i32, i32) {
    %c0_i32 = arith.constant 0 : i32
    %c0_i32_0 = arith.constant 0 : i32
    %c0_i32_1 = arith.constant 0 : i32
    %c0_i32_2 = arith.constant 0 : i32
    return %arg0, %c0_i32, %c0_i32_0, %c0_i32_1 : i32, i32, i32, i32
  }
}

</mosaic_0001>

<llo_original>
// kernel: tpu_custom_call.1
$region0: #{tpu_custom_call.1}
  #allocation0 [shape = 'u32[]', space=smem, size = 0x4, offset = 0x4, fixed_abs, tag = 'smem constant byte address 0x4 - core index']
  #allocation1 [shape = 'u32[144,128]{1,0:T(1,128)}', space=vmem, size = 0x12000, scoped, tag = 'internal scratch']
  #allocation2 [shape = 'f32[1]{0:T(128)S(6)}', space=smem, size = 0x200, scoped, tag = 'scoped memory for tpu_custom_call.1']
  %s0 = inlined_call_operand.hbm [shape: f32[8,16,16,128], index: 0, kind: input, shape index: {}]
  %s1 = inlined_call_operand.vmem [shape: f32[128,32], index: 1, kind: input, shape index: {}]
  %s2 = inlined_call_operand.vmem [shape: f32[1,32], index: 2, kind: input, shape index: {}]
  %s3 = inlined_call_operand.vmem [shape: f32[32,128], index: 3, kind: input, shape index: {}]
  %s4 = inlined_call_operand.vmem [shape: f32[1,128], index: 4, kind: input, shape index: {}]
  %s5 = inlined_call_operand.hbm [shape: f32[256,512], index: 5, kind: input, shape index: {}]
  %s6 = inlined_call_operand.<no memory space> [shape: f32[1], index: 6, kind: input, shape index: {}]
  %s7 = inlined_call_operand.hbm [shape: f32[8,16,16,128], index: 7, kind: output, shape index: {}]
  %s8 = sld [smem:[#allocation0]]
  $region69: #{tpu_custom_call.1} parent=0
    _
  %s10 = ssub.s32 1, %s8
  %s11 = scalar_select 0, %s10, %s8
  %12 = sst [smem:[#allocation2]] %s6
  $region1: #{tpu_custom_call.1} parent=0
    #allocation3 [shape = 'u8[1048576]{0}', space=vmem, size = 0x100000, scoped, tag = 'input window, operand 0']
    #allocation4 [shape = 's32[2]{0}', space=sflag, size = 0x8, scoped, tag = 'scoped memory for tpu_custom_call.1']
    #allocation5 [shape = 's32[2]{0}', space=sflag, size = 0x8, scoped, tag = 'scoped memory for tpu_custom_call.1']
    #allocation6 [shape = 'u8[524288]{0}', space=vmem, size = 0x80000, scoped, tag = 'input window, operand 5, single buffered']
    #allocation7 [shape = 's32[1]{0}', space=sflag, size = 0x4, scoped, tag = 'scoped memory for tpu_custom_call.1']
    #allocation8 [shape = 'u8[1048576]{0}', space=vmem, size = 0x100000, scoped, tag = 'output window, operand 0']
    %13 = vsyncpa [#allocation4], 0
    %s14 = scalar_lea.sflag [#allocation4], 1
    %15 = vsyncpa %s14, 0
    %16 = vsyncpa [#allocation7], 0
    %17 = vsyncpa [#allocation5], 0
    %s18 = scalar_lea.sflag [#allocation5], 1
    %19 = vsyncpa %s18, 0
    loop: start=0, step=1, limit=4
    $region2: #{tpu_custom_call.1} parent=1 // loop_pre_header
      _
    $region3: #{tpu_custom_call.1} parent=1 // loop_header
      %s21 = sphi 0, %s25
      %p22 = scmp.ge.s32.totalorder %s21, 4
      %s31 = sphi 0, %s33
      %s34 = sphi 0, %s31
      %s35 = sphi 0, %s34
      %s51 = sphi 0, %s35
      %s55 = sphi 0, %s55
      %s57 = sphi 0, %s55
      %s58 = sphi 0, %s57
      %s72 = sphi 0, %s58
      %s76 = sphi 0, %s76
      %s78 = sphi 0, %s76
      %s79 = sphi 0, %s78
      %s93 = sphi 0, %s79
      %s97 = sphi 0, %s97
      %s99 = sphi 0, %s97
      %s100 = sphi 0, %s99
      %s114 = sphi 0, %s100
      %s118 = sphi 0, %s118
      %s120 = sphi 0, %s118
      %s121 = sphi 0, %s120
      %s135 = sphi 0, %s121
      %s139 = sphi 0, %s139
      %s141 = sphi 0, %s139
      %s142 = sphi 0, %s141
      %s156 = sphi 0, %s142
      %s160 = sphi 0, %s160
      %s162 = sphi 0, %s160
      %s163 = sphi 0, %s162
      %s177 = sphi 0, %s163
      %s183 = sphi 0, %s185
      %s186 = sphi 0, %s183
      %s187 = sphi 0, %s186
      %s203 = sphi 0, %s187
    $region4: #{tpu_custom_call.1} parent=1 // loop_header_branch
      %24 = sbr.rel (%p22) target = $region8
    $region5: #{tpu_custom_call.1} parent=1 // loop_body
      %s26 = ssub.s32 %s21, 1
      %s27 = ssub.s32 %s21, 2
      %s28 = sadd.s32 %s21, 1
      %s29 = ssub.s32 %s21, %s28
      %p30 = scmp.eq.s32.totalorder %s29, 0
      %s32 = sadd.s32 %s31, 1
      %s33 = scalar_select %p30, %s31, %s32
      %p36 = pneg %p30
      %p37 = scmp.eq.s32.totalorder %s21, 1
      %p38 = por %p36, %p37
      %p39 = scmp.ne.s32.totalorder %s31, %s34
      %p40 = scmp.eq.s32.totalorder %s21, 0
      %p41 = por %p39, %p40
      %p42 = scmp.ne.s32.totalorder %s31, %s34
      %p43 = scmp.eq.s32.totalorder %s26, 1
      %p44 = por %p42, %p43
      %p45 = scmp.ne.s32.totalorder %s34, %s35
      %p46 = scmp.eq.s32.totalorder %s26, 0
      %p47 = por %p45, %p46
      %p48 = scmp.ne.s32.totalorder %s34, %s35
      %p49 = scmp.eq.s32.totalorder %s27, 1
      %p50 = por %p48, %p49
      %p52 = scmp.ne.s32.totalorder %s35, %s51
      %p53 = scmp.eq.s32.totalorder %s27, 0
      %p54 = por %p52, %p53
      %s56 = sadd.s32 %s55, 1
      %p59 = scmp.eq.s32.totalorder %s21, 1
      %p60 = scmp.ne.s32.totalorder %s55, %s57
      %p61 = scmp.eq.s32.totalorder %s21, 0
      %p62 = por %p60, %p61
      %p63 = scmp.ne.s32.totalorder %s55, %s57
      %p64 = scmp.eq.s32.totalorder %s26, 1
      %p65 = por %p63, %p64
      %p66 = scmp.ne.s32.totalorder %s57, %s58
      %p67 = scmp.eq.s32.totalorder %s26, 0
      %p68 = por %p66, %p67
      %p69 = scmp.ne.s32.totalorder %s57, %s58
      %p70 = scmp.eq.s32.totalorder %s27, 1
      %p71 = por %p69, %p70
      %p73 = scmp.ne.s32.totalorder %s58, %s72
      %p74 = scmp.eq.s32.totalorder %s27, 0
      %p75 = por %p73, %p74
      %s77 = sadd.s32 %s76, 1
      %p80 = scmp.eq.s32.totalorder %s21, 1
      %p81 = scmp.ne.s32.totalorder %s76, %s78
      %p82 = scmp.eq.s32.totalorder %s21, 0
      %p83 = por %p81, %p82
      %p84 = scmp.ne.s32.totalorder %s76, %s78
      %p85 = scmp.eq.s32.totalorder %s26, 1
      %p86 = por %p84, %p85
      %p87 = scmp.ne.s32.totalorder %s78, %s79
      %p88 = scmp.eq.s32.totalorder %s26, 0
      %p89 = por %p87, %p88
      %p90 = scmp.ne.s32.totalorder %s78, %s79
      %p91 = scmp.eq.s32.totalorder %s27, 1
      %p92 = por %p90, %p91
      %p94 = scmp.ne.s32.totalorder %s79, %s93
      %p95 = scmp.eq.s32.totalorder %s27, 0
      %p96 = por %p94, %p95
      %s98 = sadd.s32 %s97, 1
      %p101 = scmp.eq.s32.totalorder %s21, 1
      %p102 = scmp.ne.s32.totalorder %s97, %s99
      %p103 = scmp.eq.s32.totalorder %s21, 0
      %p104 = por %p102, %p103
      %p105 = scmp.ne.s32.totalorder %s97, %s99
      %p106 = scmp.eq.s32.totalorder %s26, 1
      %p107 = por %p105, %p106
      %p108 = scmp.ne.s32.totalorder %s99, %s100
      %p109 = scmp.eq.s32.totalorder %s26, 0
      %p110 = por %p108, %p109
      %p111 = scmp.ne.s32.totalorder %s99, %s100
      %p112 = scmp.eq.s32.totalorder %s27, 1
      %p113 = por %p111, %p112
      %p115 = scmp.ne.s32.totalorder %s100, %s114
      %p116 = scmp.eq.s32.totalorder %s27, 0
      %p117 = por %p115, %p116
      %s119 = sadd.s32 %s118, 1
      %p122 = scmp.eq.s32.totalorder %s21, 1
      %p123 = scmp.ne.s32.totalorder %s118, %s120
      %p124 = scmp.eq.s32.totalorder %s21, 0
      %p125 = por %p123, %p124
      %p126 = scmp.ne.s32.totalorder %s118, %s120
      %p127 = scmp.eq.s32.totalorder %s26, 1
      %p128 = por %p126, %p127
      %p129 = scmp.ne.s32.totalorder %s120, %s121
      %p130 = scmp.eq.s32.totalorder %s26, 0
      %p131 = por %p129, %p130
      %p132 = scmp.ne.s32.totalorder %s120, %s121
      %p133 = scmp.eq.s32.totalorder %s27, 1
      %p134 = por %p132, %p133
      %p136 = scmp.ne.s32.totalorder %s121, %s135
      %p137 = scmp.eq.s32.totalorder %s27, 0
      %p138 = por %p136, %p137
      %s140 = sadd.s32 %s139, 1
      %p143 = scmp.eq.s32.totalorder %s21, 1
      %p144 = scmp.ne.s32.totalorder %s139, %s141
      %p145 = scmp.eq.s32.totalorder %s21, 0
      %p146 = por %p144, %p145
      %p147 = scmp.ne.s32.totalorder %s139, %s141
      %p148 = scmp.eq.s32.totalorder %s26, 1
      %p149 = por %p147, %p148
      %p150 = scmp.ne.s32.totalorder %s141, %s142
      %p151 = scmp.eq.s32.totalorder %s26, 0
      %p152 = por %p150, %p151
      %p153 = scmp.ne.s32.totalorder %s141, %s142
      %p154 = scmp.eq.s32.totalorder %s27, 1
      %p155 = por %p153, %p154
      %p157 = scmp.ne.s32.totalorder %s142, %s156
      %p158 = scmp.eq.s32.totalorder %s27, 0
      %p159 = por %p157, %p158
      %s161 = sadd.s32 %s160, 1
      %p164 = scmp.eq.s32.totalorder %s21, 1
      %p165 = scmp.ne.s32.totalorder %s160, %s162
      %p166 = scmp.eq.s32.totalorder %s21, 0
      %p167 = por %p165, %p166
      %p168 = scmp.ne.s32.totalorder %s160, %s162
      %p169 = scmp.eq.s32.totalorder %s26, 1
      %p170 = por %p168, %p169
      %p171 = scmp.ne.s32.totalorder %s162, %s163
      %p172 = scmp.eq.s32.totalorder %s26, 0
      %p173 = por %p171, %p172
      %p174 = scmp.ne.s32.totalorder %s162, %s163
      %p175 = scmp.eq.s32.totalorder %s27, 1
      %p176 = por %p174, %p175
      %p178 = scmp.ne.s32.totalorder %s163, %s177
      %p179 = scmp.eq.s32.totalorder %s27, 0
      %p180 = por %p178, %p179
      %s181 = ssub.s32 %s21, %s28
      %p182 = scmp.eq.s32.totalorder %s181, 0
      %s184 = sadd.s32 %s183, 1
      %s185 = scalar_select %p182, %s183, %s184
      %p188 = pneg %p182
      %p189 = scmp.eq.s32.totalorder %s21, 1
      %p190 = por %p188, %p189
      %p191 = scmp.ne.s32.totalorder %s183, %s186
      %p192 = scmp.eq.s32.totalorder %s21, 0
      %p193 = por %p191, %p192
      %p194 = scmp.ne.s32.totalorder %s183, %s186
      %p195 = scmp.eq.s32.totalorder %s26, 1
      %p196 = por %p194, %p195
      %p197 = scmp.ne.s32.totalorder %s186, %s187
      %p198 = scmp.eq.s32.totalorder %s26, 0
      %p199 = por %p197, %p198
      %p200 = scmp.ne.s32.totalorder %s186, %s187
      %p201 = scmp.eq.s32.totalorder %s27, 1
      %p202 = por %p200, %p201
      %p204 = scmp.ne.s32.totalorder %s187, %s203
      %p205 = scmp.eq.s32.totalorder %s27, 0
      %p206 = por %p204, %p205
      %p207 = scmp.le.s32.totalorder 1, %s21
      %p208 = scmp.lt.s32.totalorder %s21, 3
      %p209 = pnand %p207, %p208
      %p210 = pneg %p209
      // Predicated region
      $region9: #{tpu_custom_call.1} parent=5 // pred_check
        _
      $region10: #{tpu_custom_call.1} parent=5 // pred_check_branch
        %212 = sbr.rel (%p209) target = $region12
      $region11: #{tpu_custom_call.1} parent=5 // pred_region
        %s213 = ssub.s32 %s21, 1
        // Predicated region
        $region13: #{tpu_custom_call.1} parent=11 // pred_check
          %p214 = pneg %p68
        $region14: #{tpu_custom_call.1} parent=11 // pred_check_branch
          %216 = sbr.rel (%p214) target = $region16
        $region15: #{tpu_custom_call.1} parent=11 // pred_region
          _
        $region16: #{tpu_custom_call.1} parent=11 // pred_fallthru
          _
        // Predicated region
        $region17: #{tpu_custom_call.1} parent=11 // pred_check
          %p217 = pneg %p89
        $region18: #{tpu_custom_call.1} parent=11 // pred_check_branch
          %219 = sbr.rel (%p217) target = $region20
        $region19: #{tpu_custom_call.1} parent=11 // pred_region
          _
        $region20: #{tpu_custom_call.1} parent=11 // pred_fallthru
          _
        // Predicated region
        $region21: #{tpu_custom_call.1} parent=11 // pred_check
          %p220 = pneg %p110
        $region22: #{tpu_custom_call.1} parent=11 // pred_check_branch
          %222 = sbr.rel (%p220) target = $region24
        $region23: #{tpu_custom_call.1} parent=11 // pred_region
          _
        $region24: #{tpu_custom_call.1} parent=11 // pred_fallthru
          _
        // Predicated region
        $region25: #{tpu_custom_call.1} parent=11 // pred_check
          %p223 = pneg %p131
        $region26: #{tpu_custom_call.1} parent=11 // pred_check_branch
          %225 = sbr.rel (%p223) target = $region28
        $region27: #{tpu_custom_call.1} parent=11 // pred_region
          _
        $region28: #{tpu_custom_call.1} parent=11 // pred_fallthru
          _
        // Predicated region
        $region29: #{tpu_custom_call.1} parent=11 // pred_check
          %p226 = pneg %p152
        $region30: #{tpu_custom_call.1} parent=11 // pred_check_branch
          %228 = sbr.rel (%p226) target = $region32
        $region31: #{tpu_custom_call.1} parent=11 // pred_region
          %s230 = ssub.s32 16384, 16384
          %231 = vsyncadd [#allocation7], %s230
          %s232 = sshll.u32 [#allocation6], 4
          %s233 = int_to_ptr.vmem [resolvable:$true] %s232
          %238 = dma.hbm_to_vmem [thread:$0]  %s5, 16384, %s233, [#allocation7], 512, 512, 32
        $region32: #{tpu_custom_call.1} parent=11 // pred_fallthru
          _
        // Predicated region
        $region33: #{tpu_custom_call.1} parent=11 // pred_check
          %p239 = pneg %p173
        $region34: #{tpu_custom_call.1} parent=11 // pred_check_branch
          %241 = sbr.rel (%p239) target = $region36
        $region35: #{tpu_custom_call.1} parent=11 // pred_region
          _
        $region36: #{tpu_custom_call.1} parent=11 // pred_fallthru
          _
      $region12: #{tpu_custom_call.1} parent=5 // pred_fallthru
        _
      %p242 = scmp.lt.s32.totalorder %s21, 2
      // Predicated region
      $region37: #{tpu_custom_call.1} parent=5 // pred_check
        %p243 = pneg %p242
      $region38: #{tpu_custom_call.1} parent=5 // pred_check_branch
        %245 = sbr.rel (%p243) target = $region40
      $region39: #{tpu_custom_call.1} parent=5 // pred_region
        // Predicated region
        $region41: #{tpu_custom_call.1} parent=39 // pred_check
          %p246 = pneg %p41
        $region42: #{tpu_custom_call.1} parent=39 // pred_check_branch
          %248 = sbr.rel (%p246) target = $region44
        $region43: #{tpu_custom_call.1} parent=39 // pred_region
          %s249 = sand.u32 %s31, 1
          %s250 = scalar_lea.sflag [#allocation4], %s249
          %s251 = sand.u32 %s31, 1
          %s252 = smul.addr %s251, 1024
          %s253 = scalar_lea.vmem [#allocation3], %s252
          %s254 = smul.u32 4, %s21
          %s256 = ssub.s32 16384, 16384
          %257 = vsyncadd %s250, %s256
          %s258 = smul.addr %s254, 32
          %s259 = smul.addr %s258, 128
          %s260 = scalar_lea.hbm %s0, %s259
          %s261 = sshll.u32 %s253, 4
          %s262 = int_to_ptr.vmem [resolvable:$true] %s261
          %267 = dma.hbm_to_vmem [thread:$0]  %s260, 16384, %s262, %s250, 128, 128, 8
        $region44: #{tpu_custom_call.1} parent=39 // pred_fallthru
          _
      $region40: #{tpu_custom_call.1} parent=5 // pred_fallthru
        _
      %p268 = scmp.le.s32.totalorder 1, %s21
      %p269 = scmp.lt.s32.totalorder %s21, 3
      %p270 = pnand %p268, %p269
      %p271 = pneg %p270
      // Predicated region
      $region45: #{tpu_custom_call.1} parent=5 // pred_check
        _
      $region46: #{tpu_custom_call.1} parent=5 // pred_check_branch
        %273 = sbr.rel (%p270) target = $region48
      $region47: #{tpu_custom_call.1} parent=5 // pred_region
        %s274 = ssub.s32 %s21, 1
        %s275 = sand.u32 %s34, 1
        %s276 = scalar_lea.sflag [#allocation4], %s275
        %s277 = sand.u32 %s34, 1
        %s278 = smul.addr %s277, 1024
        %s279 = scalar_lea.vmem [#allocation3], %s278
        // Predicated region
        $region49: #{tpu_custom_call.1} parent=47 // pred_check
          %p280 = pneg %p47
        $region50: #{tpu_custom_call.1} parent=47 // pred_check_branch
          %282 = sbr.rel (%p280) target = $region52
        $region51: #{tpu_custom_call.1} parent=47 // pred_region
          %283 = dma.done %s276, 16384
        $region52: #{tpu_custom_call.1} parent=47 // pred_fallthru
          _
        // Predicated region
        $region53: #{tpu_custom_call.1} parent=47 // pred_check
          %p284 = pneg %p152
        $region54: #{tpu_custom_call.1} parent=47 // pred_check_branch
          %286 = sbr.rel (%p284) target = $region56
        $region55: #{tpu_custom_call.1} parent=47 // pred_region
          %287 = dma.done [#allocation7], 16384
        $region56: #{tpu_custom_call.1} parent=47 // pred_fallthru
          _
        %s288 = sand.u32 %s34, 1
        %s289 = scalar_lea.sflag [#allocation4], %s288
        %s290 = sand.u32 %s34, 1
        %s291 = smul.addr %s290, 1024
        %s292 = scalar_lea.vmem [#allocation3], %s291
        %p293 = pneg %p47
        %p294 = pneg %p44
        %p295 = pneg %p68
        %p296 = pneg %p65
        %p297 = pneg %p89
        %p298 = pneg %p86
        %p299 = pneg %p110
        %p300 = pneg %p107
        %p301 = pneg %p131
        %p302 = pneg %p128
        %p303 = pneg %p152
        %p304 = pneg %p149
        %p305 = pneg %p173
        %p306 = pneg %p170
        %p307 = pneg %p199
        %p308 = pneg %p196
        %s309 = sand.u32 %s186, 1
        %s310 = scalar_lea.sflag [#allocation5], %s309
        %s311 = sand.u32 %s186, 1
        %s312 = smul.addr %s311, 1024
        %s313 = scalar_lea.vmem [#allocation8], %s312
        %s314 = smul.u32 4, %s26
        %s315 = smul.u32 4, %s26
        %v316 = vld [vmem:[%s279] sm:$0xff]
        %v317 = vld [vmem:[%s279 + $0x8] sm:$0xff]
        %v318 = vld [vmem:[%s279 + $0x10] sm:$0xff]
        %v319 = vld [vmem:[%s279 + $0x18] sm:$0xff]
        %v320 = vld [vmem:[%s279 + $0x20] sm:$0xff]
        %v321 = vld [vmem:[%s279 + $0x28] sm:$0xff]
        %v322 = vld [vmem:[%s279 + $0x30] sm:$0xff]
        %v323 = vld [vmem:[%s279 + $0x38] sm:$0xff]
        %v324 = vld [vmem:[%s279 + $0x40] sm:$0xff]
        %v325 = vld [vmem:[%s279 + $0x48] sm:$0xff]
        %v326 = vld [vmem:[%s279 + $0x50] sm:$0xff]
        %v327 = vld [vmem:[%s279 + $0x58] sm:$0xff]
        %v328 = vld [vmem:[%s279 + $0x60] sm:$0xff]
        %v329 = vld [vmem:[%s279 + $0x68] sm:$0xff]
        %v330 = vld [vmem:[%s279 + $0x70] sm:$0xff]
        %v331 = vld [vmem:[%s279 + $0x78] sm:$0xff]
        %v332 = vld [vmem:[%s279 + $0x80] sm:$0xff]
        %v333 = vld [vmem:[%s279 + $0x88] sm:$0xff]
        %v334 = vld [vmem:[%s279 + $0x90] sm:$0xff]
        %v335 = vld [vmem:[%s279 + $0x98] sm:$0xff]
        %v336 = vld [vmem:[%s279 + $0xa0] sm:$0xff]
        %v337 = vld [vmem:[%s279 + $0xa8] sm:$0xff]
        %v338 = vld [vmem:[%s279 + $0xb0] sm:$0xff]
        %v339 = vld [vmem:[%s279 + $0xb8] sm:$0xff]
        %v340 = vld [vmem:[%s279 + $0xc0] sm:$0xff]
        %v341 = vld [vmem:[%s279 + $0xc8] sm:$0xff]
        %v342 = vld [vmem:[%s279 + $0xd0] sm:$0xff]
        %v343 = vld [vmem:[%s279 + $0xd8] sm:$0xff]
        %v344 = vld [vmem:[%s279 + $0xe0] sm:$0xff]
        %v345 = vld [vmem:[%s279 + $0xe8] sm:$0xff]
        %v346 = vld [vmem:[%s279 + $0xf0] sm:$0xff]
        %v347 = vld [vmem:[%s279 + $0xf8] sm:$0xff]
        %v348 = vld [vmem:[%s279 + $0x100] sm:$0xff]
        %v349 = vld [vmem:[%s279 + $0x108] sm:$0xff]
        %v350 = vld [vmem:[%s279 + $0x110] sm:$0xff]
        %v351 = vld [vmem:[%s279 + $0x118] sm:$0xff]
        %v352 = vld [vmem:[%s279 + $0x120] sm:$0xff]
        %v353 = vld [vmem:[%s279 + $0x128] sm:$0xff]
        %v354 = vld [vmem:[%s279 + $0x130] sm:$0xff]
        %v355 = vld [vmem:[%s279 + $0x138] sm:$0xff]
        %v356 = vld [vmem:[%s279 + $0x140] sm:$0xff]
        %v357 = vld [vmem:[%s279 + $0x148] sm:$0xff]
        %v358 = vld [vmem:[%s279 + $0x150] sm:$0xff]
        %v359 = vld [vmem:[%s279 + $0x158] sm:$0xff]
        %v360 = vld [vmem:[%s279 + $0x160] sm:$0xff]
        %v361 = vld [vmem:[%s279 + $0x168] sm:$0xff]
        %v362 = vld [vmem:[%s279 + $0x170] sm:$0xff]
        %v363 = vld [vmem:[%s279 + $0x178] sm:$0xff]
        %v364 = vld [vmem:[%s279 + $0x180] sm:$0xff]
        %v365 = vld [vmem:[%s279 + $0x188] sm:$0xff]
        %v366 = vld [vmem:[%s279 + $0x190] sm:$0xff]
        %v367 = vld [vmem:[%s279 + $0x198] sm:$0xff]
        %v368 = vld [vmem:[%s279 + $0x1a0] sm:$0xff]
        %v369 = vld [vmem:[%s279 + $0x1a8] sm:$0xff]
        %v370 = vld [vmem:[%s279 + $0x1b0] sm:$0xff]
        %v371 = vld [vmem:[%s279 + $0x1b8] sm:$0xff]
        %v372 = vld [vmem:[%s279 + $0x1c0] sm:$0xff]
        %v373 = vld [vmem:[%s279 + $0x1c8] sm:$0xff]
        %v374 = vld [vmem:[%s279 + $0x1d0] sm:$0xff]
        %v375 = vld [vmem:[%s279 + $0x1d8] sm:$0xff]
        %v376 = vld [vmem:[%s279 + $0x1e0] sm:$0xff]
        %v377 = vld [vmem:[%s279 + $0x1e8] sm:$0xff]
        %v378 = vld [vmem:[%s279 + $0x1f0] sm:$0xff]
        %v379 = vld [vmem:[%s279 + $0x1f8] sm:$0xff]
        %v380 = vld [vmem:[%s279 + $0x200] sm:$0xff]
        %v381 = vld [vmem:[%s279 + $0x208] sm:$0xff]
        %v382 = vld [vmem:[%s279 + $0x210] sm:$0xff]
        %v383 = vld [vmem:[%s279 + $0x218] sm:$0xff]
        %v384 = vld [vmem:[%s279 + $0x220] sm:$0xff]
        %v385 = vld [vmem:[%s279 + $0x228] sm:$0xff]
        %v386 = vld [vmem:[%s279 + $0x230] sm:$0xff]
        %v387 = vld [vmem:[%s279 + $0x238] sm:$0xff]
        %v388 = vld [vmem:[%s279 + $0x240] sm:$0xff]
        %v389 = vld [vmem:[%s279 + $0x248] sm:$0xff]
        %v390 = vld [vmem:[%s279 + $0x250] sm:$0xff]
        %v391 = vld [vmem:[%s279 + $0x258] sm:$0xff]
        %v392 = vld [vmem:[%s279 + $0x260] sm:$0xff]
        %v393 = vld [vmem:[%s279 + $0x268] sm:$0xff]
        %v394 = vld [vmem:[%s279 + $0x270] sm:$0xff]
        %v395 = vld [vmem:[%s279 + $0x278] sm:$0xff]
        %v396 = vld [vmem:[%s279 + $0x280] sm:$0xff]
        %v397 = vld [vmem:[%s279 + $0x288] sm:$0xff]
        %v398 = vld [vmem:[%s279 + $0x290] sm:$0xff]
        %v399 = vld [vmem:[%s279 + $0x298] sm:$0xff]
        %v400 = vld [vmem:[%s279 + $0x2a0] sm:$0xff]
        %v401 = vld [vmem:[%s279 + $0x2a8] sm:$0xff]
        %v402 = vld [vmem:[%s279 + $0x2b0] sm:$0xff]
        %v403 = vld [vmem:[%s279 + $0x2b8] sm:$0xff]
        %v404 = vld [vmem:[%s279 + $0x2c0] sm:$0xff]
        %v405 = vld [vmem:[%s279 + $0x2c8] sm:$0xff]
        %v406 = vld [vmem:[%s279 + $0x2d0] sm:$0xff]
        %v407 = vld [vmem:[%s279 + $0x2d8] sm:$0xff]
        %v408 = vld [vmem:[%s279 + $0x2e0] sm:$0xff]
        %v409 = vld [vmem:[%s279 + $0x2e8] sm:$0xff]
        %v410 = vld [vmem:[%s279 + $0x2f0] sm:$0xff]
        %v411 = vld [vmem:[%s279 + $0x2f8] sm:$0xff]
        %v412 = vld [vmem:[%s279 + $0x300] sm:$0xff]
        %v413 = vld [vmem:[%s279 + $0x308] sm:$0xff]
        %v414 = vld [vmem:[%s279 + $0x310] sm:$0xff]
        %v415 = vld [vmem:[%s279 + $0x318] sm:$0xff]
        %v416 = vld [vmem:[%s279 + $0x320] sm:$0xff]
        %v417 = vld [vmem:[%s279 + $0x328] sm:$0xff]
        %v418 = vld [vmem:[%s279 + $0x330] sm:$0xff]
        %v419 = vld [vmem:[%s279 + $0x338] sm:$0xff]
        %v420 = vld [vmem:[%s279 + $0x340] sm:$0xff]
        %v421 = vld [vmem:[%s279 + $0x348] sm:$0xff]
        %v422 = vld [vmem:[%s279 + $0x350] sm:$0xff]
        %v423 = vld [vmem:[%s279 + $0x358] sm:$0xff]
        %v424 = vld [vmem:[%s279 + $0x360] sm:$0xff]
        %v425 = vld [vmem:[%s279 + $0x368] sm:$0xff]
        %v426 = vld [vmem:[%s279 + $0x370] sm:$0xff]
        %v427 = vld [vmem:[%s279 + $0x378] sm:$0xff]
        %v428 = vld [vmem:[%s279 + $0x380] sm:$0xff]
        %v429 = vld [vmem:[%s279 + $0x388] sm:$0xff]
        %v430 = vld [vmem:[%s279 + $0x390] sm:$0xff]
        %v431 = vld [vmem:[%s279 + $0x398] sm:$0xff]
        %v432 = vld [vmem:[%s279 + $0x3a0] sm:$0xff]
        %v433 = vld [vmem:[%s279 + $0x3a8] sm:$0xff]
        %v434 = vld [vmem:[%s279 + $0x3b0] sm:$0xff]
        %v435 = vld [vmem:[%s279 + $0x3b8] sm:$0xff]
        %v436 = vld [vmem:[%s279 + $0x3c0] sm:$0xff]
        %v437 = vld [vmem:[%s279 + $0x3c8] sm:$0xff]
        %v438 = vld [vmem:[%s279 + $0x3d0] sm:$0xff]
        %v439 = vld [vmem:[%s279 + $0x3d8] sm:$0xff]
        %v440 = vld [vmem:[%s279 + $0x3e0] sm:$0xff]
        %v441 = vld [vmem:[%s279 + $0x3e8] sm:$0xff]
        %v442 = vld [vmem:[%s279 + $0x3f0] sm:$0xff]
        %v443 = vld [vmem:[%s279 + $0x3f8] sm:$0xff]
        %v444 = vadd.f32 %v316, %v317
        %v445 = vadd.f32 %v444, %v318
        %v446 = vadd.f32 %v445, %v319
        %v447 = vadd.f32 %v446, %v320
        %v448 = vadd.f32 %v447, %v321
        %v449 = vadd.f32 %v448, %v322
        %v450 = vadd.f32 %v449, %v323
        %v451 = vadd.f32 %v450, %v324
        %v452 = vadd.f32 %v451, %v325
        %v453 = vadd.f32 %v452, %v326
        %v454 = vadd.f32 %v453, %v327
        %v455 = vadd.f32 %v454, %v328
        %v456 = vadd.f32 %v455, %v329
        %v457 = vadd.f32 %v456, %v330
        %v458 = vadd.f32 %v457, %v331
        %v459 = vadd.f32 %v458, %v332
        %v460 = vadd.f32 %v459, %v333
        %v461 = vadd.f32 %v460, %v334
        %v462 = vadd.f32 %v461, %v335
        %v463 = vadd.f32 %v462, %v336
        %v464 = vadd.f32 %v463, %v337
        %v465 = vadd.f32 %v464, %v338
        %v466 = vadd.f32 %v465, %v339
        %v467 = vadd.f32 %v466, %v340
        %v468 = vadd.f32 %v467, %v341
        %v469 = vadd.f32 %v468, %v342
        %v470 = vadd.f32 %v469, %v343
        %v471 = vadd.f32 %v470, %v344
        %v472 = vadd.f32 %v471, %v345
        %v473 = vadd.f32 %v472, %v346
        %v474 = vadd.f32 %v473, %v347
        %v475 = vrot.slane %v474, 4
        %v476 = vadd.f32 %v474, %v475
        %v477 = vrot.slane %v476, 2
        %v478 = vadd.f32 %v476, %v477
        %v479 = vrot.slane %v478, 1
        %v480 = vadd.f32 %v478, %v479
        %v481 = vrcp.pop 256.0
        %v482 = vmul.f32 %v480, %v481
        %v483 = vmax.f32 %v316, %v320
        %v484 = vmax.f32 %v317, %v321
        %v485 = vmax.f32 %v318, %v322
        %v486 = vmax.f32 %v319, %v323
        %v487 = vmax.f32 %v483, %v324
        %v488 = vmax.f32 %v484, %v325
        %v489 = vmax.f32 %v485, %v326
        %v490 = vmax.f32 %v486, %v327
        %v491 = vmax.f32 %v487, %v328
        %v492 = vmax.f32 %v488, %v329
        %v493 = vmax.f32 %v489, %v330
        %v494 = vmax.f32 %v490, %v331
        %v495 = vmax.f32 %v491, %v332
        %v496 = vmax.f32 %v492, %v333
        %v497 = vmax.f32 %v493, %v334
        %v498 = vmax.f32 %v494, %v335
        %v499 = vmax.f32 %v495, %v336
        %v500 = vmax.f32 %v496, %v337
        %v501 = vmax.f32 %v497, %v338
        %v502 = vmax.f32 %v498, %v339
        %v503 = vmax.f32 %v499, %v340
        %v504 = vmax.f32 %v500, %v341
        %v505 = vmax.f32 %v501, %v342
        %v506 = vmax.f32 %v502, %v343
        %v507 = vmax.f32 %v503, %v344
        %v508 = vmax.f32 %v504, %v345
        %v509 = vmax.f32 %v505, %v346
        %v510 = vmax.f32 %v506, %v347
        %v511 = vmax.f32 %v507, %v508
        %v512 = vmax.f32 %v509, %v510
        %v513 = vmax.f32 %v511, %v512
        %v514 = vrot.slane %v513, 4
        %v515 = vmax.f32 %v513, %v514
        %v516 = vrot.slane %v515, 2
        %v517 = vmax.f32 %v515, %v516
        %v518 = vrot.slane %v517, 1
        %v519 = vmax.f32 %v517, %v518
        %v520 = vadd.f32 %v348, %v349
        %v521 = vadd.f32 %v520, %v350
        %v522 = vadd.f32 %v521, %v351
        %v523 = vadd.f32 %v522, %v352
        %v524 = vadd.f32 %v523, %v353
        %v525 = vadd.f32 %v524, %v354
        %v526 = vadd.f32 %v525, %v355
        %v527 = vadd.f32 %v526, %v356
        %v528 = vadd.f32 %v527, %v357
        %v529 = vadd.f32 %v528, %v358
        %v530 = vadd.f32 %v529, %v359
        %v531 = vadd.f32 %v530, %v360
        %v532 = vadd.f32 %v531, %v361
        %v533 = vadd.f32 %v532, %v362
        %v534 = vadd.f32 %v533, %v363
        %v535 = vadd.f32 %v534, %v364
        %v536 = vadd.f32 %v535, %v365
        %v537 = vadd.f32 %v536, %v366
        %v538 = vadd.f32 %v537, %v367
        %v539 = vadd.f32 %v538, %v368
        %v540 = vadd.f32 %v539, %v369
        %v541 = vadd.f32 %v540, %v370
        %v542 = vadd.f32 %v541, %v371
        %v543 = vadd.f32 %v542, %v372
        %v544 = vadd.f32 %v543, %v373
        %v545 = vadd.f32 %v544, %v374
        %v546 = vadd.f32 %v545, %v375
        %v547 = vadd.f32 %v546, %v376
        %v548 = vadd.f32 %v547, %v377
        %v549 = vadd.f32 %v548, %v378
        %v550 = vadd.f32 %v549, %v379
        %v551 = vrot.slane %v550, 4
        %v552 = vadd.f32 %v550, %v551
        %v553 = vrot.slane %v552, 2
        %v554 = vadd.f32 %v552, %v553
        %v555 = vrot.slane %v554, 1
        %v556 = vadd.f32 %v554, %v555
        %v557 = vmul.f32 %v556, %v481
        %v558 = vmax.f32 %v348, %v352
        %v559 = vmax.f32 %v349, %v353
        %v560 = vmax.f32 %v350, %v354
        %v561 = vmax.f32 %v351, %v355
        %v562 = vmax.f32 %v558, %v356
        %v563 = vmax.f32 %v559, %v357
        %v564 = vmax.f32 %v560, %v358
        %v565 = vmax.f32 %v561, %v359
        %v566 = vmax.f32 %v562, %v360
        %v567 = vmax.f32 %v563, %v361
        %v568 = vmax.f32 %v564, %v362
        %v569 = vmax.f32 %v565, %v363
        %v570 = vmax.f32 %v566, %v364
        %v571 = vmax.f32 %v567, %v365
        %v572 = vmax.f32 %v568, %v366
        %v573 = vmax.f32 %v569, %v367
        %v574 = vmax.f32 %v570, %v368
        %v575 = vmax.f32 %v571, %v369
        %v576 = vmax.f32 %v572, %v370
        %v577 = vmax.f32 %v573, %v371
        %v578 = vmax.f32 %v574, %v372
        %v579 = vmax.f32 %v575, %v373
        %v580 = vmax.f32 %v576, %v374
        %v581 = vmax.f32 %v577, %v375
        %v582 = vmax.f32 %v578, %v376
        %v583 = vmax.f32 %v579, %v377
        %v584 = vmax.f32 %v580, %v378
        %v585 = vmax.f32 %v581, %v379
        %v586 = vmax.f32 %v582, %v583
        %v587 = vmax.f32 %v584, %v585
        %v588 = vmax.f32 %v586, %v587
        %v589 = vrot.slane %v588, 4
        %v590 = vmax.f32 %v588, %v589
        %v591 = vrot.slane %v590, 2
        %v592 = vmax.f32 %v590, %v591
        %v593 = vrot.slane %v592, 1
        %v594 = vmax.f32 %v592, %v593
        %v595 = vadd.f32 %v380, %v381
        %v596 = vadd.f32 %v595, %v382
        %v597 = vadd.f32 %v596, %v383
        %v598 = vadd.f32 %v597, %v384
        %v599 = vadd.f32 %v598, %v385
        %v600 = vadd.f32 %v599, %v386
        %v601 = vadd.f32 %v600, %v387
        %v602 = vadd.f32 %v601, %v388
        %v603 = vadd.f32 %v602, %v389
        %v604 = vadd.f32 %v603, %v390
        %v605 = vadd.f32 %v604, %v391
        %v606 = vadd.f32 %v605, %v392
        %v607 = vadd.f32 %v606, %v393
        %v608 = vadd.f32 %v607, %v394
        %v609 = vadd.f32 %v608, %v395
        %v610 = vadd.f32 %v609, %v396
        %v611 = vadd.f32 %v610, %v397
        %v612 = vadd.f32 %v611, %v398
        %v613 = vadd.f32 %v612, %v399
        %v614 = vadd.f32 %v613, %v400
        %v615 = vadd.f32 %v614, %v401
        %v616 = vadd.f32 %v615, %v402
        %v617 = vadd.f32 %v616, %v403
        %v618 = vadd.f32 %v617, %v404
        %v619 = vadd.f32 %v618, %v405
        %v620 = vadd.f32 %v619, %v406
        %v621 = vadd.f32 %v620, %v407
        %v622 = vadd.f32 %v621, %v408
        %v623 = vadd.f32 %v622, %v409
        %v624 = vadd.f32 %v623, %v410
        %v625 = vadd.f32 %v624, %v411
        %v626 = vrot.slane %v625, 4
        %v627 = vadd.f32 %v625, %v626
        %v628 = vrot.slane %v627, 2
        %v629 = vadd.f32 %v627, %v628
        %v630 = vrot.slane %v629, 1
        %v631 = vadd.f32 %v629, %v630
        %v632 = vmul.f32 %v631, %v481
        %v633 = vmax.f32 %v380, %v384
        %v634 = vmax.f32 %v381, %v385
        %v635 = vmax.f32 %v382, %v386
        %v636 = vmax.f32 %v383, %v387
        %v637 = vmax.f32 %v633, %v388
        %v638 = vmax.f32 %v634, %v389
        %v639 = vmax.f32 %v635, %v390
        %v640 = vmax.f32 %v636, %v391
        %v641 = vmax.f32 %v637, %v392
        %v642 = vmax.f32 %v638, %v393
        %v643 = vmax.f32 %v639, %v394
        %v644 = vmax.f32 %v640, %v395
        %v645 = vmax.f32 %v641, %v396
        %v646 = vmax.f32 %v642, %v397
        %v647 = vmax.f32 %v643, %v398
        %v648 = vmax.f32 %v644, %v399
        %v649 = vmax.f32 %v645, %v400
        %v650 = vmax.f32 %v646, %v401
        %v651 = vmax.f32 %v647, %v402
        %v652 = vmax.f32 %v648, %v403
        %v653 = vmax.f32 %v649, %v404
        %v654 = vmax.f32 %v650, %v405
        %v655 = vmax.f32 %v651, %v406
        %v656 = vmax.f32 %v652, %v407
        %v657 = vmax.f32 %v653, %v408
        %v658 = vmax.f32 %v654, %v409
        %v659 = vmax.f32 %v655, %v410
        %v660 = vmax.f32 %v656, %v411
        %v661 = vmax.f32 %v657, %v658
        %v662 = vmax.f32 %v659, %v660
        %v663 = vmax.f32 %v661, %v662
        %v664 = vrot.slane %v663, 4
        %v665 = vmax.f32 %v663, %v664
        %v666 = vrot.slane %v665, 2
        %v667 = vmax.f32 %v665, %v666
        %v668 = vrot.slane %v667, 1
        %v669 = vmax.f32 %v667, %v668
        %v670 = vadd.f32 %v412, %v413
        %v671 = vadd.f32 %v670, %v414
        %v672 = vadd.f32 %v671, %v415
        %v673 = vadd.f32 %v672, %v416
        %v674 = vadd.f32 %v673, %v417
        %v675 = vadd.f32 %v674, %v418
        %v676 = vadd.f32 %v675, %v419
        %v677 = vadd.f32 %v676, %v420
        %v678 = vadd.f32 %v677, %v421
        %v679 = vadd.f32 %v678, %v422
        %v680 = vadd.f32 %v679, %v423
        %v681 = vadd.f32 %v680, %v424
        %v682 = vadd.f32 %v681, %v425
        %v683 = vadd.f32 %v682, %v426
        %v684 = vadd.f32 %v683, %v427
        %v685 = vadd.f32 %v684, %v428
        %v686 = vadd.f32 %v685, %v429
        %v687 = vadd.f32 %v686, %v430
        %v688 = vadd.f32 %v687, %v431
        %v689 = vadd.f32 %v688, %v432
        %v690 = vadd.f32 %v689, %v433
        %v691 = vadd.f32 %v690, %v434
        %v692 = vadd.f32 %v691, %v435
        %v693 = vadd.f32 %v692, %v436
        %v694 = vadd.f32 %v693, %v437
        %v695 = vadd.f32 %v694, %v438
        %v696 = vadd.f32 %v695, %v439
        %v697 = vadd.f32 %v696, %v440
        %v698 = vadd.f32 %v697, %v441
        %v699 = vadd.f32 %v698, %v442
        %v700 = vadd.f32 %v699, %v443
        %v701 = vrot.slane %v700, 4
        %v702 = vadd.f32 %v700, %v701
        %v703 = vrot.slane %v702, 2
        %v704 = vadd.f32 %v702, %v703
        %v705 = vrot.slane %v704, 1
        %v706 = vadd.f32 %v704, %v705
        %v707 = vmul.f32 %v706, %v481
        %v708 = vmax.f32 %v412, %v416
        %v709 = vmax.f32 %v413, %v417
        %v710 = vmax.f32 %v414, %v418
        %v711 = vmax.f32 %v415, %v419
        %v712 = vmax.f32 %v708, %v420
        %v713 = vmax.f32 %v709, %v421
        %v714 = vmax.f32 %v710, %v422
        %v715 = vmax.f32 %v711, %v423
        %v716 = vmax.f32 %v712, %v424
        %v717 = vmax.f32 %v713, %v425
        %v718 = vmax.f32 %v714, %v426
        %v719 = vmax.f32 %v715, %v427
        %v720 = vmax.f32 %v716, %v428
        %v721 = vmax.f32 %v717, %v429
        %v722 = vmax.f32 %v718, %v430
        %v723 = vmax.f32 %v719, %v431
        %v724 = vmax.f32 %v720, %v432
        %v725 = vmax.f32 %v721, %v433
        %v726 = vmax.f32 %v722, %v434
        %v727 = vmax.f32 %v723, %v435
        %v728 = vmax.f32 %v724, %v436
        %v729 = vmax.f32 %v725, %v437
        %v730 = vmax.f32 %v726, %v438
        %v731 = vmax.f32 %v727, %v439
        %v732 = vmax.f32 %v728, %v440
        %v733 = vmax.f32 %v729, %v441
        %v734 = vmax.f32 %v730, %v442
        %v735 = vmax.f32 %v731, %v443
        %v736 = vmax.f32 %v732, %v733
        %v737 = vmax.f32 %v734, %v735
        %v738 = vmax.f32 %v736, %v737
        %v739 = vrot.slane %v738, 4
        %v740 = vmax.f32 %v738, %v739
        %v741 = vrot.slane %v740, 2
        %v742 = vmax.f32 %v740, %v741
        %v743 = vrot.slane %v742, 1
        %v744 = vmax.f32 %v742, %v743
        %vm745 = vcmask 1040384
        %v746 = vsel %vm745, %v482, %v557
        %vm747 = vcmask 1041408
        %v748 = vsel %vm747, %v746, %v632
        %vm749 = vcmask 1042432
        %v750 = vsel %vm749, %v748, %v707
        %vm751 = vcmask 1043456
        %v752 = vsel %vm751, %v750, %v519
        %vm753 = vcmask 1044480
        %v754 = vsel %vm753, %v752, %v594
        %vm755 = vcmask 1045504
        %v756 = vsel %vm755, %v754, %v669
        %vm757 = vcmask 1046528
        %v758 = vsel %vm757, %v756, %v744
        %v759 = vld [vmem:[%s1] sm:$0xff]
        %v760 = vld [vmem:[%s1 + $0x8] sm:$0xff]
        %v761 = vld [vmem:[%s1 + $0x10] sm:$0xff]
        %v762 = vld [vmem:[%s1 + $0x18] sm:$0xff]
        %v763 = vld [vmem:[%s1 + $0x20] sm:$0xff]
        %v764 = vld [vmem:[%s1 + $0x28] sm:$0xff]
        %v765 = vld [vmem:[%s1 + $0x30] sm:$0xff]
        %v766 = vld [vmem:[%s1 + $0x38] sm:$0xff]
        %v767 = vld [vmem:[%s1 + $0x40] sm:$0xff]
        %v768 = vld [vmem:[%s1 + $0x48] sm:$0xff]
        %v769 = vld [vmem:[%s1 + $0x50] sm:$0xff]
        %v770 = vld [vmem:[%s1 + $0x58] sm:$0xff]
        %v771 = vld [vmem:[%s1 + $0x60] sm:$0xff]
        %v772 = vld [vmem:[%s1 + $0x68] sm:$0xff]
        %v773 = vld [vmem:[%s1 + $0x70] sm:$0xff]
        %v774 = vld [vmem:[%s1 + $0x78] sm:$0xff]
        %v775 = vld [vmem:[%s2] sm:$0x1]
        %v777 = vlaneseq
        %v778 = vshrl.u32 %v777, 7
        %v779 = vsub.s32 0, %v778
        %v780 = vrot.slane %v775, %v779
        %782 = vmatprep.subr.mxu0 0.0
        %783 = vmatpush1.msra.mxu0 %v759
        %784 = vmatprep.subr.mxu0 0.0
        %785 = vmatpush1.msra.mxu0 %v760
        %786 = vmatprep.subr.mxu0 0.0
        %787 = vmatpush1.msra.mxu0 %v761
        %788 = vmatprep.subr.mxu0 0.0
        %789 = vmatpush1.msra.mxu0 %v762
        %790 = vmatprep.subr.mxu0 0.0
        %791 = vmatpush1.msra.mxu0 %v763
        %792 = vmatprep.subr.mxu0 0.0
        %793 = vmatpush1.msra.mxu0 %v764
        %794 = vmatprep.subr.mxu0 0.0
        %795 = vmatpush1.msra.mxu0 %v765
        %796 = vmatprep.subr.mxu0 0.0
        %797 = vmatpush1.msra.mxu0 %v766
        %798 = vmatprep.subr.mxu0 0.0
        %799 = vmatpush1.msra.mxu0 %v767
        %800 = vmatprep.subr.mxu0 0.0
        %801 = vmatpush1.msra.mxu0 %v768
        %802 = vmatprep.subr.mxu0 0.0
        %803 = vmatpush1.msra.mxu0 %v769
        %804 = vmatprep.subr.mxu0 0.0
        %805 = vmatpush1.msra.mxu0 %v770
        %806 = vmatprep.subr.mxu0 0.0
        %807 = vmatpush1.msra.mxu0 %v771
        %808 = vmatprep.subr.mxu0 0.0
        %809 = vmatpush1.msra.mxu0 %v772
        %810 = vmatprep.subr.mxu0 0.0
        %811 = vmatpush1.msra.mxu0 %v773
        %812 = vmatprep.subr.mxu0 0.0
        %813 = vmatpush1.msra.mxu0 %v774
        %814 = vmatprep.subr.mxu0 0.0
        %815 = vmatpush1.msra.mxu0 0.0
        %816 = vmatprep.subr.mxu0 0.0
        %817 = vmatpush1.msra.mxu0 0.0
        %818 = vmatprep.subr.mxu0 0.0
        %819 = vmatpush1.msra.mxu0 0.0
        %820 = vmatprep.subr.mxu0 0.0
        %821 = vmatpush1.msra.mxu0 0.0
        %822 = vmatprep.subr.mxu0 0.0
        %823 = vmatpush1.msra.mxu0 0.0
        %824 = vmatprep.subr.mxu0 0.0
        %825 = vmatpush1.msra.mxu0 0.0
        %826 = vmatprep.subr.mxu0 0.0
        %827 = vmatpush1.msra.mxu0 0.0
        %828 = vmatprep.subr.mxu0 0.0
        %829 = vmatpush1.msra.mxu0 0.0
        %830 = vmatprep.subr.mxu0 0.0
        %831 = vmatpush1.msra.mxu0 0.0
        %832 = vmatprep.subr.mxu0 0.0
        %833 = vmatpush1.msra.mxu0 0.0
        %834 = vmatprep.subr.mxu0 0.0
        %835 = vmatpush1.msra.mxu0 0.0
        %836 = vmatprep.subr.mxu0 0.0
        %837 = vmatpush1.msra.mxu0 0.0
        %838 = vmatprep.subr.mxu0 0.0
        %839 = vmatpush1.msra.mxu0 0.0
        %840 = vmatprep.subr.mxu0 0.0
        %841 = vmatpush1.msra.mxu0 0.0
        %842 = vmatprep.subr.mxu0 0.0
        %843 = vmatpush1.msra.mxu0 0.0
        %844 = vmatprep.subr.mxu0 0.0
        %845 = vmatpush1.msra.mxu0 0.0
        %846 = vmatprep.mubr.f32.mxu0 0.0
        %847 = vmatmul.mubr.f32.gmra.mrb[0].mxu0 %v758
        %v848 = vpop.f32.mrb[0].mxu0
        %v849 = vadd.f32 %v780, %v848
        %v850 = vpop.f32.mrb[0].mxu0
        %851 = vdwg.mxu0
        %v852 = vmax.f32 %v849, 0.0
        %v853 = vld [vmem:[%s3] sm:$0xff]
        %v854 = vld [vmem:[%s3 + $0x8] sm:$0xff]
        %v855 = vld [vmem:[%s3 + $0x10] sm:$0xff]
        %v856 = vld [vmem:[%s3 + $0x18] sm:$0xff]
        %v857 = vld [vmem:[%s4] sm:$0x1]
        %v859 = vlaneseq
        %v860 = vshrl.u32 %v859, 7
        %v861 = vsub.s32 0, %v860
        %v862 = vrot.slane %v857, %v861
        %vm864 = vcmask 261120
        %v866 = vsel %vm864, %v852, 0
        %868 = vmatprep.subr.mxu0 0.0
        %869 = vmatpush1.msra.mxu0 %v853
        %870 = vmatprep.subr.mxu0 0.0
        %871 = vmatpush1.msra.mxu0 %v854
        %872 = vmatprep.subr.mxu0 0.0
        %873 = vmatpush1.msra.mxu0 %v855
        %874 = vmatprep.subr.mxu0 0.0
        %875 = vmatpush1.msra.mxu0 %v856
        %876 = vmatprep.subr.mxu0 0.0
        %877 = vmatpush1.msra.mxu0 0.0
        %878 = vmatprep.subr.mxu0 0.0
        %879 = vmatpush1.msra.mxu0 0.0
        %880 = vmatprep.subr.mxu0 0.0
        %881 = vmatpush1.msra.mxu0 0.0
        %882 = vmatprep.subr.mxu0 0.0
        %883 = vmatpush1.msra.mxu0 0.0
        %884 = vmatprep.subr.mxu0 0.0
        %885 = vmatpush1.msra.mxu0 0.0
        %886 = vmatprep.subr.mxu0 0.0
        %887 = vmatpush1.msra.mxu0 0.0
        %888 = vmatprep.subr.mxu0 0.0
        %889 = vmatpush1.msra.mxu0 0.0
        %890 = vmatprep.subr.mxu0 0.0
        %891 = vmatpush1.msra.mxu0 0.0
        %892 = vmatprep.subr.mxu0 0.0
        %893 = vmatpush1.msra.mxu0 0.0
        %894 = vmatprep.subr.mxu0 0.0
        %895 = vmatpush1.msra.mxu0 0.0
        %896 = vmatprep.subr.mxu0 0.0
        %897 = vmatpush1.msra.mxu0 0.0
        %898 = vmatprep.subr.mxu0 0.0
        %899 = vmatpush1.msra.mxu0 0.0
        %900 = vmatprep.subr.mxu0 0.0
        %901 = vmatpush1.msra.mxu0 0.0
        %902 = vmatprep.subr.mxu0 0.0
        %903 = vmatpush1.msra.mxu0 0.0
        %904 = vmatprep.subr.mxu0 0.0
        %905 = vmatpush1.msra.mxu0 0.0
        %906 = vmatprep.subr.mxu0 0.0
        %907 = vmatpush1.msra.mxu0 0.0
        %908 = vmatprep.subr.mxu0 0.0
        %909 = vmatpush1.msra.mxu0 0.0
        %910 = vmatprep.subr.mxu0 0.0
        %911 = vmatpush1.msra.mxu0 0.0
        %912 = vmatprep.subr.mxu0 0.0
        %913 = vmatpush1.msra.mxu0 0.0
        %914 = vmatprep.subr.mxu0 0.0
        %915 = vmatpush1.msra.mxu0 0.0
        %916 = vmatprep.subr.mxu0 0.0
        %917 = vmatpush1.msra.mxu0 0.0
        %918 = vmatprep.subr.mxu0 0.0
        %919 = vmatpush1.msra.mxu0 0.0
        %920 = vmatprep.subr.mxu0 0.0
        %921 = vmatpush1.msra.mxu0 0.0
        %922 = vmatprep.subr.mxu0 0.0
        %923 = vmatpush1.msra.mxu0 0.0
        %924 = vmatprep.subr.mxu0 0.0
        %925 = vmatpush1.msra.mxu0 0.0
        %926 = vmatprep.subr.mxu0 0.0
        %927 = vmatpush1.msra.mxu0 0.0
        %928 = vmatprep.subr.mxu0 0.0
        %929 = vmatpush1.msra.mxu0 0.0
        %930 = vmatprep.subr.mxu0 0.0
        %931 = vmatpush1.msra.mxu0 0.0
        %932 = vmatprep.mubr.f32.mxu0 0.0
        %933 = vmatmul.mubr.f32.gmra.mrb[0].mxu0 %v866
        %v934 = vpop.f32.mrb[0].mxu0
        %v935 = vadd.f32 %v862, %v934
        %v936 = vpop.f32.mrb[0].mxu0
        %937 = vdwg.mxu0
        %v939 = vrot.slane %v935, 4
        %v941 = vadd.f32 %v935, %v939
        %v942 = vsub.f32 0.0, %v941
        %v943 = vmul.f32 %v942, 1.442695
        %v944 = vpow.pop %v943
        %v945 = vadd.f32 %v944, 1.0
        %v946 = vrcp.pop %v945
        %v947 = vmul.f32 1.0, %v946
        %v948 = vlaneseq
        %v949 = vshrl.u32 %v948, 7
        %v950 = vsub.s32 0, %v949
        %v951 = vrot.slane %v947, %v950
        %v952 = vmul.f32 %v316, %v951
        %v953 = vmul.f32 %v317, %v951
        %v954 = vmul.f32 %v318, %v951
        %v955 = vmul.f32 %v319, %v951
        %v956 = vmul.f32 %v320, %v951
        %v957 = vmul.f32 %v321, %v951
        %v958 = vmul.f32 %v322, %v951
        %v959 = vmul.f32 %v323, %v951
        %v960 = vmul.f32 %v324, %v951
        %v961 = vmul.f32 %v325, %v951
        %v962 = vmul.f32 %v326, %v951
        %v963 = vmul.f32 %v327, %v951
        %v964 = vmul.f32 %v328, %v951
        %v965 = vmul.f32 %v329, %v951
        %v966 = vmul.f32 %v330, %v951
        %v967 = vmul.f32 %v331, %v951
        %v968 = vmul.f32 %v332, %v951
        %v969 = vmul.f32 %v333, %v951
        %v970 = vmul.f32 %v334, %v951
        %v971 = vmul.f32 %v335, %v951
        %v972 = vmul.f32 %v336, %v951
        %v973 = vmul.f32 %v337, %v951
        %v974 = vmul.f32 %v338, %v951
        %v975 = vmul.f32 %v339, %v951
        %v976 = vmul.f32 %v340, %v951
        %v977 = vmul.f32 %v341, %v951
        %v978 = vmul.f32 %v342, %v951
        %v979 = vmul.f32 %v343, %v951
        %v980 = vmul.f32 %v344, %v951
        %v981 = vmul.f32 %v345, %v951
        %v982 = vmul.f32 %v346, %v951
        %v983 = vmul.f32 %v347, %v951
        %v984 = vlaneseq
        %v985 = vshrl.u32 %v984, 7
        %v986 = vsub.s32 1, %v985
        %v987 = vrot.slane %v947, %v986
        %v988 = vmul.f32 %v348, %v987
        %v989 = vmul.f32 %v349, %v987
        %v990 = vmul.f32 %v350, %v987
        %v991 = vmul.f32 %v351, %v987
        %v992 = vmul.f32 %v352, %v987
        %v993 = vmul.f32 %v353, %v987
        %v994 = vmul.f32 %v354, %v987
        %v995 = vmul.f32 %v355, %v987
        %v996 = vmul.f32 %v356, %v987
        %v997 = vmul.f32 %v357, %v987
        %v998 = vmul.f32 %v358, %v987
        %v999 = vmul.f32 %v359, %v987
        %v1000 = vmul.f32 %v360, %v987
        %v1001 = vmul.f32 %v361, %v987
        %v1002 = vmul.f32 %v362, %v987
        %v1003 = vmul.f32 %v363, %v987
        %v1004 = vmul.f32 %v364, %v987
        %v1005 = vmul.f32 %v365, %v987
        %v1006 = vmul.f32 %v366, %v987
        %v1007 = vmul.f32 %v367, %v987
        %v1008 = vmul.f32 %v368, %v987
        %v1009 = vmul.f32 %v369, %v987
        %v1010 = vmul.f32 %v370, %v987
        %v1011 = vmul.f32 %v371, %v987
        %v1012 = vmul.f32 %v372, %v987
        %v1013 = vmul.f32 %v373, %v987
        %v1014 = vmul.f32 %v374, %v987
        %v1015 = vmul.f32 %v375, %v987
        %v1016 = vmul.f32 %v376, %v987
        %v1017 = vmul.f32 %v377, %v987
        %v1018 = vmul.f32 %v378, %v987
        %v1019 = vmul.f32 %v379, %v987
        %v1020 = vlaneseq
        %v1021 = vshrl.u32 %v1020, 7
        %v1022 = vsub.s32 2, %v1021
        %v1023 = vrot.slane %v947, %v1022
        %v1024 = vmul.f32 %v380, %v1023
        %v1025 = vmul.f32 %v381, %v1023
        %v1026 = vmul.f32 %v382, %v1023
        %v1027 = vmul.f32 %v383, %v1023
        %v1028 = vmul.f32 %v384, %v1023
        %v1029 = vmul.f32 %v385, %v1023
        %v1030 = vmul.f32 %v386, %v1023
        %v1031 = vmul.f32 %v387, %v1023
        %v1032 = vmul.f32 %v388, %v1023
        %v1033 = vmul.f32 %v389, %v1023
        %v1034 = vmul.f32 %v390, %v1023
        %v1035 = vmul.f32 %v391, %v1023
        %v1036 = vmul.f32 %v392, %v1023
        %v1037 = vmul.f32 %v393, %v1023
        %v1038 = vmul.f32 %v394, %v1023
        %v1039 = vmul.f32 %v395, %v1023
        %v1040 = vmul.f32 %v396, %v1023
        %v1041 = vmul.f32 %v397, %v1023
        %v1042 = vmul.f32 %v398, %v1023
        %v1043 = vmul.f32 %v399, %v1023
        %v1044 = vmul.f32 %v400, %v1023
        %v1045 = vmul.f32 %v401, %v1023
        %v1046 = vmul.f32 %v402, %v1023
        %v1047 = vmul.f32 %v403, %v1023
        %v1048 = vmul.f32 %v404, %v1023
        %v1049 = vmul.f32 %v405, %v1023
        %v1050 = vmul.f32 %v406, %v1023
        %v1051 = vmul.f32 %v407, %v1023
        %v1052 = vmul.f32 %v408, %v1023
        %v1053 = vmul.f32 %v409, %v1023
        %v1054 = vmul.f32 %v410, %v1023
        %v1055 = vmul.f32 %v411, %v1023
        %v1056 = vlaneseq
        %v1057 = vshrl.u32 %v1056, 7
        %v1058 = vsub.s32 3, %v1057
        %v1059 = vrot.slane %v947, %v1058
        %v1060 = vmul.f32 %v412, %v1059
        %v1061 = vmul.f32 %v413, %v1059
        %v1062 = vmul.f32 %v414, %v1059
        %v1063 = vmul.f32 %v415, %v1059
        %v1064 = vmul.f32 %v416, %v1059
        %v1065 = vmul.f32 %v417, %v1059
        %v1066 = vmul.f32 %v418, %v1059
        %v1067 = vmul.f32 %v419, %v1059
        %v1068 = vmul.f32 %v420, %v1059
        %v1069 = vmul.f32 %v421, %v1059
        %v1070 = vmul.f32 %v422, %v1059
        %v1071 = vmul.f32 %v423, %v1059
        %v1072 = vmul.f32 %v424, %v1059
        %v1073 = vmul.f32 %v425, %v1059
        %v1074 = vmul.f32 %v426, %v1059
        %v1075 = vmul.f32 %v427, %v1059
        %v1076 = vmul.f32 %v428, %v1059
        %v1077 = vmul.f32 %v429, %v1059
        %v1078 = vmul.f32 %v430, %v1059
        %v1079 = vmul.f32 %v431, %v1059
        %v1080 = vmul.f32 %v432, %v1059
        %v1081 = vmul.f32 %v433, %v1059
        %v1082 = vmul.f32 %v434, %v1059
        %v1083 = vmul.f32 %v435, %v1059
        %v1084 = vmul.f32 %v436, %v1059
        %v1085 = vmul.f32 %v437, %v1059
        %v1086 = vmul.f32 %v438, %v1059
        %v1087 = vmul.f32 %v439, %v1059
        %v1088 = vmul.f32 %v440, %v1059
        %v1089 = vmul.f32 %v441, %v1059
        %v1090 = vmul.f32 %v442, %v1059
        %v1091 = vmul.f32 %v443, %v1059
        %1092 = vmatprep.subr.mxu0 0.0
        %1093 = vmatpush1.msra.mxu0 0.0078125
        %1094 = vmatprep.subr.mxu0 0.0
        %1095 = vmatpush1.msra.mxu0 0.0078125
        %1096 = vmatprep.subr.mxu0 0.0
        %1097 = vmatpush1.msra.mxu0 0.0078125
        %1098 = vmatprep.subr.mxu0 0.0
        %1099 = vmatpush1.msra.mxu0 0.0078125
        %1100 = vmatprep.subr.mxu0 0.0
        %1101 = vmatpush1.msra.mxu0 0.0078125
        %1102 = vmatprep.subr.mxu0 0.0
        %1103 = vmatpush1.msra.mxu0 0.0078125
        %1104 = vmatprep.subr.mxu0 0.0
        %1105 = vmatpush1.msra.mxu0 0.0078125
        %1106 = vmatprep.subr.mxu0 0.0
        %1107 = vmatpush1.msra.mxu0 0.0078125
        %1108 = vmatprep.subr.mxu0 0.0
        %1109 = vmatpush1.msra.mxu0 0.0078125
        %1110 = vmatprep.subr.mxu0 0.0
        %1111 = vmatpush1.msra.mxu0 0.0078125
        %1112 = vmatprep.subr.mxu0 0.0
        %1113 = vmatpush1.msra.mxu0 0.0078125
        %1114 = vmatprep.subr.mxu0 0.0
        %1115 = vmatpush1.msra.mxu0 0.0078125
        %1116 = vmatprep.subr.mxu0 0.0
        %1117 = vmatpush1.msra.mxu0 0.0078125
        %1118 = vmatprep.subr.mxu0 0.0
        %1119 = vmatpush1.msra.mxu0 0.0078125
        %1120 = vmatprep.subr.mxu0 0.0
        %1121 = vmatpush1.msra.mxu0 0.0078125
        %1122 = vmatprep.subr.mxu0 0.0
        %1123 = vmatpush1.msra.mxu0 0.0078125
        %1124 = vmatprep.subr.mxu0 0.0
        %1125 = vmatpush1.msra.mxu0 0.0
        %1126 = vmatprep.subr.mxu0 0.0
        %1127 = vmatpush1.msra.mxu0 0.0
        %1128 = vmatprep.subr.mxu0 0.0
        %1129 = vmatpush1.msra.mxu0 0.0
        %1130 = vmatprep.subr.mxu0 0.0
        %1131 = vmatpush1.msra.mxu0 0.0
        %1132 = vmatprep.subr.mxu0 0.0
        %1133 = vmatpush1.msra.mxu0 0.0
        %1134 = vmatprep.subr.mxu0 0.0
        %1135 = vmatpush1.msra.mxu0 0.0
        %1136 = vmatprep.subr.mxu0 0.0
        %1137 = vmatpush1.msra.mxu0 0.0
        %1138 = vmatprep.subr.mxu0 0.0
        %1139 = vmatpush1.msra.mxu0 0.0
        %1140 = vmatprep.subr.mxu0 0.0
        %1141 = vmatpush1.msra.mxu0 0.0
        %1142 = vmatprep.subr.mxu0 0.0
        %1143 = vmatpush1.msra.mxu0 0.0
        %1144 = vmatprep.subr.mxu0 0.0
        %1145 = vmatpush1.msra.mxu0 0.0
        %1146 = vmatprep.subr.mxu0 0.0
        %1147 = vmatpush1.msra.mxu0 0.0
        %1148 = vmatprep.subr.mxu0 0.0
        %1149 = vmatpush1.msra.mxu0 0.0
        %1150 = vmatprep.subr.mxu0 0.0
        %1151 = vmatpush1.msra.mxu0 0.0
        %1152 = vmatprep.subr.mxu0 0.0
        %1153 = vmatpush1.msra.mxu0 0.0
        %1154 = vmatprep.subr.mxu0 0.0
        %1155 = vmatpush1.msra.mxu0 0.0
        %1156 = vmatprep.mubr.f32.mxu0 0.0
        %1157 = vmatmul.mubr.f32.gmra.mrb[0].mxu0 %v952
        %v1158 = vpop.f32.mrb[0].mxu0
        %v1159 = vadd.f32 0.0, %v1158
        %v1160 = vpop.f32.mrb[0].mxu0
        %1161 = vmatprep.mubr.f32.mxu0 0.0
        %1162 = vmatmul.mubr.f32.gmra.mrb[0].mxu0 %v953
        %v1163 = vpop.f32.mrb[0].mxu0
        %v1164 = vadd.f32 0.0, %v1163
        %v1165 = vpop.f32.mrb[0].mxu0
        %1166 = vmatprep.mubr.f32.mxu0 0.0
        %1167 = vmatmul.mubr.f32.gmra.mrb[0].mxu0 %v954
        %v1168 = vpop.f32.mrb[0].mxu0
        %v1169 = vadd.f32 0.0, %v1168
        %v1170 = vpop.f32.mrb[0].mxu0
        %1171 = vmatprep.mubr.f32.mxu0 0.0
        %1172 = vmatmul.mubr.f32.gmra.mrb[0].mxu0 %v955
        %v1173 = vpop.f32.mrb[0].mxu0
        %v1174 = vadd.f32 0.0, %v1173
        %v1175 = vpop.f32.mrb[0].mxu0
        %1176 = vmatprep.mubr.f32.mxu0 0.0
        %1177 = vmatmul.mubr.f32.gmra.mrb[0].mxu0 %v956
        %v1178 = vpop.f32.mrb[0].mxu0
        %v1179 = vadd.f32 0.0, %v1178
        %v1180 = vpop.f32.mrb[0].mxu0
        %1181 = vmatprep.mubr.f32.mxu0 0.0
        %1182 = vmatmul.mubr.f32.gmra.mrb[0].mxu0 %v957
        %v1183 = vpop.f32.mrb[0].mxu0
        %v1184 = vadd.f32 0.0, %v1183
        %v1185 = vpop.f32.mrb[0].mxu0
        %1186 = vmatprep.mubr.f32.mxu0 0.0
        %1187 = vmatmul.mubr.f32.gmra.mrb[0].mxu0 %v958
        %v1188 = vpop.f32.mrb[0].mxu0
        %v1189 = vadd.f32 0.0, %v1188
        %v1190 = vpop.f32.mrb[0].mxu0
        %1191 = vmatprep.mubr.f32.mxu0 0.0
        %1192 = vmatmul.mubr.f32.gmra.mrb[0].mxu0 %v959
        %v1193 = vpop.f32.mrb[0].mxu0
        %v1194 = vadd.f32 0.0, %v1193
        %v1195 = vpop.f32.mrb[0].mxu0
        %1196 = vmatprep.mubr.f32.mxu0 0.0
        %1197 = vmatmul.mubr.f32.gmra.mrb[0].mxu0 %v960
        %v1198 = vpop.f32.mrb[0].mxu0
        %v1199 = vadd.f32 0.0, %v1198
        %v1200 = vpop.f32.mrb[0].mxu0
        %1201 = vmatprep.mubr.f32.mxu0 0.0
        %1202 = vmatmul.mubr.f32.gmra.mrb[0].mxu0 %v961
        %v1203 = vpop.f32.mrb[0].mxu0
        %v1204 = vadd.f32 0.0, %v1203
        %v1205 = vpop.f32.mrb[0].mxu0
        %1206 = vmatprep.mubr.f32.mxu0 0.0
        %1207 = vmatmul.mubr.f32.gmra.mrb[0].mxu0 %v962
        %v1208 = vpop.f32.mrb[0].mxu0
        %v1209 = vadd.f32 0.0, %v1208
        %v1210 = vpop.f32.mrb[0].mxu0
        %1211 = vmatprep.mubr.f32.mxu0 0.0
        %1212 = vmatmul.mubr.f32.gmra.mrb[0].mxu0 %v963
        %v1213 = vpop.f32.mrb[0].mxu0
        %v1214 = vadd.f32 0.0, %v1213
        %v1215 = vpop.f32.mrb[0].mxu0
        %1216 = vmatprep.mubr.f32.mxu0 0.0
        %1217 = vmatmul.mubr.f32.gmra.mrb[0].mxu0 %v964
        %v1218 = vpop.f32.mrb[0].mxu0
        %v1219 = vadd.f32 0.0, %v1218
        %v1220 = vpop.f32.mrb[0].mxu0
        %1221 = vmatprep.mubr.f32.mxu0 0.0
        %1222 = vmatmul.mubr.f32.gmra.mrb[0].mxu0 %v965
        %v1223 = vpop.f32.mrb[0].mxu0
        %v1224 = vadd.f32 0.0, %v1223
        %v1225 = vpop.f32.mrb[0].mxu0
        %1226 = vmatprep.mubr.f32.mxu0 0.0
        %1227 = vmatmul.mubr.f32.gmra.mrb[0].mxu0 %v966
        %v1228 = vpop.f32.mrb[0].mxu0
        %v1229 = vadd.f32 0.0, %v1228
        %v1230 = vpop.f32.mrb[0].mxu0
        %1231 = vmatprep.mubr.f32.mxu0 0.0
        %1232 = vmatmul.mubr.f32.gmra.mrb[0].mxu0 %v967
        %v1233 = vpop.f32.mrb[0].mxu0
        %v1234 = vadd.f32 0.0, %v1233
        %v1235 = vpop.f32.mrb[0].mxu0
        %1236 = vmatprep.mubr.f32.mxu0 0.0
        %1237 = vmatmul.mubr.f32.gmra.mrb[0].mxu0 %v968
        %v1238 = vpop.f32.mrb[0].mxu0
        %v1239 = vadd.f32 0.0, %v1238
        %v1240 = vpop.f32.mrb[0].mxu0
        %1241 = vmatprep.mubr.f32.mxu0 0.0
        %1242 = vmatmul.mubr.f32.gmra.mrb[0].mxu0 %v969
        %v1243 = vpop.f32.mrb[0].mxu0
        %v1244 = vadd.f32 0.0, %v1243
        %v1245 = vpop.f32.mrb[0].mxu0
        %1246 = vmatprep.mubr.f32.mxu0 0.0
        %1247 = vmatmul.mubr.f32.gmra.mrb[0].mxu0 %v970
        %v1248 = vpop.f32.mrb[0].mxu0
        %v1249 = vadd.f32 0.0, %v1248
        %v1250 = vpop.f32.mrb[0].mxu0
        %1251 = vmatprep.mubr.f32.mxu0 0.0
        %1252 = vmatmul.mubr.f32.gmra.mrb[0].mxu0 %v971
        %v1253 = vpop.f32.mrb[0].mxu0
        %v1254 = vadd.f32 0.0, %v1253
        %v1255 = vpop.f32.mrb[0].mxu0
        %1256 = vmatprep.mubr.f32.mxu0 0.0
        %1257 = vmatmul.mubr.f32.gmra.mrb[0].mxu0 %v972
        %v1258 = vpop.f32.mrb[0].mxu0
        %v1259 = vadd.f32 0.0, %v1258
        %v1260 = vpop.f32.mrb[0].mxu0
        %1261 = vmatprep.mubr.f32.mxu0 0.0
        %1262 = vmatmul.mubr.f32.gmra.mrb[0].mxu0 %v973
        %v1263 = vpop.f32.mrb[0].mxu0
        %v1264 = vadd.f32 0.0, %v1263
        %v1265 = vpop.f32.mrb[0].mxu0
        %1266 = vmatprep.mubr.f32.mxu0 0.0
        %1267 = vmatmul.mubr.f32.gmra.mrb[0].mxu0 %v974
        %v1268 = vpop.f32.mrb[0].mxu0
        %v1269 = vadd.f32 0.0, %v1268
        %v1270 = vpop.f32.mrb[0].mxu0
        %1271 = vmatprep.mubr.f32.mxu0 0.0
        %1272 = vmatmul.mubr.f32.gmra.mrb[0].mxu0 %v975
        %v1273 = vpop.f32.mrb[0].mxu0
        %v1274 = vadd.f32 0.0, %v1273
        %v1275 = vpop.f32.mrb[0].mxu0
        %1276 = vmatprep.mubr.f32.mxu0 0.0
        %1277 = vmatmul.mubr.f32.gmra.mrb[0].mxu0 %v976
        %v1278 = vpop.f32.mrb[0].mxu0
        %v1279 = vadd.f32 0.0, %v1278
        %v1280 = vpop.f32.mrb[0].mxu0
        %1281 = vmatprep.mubr.f32.mxu0 0.0
        %1282 = vmatmul.mubr.f32.gmra.mrb[0].mxu0 %v977
        %v1283 = vpop.f32.mrb[0].mxu0
        %v1284 = vadd.f32 0.0, %v1283
        %v1285 = vpop.f32.mrb[0].mxu0
        %1286 = vmatprep.mubr.f32.mxu0 0.0
        %1287 = vmatmul.mubr.f32.gmra.mrb[0].mxu0 %v978
        %v1288 = vpop.f32.mrb[0].mxu0
        %v1289 = vadd.f32 0.0, %v1288
        %v1290 = vpop.f32.mrb[0].mxu0
        %1291 = vmatprep.mubr.f32.mxu0 0.0
        %1292 = vmatmul.mubr.f32.gmra.mrb[0].mxu0 %v979
        %v1293 = vpop.f32.mrb[0].mxu0
        %v1294 = vadd.f32 0.0, %v1293
        %v1295 = vpop.f32.mrb[0].mxu0
        %1296 = vmatprep.mubr.f32.mxu0 0.0
        %1297 = vmatmul.mubr.f32.gmra.mrb[0].mxu0 %v980
        %v1298 = vpop.f32.mrb[0].mxu0
        %v1299 = vadd.f32 0.0, %v1298
        %v1300 = vpop.f32.mrb[0].mxu0
        %1301 = vmatprep.mubr.f32.mxu0 0.0
        %1302 = vmatmul.mubr.f32.gmra.mrb[0].mxu0 %v981
        %v1303 = vpop.f32.mrb[0].mxu0
        %v1304 = vadd.f32 0.0, %v1303
        %v1305 = vpop.f32.mrb[0].mxu0
        %1306 = vmatprep.mubr.f32.mxu0 0.0
        %1307 = vmatmul.mubr.f32.gmra.mrb[0].mxu0 %v982
        %v1308 = vpop.f32.mrb[0].mxu0
        %v1309 = vadd.f32 0.0, %v1308
        %v1310 = vpop.f32.mrb[0].mxu0
        %1311 = vmatprep.mubr.f32.mxu0 0.0
        %1312 = vmatmul.mubr.f32.gmra.mrb[0].mxu0 %v983
        %v1313 = vpop.f32.mrb[0].mxu0
        %v1314 = vadd.f32 0.0, %v1313
        %v1315 = vpop.f32.mrb[0].mxu0
        %1316 = vmatprep.mubr.f32.mxu0 0.0
        %1317 = vmatmul.mubr.f32.gmra.mrb[0].mxu0 %v988
        %v1318 = vpop.f32.mrb[0].mxu0
        %v1319 = vadd.f32 0.0, %v1318
        %v1320 = vpop.f32.mrb[0].mxu0
        %1321 = vmatprep.mubr.f32.mxu0 0.0
        %1322 = vmatmul.mubr.f32.gmra.mrb[0].mxu0 %v989
        %v1323 = vpop.f32.mrb[0].mxu0
        %v1324 = vadd.f32 0.0, %v1323
        %v1325 = vpop.f32.mrb[0].mxu0
        %1326 = vmatprep.mubr.f32.mxu0 0.0
        %1327 = vmatmul.mubr.f32.gmra.mrb[0].mxu0 %v990
        %v1328 = vpop.f32.mrb[0].mxu0
        %v1329 = vadd.f32 0.0, %v1328
        %v1330 = vpop.f32.mrb[0].mxu0
        %1331 = vmatprep.mubr.f32.mxu0 0.0
        %1332 = vmatmul.mubr.f32.gmra.mrb[0].mxu0 %v991
        %v1333 = vpop.f32.mrb[0].mxu0
        %v1334 = vadd.f32 0.0, %v1333
        %v1335 = vpop.f32.mrb[0].mxu0
        %1336 = vmatprep.mubr.f32.mxu0 0.0
        %1337 = vmatmul.mubr.f32.gmra.mrb[0].mxu0 %v992
        %v1338 = vpop.f32.mrb[0].mxu0
        %v1339 = vadd.f32 0.0, %v1338
        %v1340 = vpop.f32.mrb[0].mxu0
        %1341 = vmatprep.mubr.f32.mxu0 0.0
        %1342 = vmatmul.mubr.f32.gmra.mrb[0].mxu0 %v993
        %v1343 = vpop.f32.mrb[0].mxu0
        %v1344 = vadd.f32 0.0, %v1343
        %v1345 = vpop.f32.mrb[0].mxu0
        %1346 = vmatprep.mubr.f32.mxu0 0.0
        %1347 = vmatmul.mubr.f32.gmra.mrb[0].mxu0 %v994
        %v1348 = vpop.f32.mrb[0].mxu0
        %v1349 = vadd.f32 0.0, %v1348
        %v1350 = vpop.f32.mrb[0].mxu0
        %1351 = vmatprep.mubr.f32.mxu0 0.0
        %1352 = vmatmul.mubr.f32.gmra.mrb[0].mxu0 %v995
        %v1353 = vpop.f32.mrb[0].mxu0
        %v1354 = vadd.f32 0.0, %v1353
        %v1355 = vpop.f32.mrb[0].mxu0
        %1356 = vmatprep.mubr.f32.mxu0 0.0
        %1357 = vmatmul.mubr.f32.gmra.mrb[0].mxu0 %v996
        %v1358 = vpop.f32.mrb[0].mxu0
        %v1359 = vadd.f32 0.0, %v1358
        %v1360 = vpop.f32.mrb[0].mxu0
        %1361 = vmatprep.mubr.f32.mxu0 0.0
        %1362 = vmatmul.mubr.f32.gmra.mrb[0].mxu0 %v997
        %v1363 = vpop.f32.mrb[0].mxu0
        %v1364 = vadd.f32 0.0, %v1363
        %v1365 = vpop.f32.mrb[0].mxu0
        %1366 = vmatprep.mubr.f32.mxu0 0.0
        %1367 = vmatmul.mubr.f32.gmra.mrb[0].mxu0 %v998
        %v1368 = vpop.f32.mrb[0].mxu0
        %v1369 = vadd.f32 0.0, %v1368
        %v1370 = vpop.f32.mrb[0].mxu0
        %1371 = vmatprep.mubr.f32.mxu0 0.0
        %1372 = vmatmul.mubr.f32.gmra.mrb[0].mxu0 %v999
        %v1373 = vpop.f32.mrb[0].mxu0
        %v1374 = vadd.f32 0.0, %v1373
        %v1375 = vpop.f32.mrb[0].mxu0
        %1376 = vmatprep.mubr.f32.mxu0 0.0
        %1377 = vmatmul.mubr.f32.gmra.mrb[0].mxu0 %v1000
        %v1378 = vpop.f32.mrb[0].mxu0
        %v1379 = vadd.f32 0.0, %v1378
        %v1380 = vpop.f32.mrb[0].mxu0
        %1381 = vmatprep.mubr.f32.mxu0 0.0
        %1382 = vmatmul.mubr.f32.gmra.mrb[0].mxu0 %v1001
        %v1383 = vpop.f32.mrb[0].mxu0
        %v1384 = vadd.f32 0.0, %v1383
        %v1385 = vpop.f32.mrb[0].mxu0
        %1386 = vmatprep.mubr.f32.mxu0 0.0
        %1387 = vmatmul.mubr.f32.gmra.mrb[0].mxu0 %v1002
        %v1388 = vpop.f32.mrb[0].mxu0
        %v1389 = vadd.f32 0.0, %v1388
        %v1390 = vpop.f32.mrb[0].mxu0
        %1391 = vmatprep.mubr.f32.mxu0 0.0
        %1392 = vmatmul.mubr.f32.gmra.mrb[0].mxu0 %v1003
        %v1393 = vpop.f32.mrb[0].mxu0
        %v1394 = vadd.f32 0.0, %v1393
        %v1395 = vpop.f32.mrb[0].mxu0
        %1396 = vmatprep.mubr.f32.mxu0 0.0
        %1397 = vmatmul.mubr.f32.gmra.mrb[0].mxu0 %v1004
        %v1398 = vpop.f32.mrb[0].mxu0
        %v1399 = vadd.f32 0.0, %v1398
        %v1400 = vpop.f32.mrb[0].mxu0
        %1401 = vmatprep.mubr.f32.mxu0 0.0
        %1402 = vmatmul.mubr.f32.gmra.mrb[0].mxu0 %v1005
        %v1403 = vpop.f32.mrb[0].mxu0
        %v1404 = vadd.f32 0.0, %v1403
        %v1405 = vpop.f32.mrb[0].mxu0
        %1406 = vmatprep.mubr.f32.mxu0 0.0
        %1407 = vmatmul.mubr.f32.gmra.mrb[0].mxu0 %v1006
        %v1408 = vpop.f32.mrb[0].mxu0
        %v1409 = vadd.f32 0.0, %v1408
        %v1410 = vpop.f32.mrb[0].mxu0
        %1411 = vmatprep.mubr.f32.mxu0 0.0
        %1412 = vmatmul.mubr.f32.gmra.mrb[0].mxu0 %v1007
        %v1413 = vpop.f32.mrb[0].mxu0
        %v1414 = vadd.f32 0.0, %v1413
        %v1415 = vpop.f32.mrb[0].mxu0
        %1416 = vmatprep.mubr.f32.mxu0 0.0
        %1417 = vmatmul.mubr.f32.gmra.mrb[0].mxu0 %v1008
        %v1418 = vpop.f32.mrb[0].mxu0
        %v1419 = vadd.f32 0.0, %v1418
        %v1420 = vpop.f32.mrb[0].mxu0
        %1421 = vmatprep.mubr.f32.mxu0 0.0
        %1422 = vmatmul.mubr.f32.gmra.mrb[0].mxu0 %v1009
        %v1423 = vpop.f32.mrb[0].mxu0
        %v1424 = vadd.f32 0.0, %v1423
        %v1425 = vpop.f32.mrb[0].mxu0
        %1426 = vmatprep.mubr.f32.mxu0 0.0
        %1427 = vmatmul.mubr.f32.gmra.mrb[0].mxu0 %v1010
        %v1428 = vpop.f32.mrb[0].mxu0
        %v1429 = vadd.f32 0.0, %v1428
        %v1430 = vpop.f32.mrb[0].mxu0
        %1431 = vmatprep.mubr.f32.mxu0 0.0
        %1432 = vmatmul.mubr.f32.gmra.mrb[0].mxu0 %v1011
        %v1433 = vpop.f32.mrb[0].mxu0
        %v1434 = vadd.f32 0.0, %v1433
        %v1435 = vpop.f32.mrb[0].mxu0
        %1436 = vmatprep.mubr.f32.mxu0 0.0
        %1437 = vmatmul.mubr.f32.gmra.mrb[0].mxu0 %v1012
        %v1438 = vpop.f32.mrb[0].mxu0
        %v1439 = vadd.f32 0.0, %v1438
        %v1440 = vpop.f32.mrb[0].mxu0
        %1441 = vmatprep.mubr.f32.mxu0 0.0
        %1442 = vmatmul.mubr.f32.gmra.mrb[0].mxu0 %v1013
        %v1443 = vpop.f32.mrb[0].mxu0
        %v1444 = vadd.f32 0.0, %v1443
        %v1445 = vpop.f32.mrb[0].mxu0
        %1446 = vmatprep.mubr.f32.mxu0 0.0
        %1447 = vmatmul.mubr.f32.gmra.mrb[0].mxu0 %v1014
        %v1448 = vpop.f32.mrb[0].mxu0
        %v1449 = vadd.f32 0.0, %v1448
        %v1450 = vpop.f32.mrb[0].mxu0
        %1451 = vmatprep.mubr.f32.mxu0 0.0
        %1452 = vmatmul.mubr.f32.gmra.mrb[0].mxu0 %v1015
        %v1453 = vpop.f32.mrb[0].mxu0
        %v1454 = vadd.f32 0.0, %v1453
        %v1455 = vpop.f32.mrb[0].mxu0
        %1456 = vmatprep.mubr.f32.mxu0 0.0
        %1457 = vmatmul.mubr.f32.gmra.mrb[0].mxu0 %v1016
        %v1458 = vpop.f32.mrb[0].mxu0
        %v1459 = vadd.f32 0.0, %v1458
        %v1460 = vpop.f32.mrb[0].mxu0
        %1461 = vmatprep.mubr.f32.mxu0 0.0
        %1462 = vmatmul.mubr.f32.gmra.mrb[0].mxu0 %v1017
        %v1463 = vpop.f32.mrb[0].mxu0
        %v1464 = vadd.f32 0.0, %v1463
        %v1465 = vpop.f32.mrb[0].mxu0
        %1466 = vmatprep.mubr.f32.mxu0 0.0
        %1467 = vmatmul.mubr.f32.gmra.mrb[0].mxu0 %v1018
        %v1468 = vpop.f32.mrb[0].mxu0
        %v1469 = vadd.f32 0.0, %v1468
        %v1470 = vpop.f32.mrb[0].mxu0
        %1471 = vmatprep.mubr.f32.mxu0 0.0
        %1472 = vmatmul.mubr.f32.gmra.mrb[0].mxu0 %v1019
        %v1473 = vpop.f32.mrb[0].mxu0
        %v1474 = vadd.f32 0.0, %v1473
        %v1475 = vpop.f32.mrb[0].mxu0
        %1476 = vmatprep.mubr.f32.mxu0 0.0
        %1477 = vmatmul.mubr.f32.gmra.mrb[0].mxu0 %v1024
        %v1478 = vpop.f32.mrb[0].mxu0
        %v1479 = vadd.f32 0.0, %v1478
        %v1480 = vpop.f32.mrb[0].mxu0
        %1481 = vmatprep.mubr.f32.mxu0 0.0
        %1482 = vmatmul.mubr.f32.gmra.mrb[0].mxu0 %v1025
        %v1483 = vpop.f32.mrb[0].mxu0
        %v1484 = vadd.f32 0.0, %v1483
        %v1485 = vpop.f32.mrb[0].mxu0
        %1486 = vmatprep.mubr.f32.mxu0 0.0
        %1487 = vmatmul.mubr.f32.gmra.mrb[0].mxu0 %v1026
        %v1488 = vpop.f32.mrb[0].mxu0
        %v1489 = vadd.f32 0.0, %v1488
        %v1490 = vpop.f32.mrb[0].mxu0
        %1491 = vmatprep.mubr.f32.mxu0 0.0
        %1492 = vmatmul.mubr.f32.gmra.mrb[0].mxu0 %v1027
        %v1493 = vpop.f32.mrb[0].mxu0
        %v1494 = vadd.f32 0.0, %v1493
        %v1495 = vpop.f32.mrb[0].mxu0
        %1496 = vmatprep.mubr.f32.mxu0 0.0
        %1497 = vmatmul.mubr.f32.gmra.mrb[0].mxu0 %v1028
        %v1498 = vpop.f32.mrb[0].mxu0
        %v1499 = vadd.f32 0.0, %v1498
        %v1500 = vpop.f32.mrb[0].mxu0
        %1501 = vmatprep.mubr.f32.mxu0 0.0
        %1502 = vmatmul.mubr.f32.gmra.mrb[0].mxu0 %v1029
        %v1503 = vpop.f32.mrb[0].mxu0
        %v1504 = vadd.f32 0.0, %v1503
        %v1505 = vpop.f32.mrb[0].mxu0
        %1506 = vmatprep.mubr.f32.mxu0 0.0
        %1507 = vmatmul.mubr.f32.gmra.mrb[0].mxu0 %v1030
        %v1508 = vpop.f32.mrb[0].mxu0
        %v1509 = vadd.f32 0.0, %v1508
        %v1510 = vpop.f32.mrb[0].mxu0
        %1511 = vmatprep.mubr.f32.mxu0 0.0
        %1512 = vmatmul.mubr.f32.gmra.mrb[0].mxu0 %v1031
        %v1513 = vpop.f32.mrb[0].mxu0
        %v1514 = vadd.f32 0.0, %v1513
        %v1515 = vpop.f32.mrb[0].mxu0
        %1516 = vmatprep.mubr.f32.mxu0 0.0
        %1517 = vmatmul.mubr.f32.gmra.mrb[0].mxu0 %v1032
        %v1518 = vpop.f32.mrb[0].mxu0
        %v1519 = vadd.f32 0.0, %v1518
        %v1520 = vpop.f32.mrb[0].mxu0
        %1521 = vmatprep.mubr.f32.mxu0 0.0
        %1522 = vmatmul.mubr.f32.gmra.mrb[0].mxu0 %v1033
        %v1523 = vpop.f32.mrb[0].mxu0
        %v1524 = vadd.f32 0.0, %v1523
        %v1525 = vpop.f32.mrb[0].mxu0
        %1526 = vmatprep.mubr.f32.mxu0 0.0
        %1527 = vmatmul.mubr.f32.gmra.mrb[0].mxu0 %v1034
        %v1528 = vpop.f32.mrb[0].mxu0
        %v1529 = vadd.f32 0.0, %v1528
        %v1530 = vpop.f32.mrb[0].mxu0
        %1531 = vmatprep.mubr.f32.mxu0 0.0
        %1532 = vmatmul.mubr.f32.gmra.mrb[0].mxu0 %v1035
        %v1533 = vpop.f32.mrb[0].mxu0
        %v1534 = vadd.f32 0.0, %v1533
        %v1535 = vpop.f32.mrb[0].mxu0
        %1536 = vmatprep.mubr.f32.mxu0 0.0
        %1537 = vmatmul.mubr.f32.gmra.mrb[0].mxu0 %v1036
        %v1538 = vpop.f32.mrb[0].mxu0
        %v1539 = vadd.f32 0.0, %v1538
        %v1540 = vpop.f32.mrb[0].mxu0
        %1541 = vmatprep.mubr.f32.mxu0 0.0
        %1542 = vmatmul.mubr.f32.gmra.mrb[0].mxu0 %v1037
        %v1543 = vpop.f32.mrb[0].mxu0
        %v1544 = vadd.f32 0.0, %v1543
        %v1545 = vpop.f32.mrb[0].mxu0
        %1546 = vmatprep.mubr.f32.mxu0 0.0
        %1547 = vmatmul.mubr.f32.gmra.mrb[0].mxu0 %v1038
        %v1548 = vpop.f32.mrb[0].mxu0
        %v1549 = vadd.f32 0.0, %v1548
        %v1550 = vpop.f32.mrb[0].mxu0
        %1551 = vmatprep.mubr.f32.mxu0 0.0
        %1552 = vmatmul.mubr.f32.gmra.mrb[0].mxu0 %v1039
        %v1553 = vpop.f32.mrb[0].mxu0
        %v1554 = vadd.f32 0.0, %v1553
        %v1555 = vpop.f32.mrb[0].mxu0
        %1556 = vmatprep.mubr.f32.mxu0 0.0
        %1557 = vmatmul.mubr.f32.gmra.mrb[0].mxu0 %v1040
        %v1558 = vpop.f32.mrb[0].mxu0
        %v1559 = vadd.f32 0.0, %v1558
        %v1560 = vpop.f32.mrb[0].mxu0
        %1561 = vmatprep.mubr.f32.mxu0 0.0
        %1562 = vmatmul.mubr.f32.gmra.mrb[0].mxu0 %v1041
        %v1563 = vpop.f32.mrb[0].mxu0
        %v1564 = vadd.f32 0.0, %v1563
        %v1565 = vpop.f32.mrb[0].mxu0
        %1566 = vmatprep.mubr.f32.mxu0 0.0
        %1567 = vmatmul.mubr.f32.gmra.mrb[0].mxu0 %v1042
        %v1568 = vpop.f32.mrb[0].mxu0
        %v1569 = vadd.f32 0.0, %v1568
        %v1570 = vpop.f32.mrb[0].mxu0
        %1571 = vmatprep.mubr.f32.mxu0 0.0
        %1572 = vmatmul.mubr.f32.gmra.mrb[0].mxu0 %v1043
        %v1573 = vpop.f32.mrb[0].mxu0
        %v1574 = vadd.f32 0.0, %v1573
        %v1575 = vpop.f32.mrb[0].mxu0
        %1576 = vmatprep.mubr.f32.mxu0 0.0
        %1577 = vmatmul.mubr.f32.gmra.mrb[0].mxu0 %v1044
        %v1578 = vpop.f32.mrb[0].mxu0
        %v1579 = vadd.f32 0.0, %v1578
        %v1580 = vpop.f32.mrb[0].mxu0
        %1581 = vmatprep.mubr.f32.mxu0 0.0
        %1582 = vmatmul.mubr.f32.gmra.mrb[0].mxu0 %v1045
        %v1583 = vpop.f32.mrb[0].mxu0
        %v1584 = vadd.f32 0.0, %v1583
        %v1585 = vpop.f32.mrb[0].mxu0
        %1586 = vmatprep.mubr.f32.mxu0 0.0
        %1587 = vmatmul.mubr.f32.gmra.mrb[0].mxu0 %v1046
        %v1588 = vpop.f32.mrb[0].mxu0
        %v1589 = vadd.f32 0.0, %v1588
        %v1590 = vpop.f32.mrb[0].mxu0
        %1591 = vmatprep.mubr.f32.mxu0 0.0
        %1592 = vmatmul.mubr.f32.gmra.mrb[0].mxu0 %v1047
        %v1593 = vpop.f32.mrb[0].mxu0
        %v1594 = vadd.f32 0.0, %v1593
        %v1595 = vpop.f32.mrb[0].mxu0
        %1596 = vmatprep.mubr.f32.mxu0 0.0
        %1597 = vmatmul.mubr.f32.gmra.mrb[0].mxu0 %v1048
        %v1598 = vpop.f32.mrb[0].mxu0
        %v1599 = vadd.f32 0.0, %v1598
        %v1600 = vpop.f32.mrb[0].mxu0
        %1601 = vmatprep.mubr.f32.mxu0 0.0
        %1602 = vmatmul.mubr.f32.gmra.mrb[0].mxu0 %v1049
        %v1603 = vpop.f32.mrb[0].mxu0
        %v1604 = vadd.f32 0.0, %v1603
        %v1605 = vpop.f32.mrb[0].mxu0
        %1606 = vmatprep.mubr.f32.mxu0 0.0
        %1607 = vmatmul.mubr.f32.gmra.mrb[0].mxu0 %v1050
        %v1608 = vpop.f32.mrb[0].mxu0
        %v1609 = vadd.f32 0.0, %v1608
        %v1610 = vpop.f32.mrb[0].mxu0
        %1611 = vmatprep.mubr.f32.mxu0 0.0
        %1612 = vmatmul.mubr.f32.gmra.mrb[0].mxu0 %v1051
        %v1613 = vpop.f32.mrb[0].mxu0
        %v1614 = vadd.f32 0.0, %v1613
        %v1615 = vpop.f32.mrb[0].mxu0
        %1616 = vmatprep.mubr.f32.mxu0 0.0
        %1617 = vmatmul.mubr.f32.gmra.mrb[0].mxu0 %v1052
        %v1618 = vpop.f32.mrb[0].mxu0
        %v1619 = vadd.f32 0.0, %v1618
        %v1620 = vpop.f32.mrb[0].mxu0
        %1621 = vmatprep.mubr.f32.mxu0 0.0
        %1622 = vmatmul.mubr.f32.gmra.mrb[0].mxu0 %v1053
        %v1623 = vpop.f32.mrb[0].mxu0
        %v1624 = vadd.f32 0.0, %v1623
        %v1625 = vpop.f32.mrb[0].mxu0
        %1626 = vmatprep.mubr.f32.mxu0 0.0
        %1627 = vmatmul.mubr.f32.gmra.mrb[0].mxu0 %v1054
        %v1628 = vpop.f32.mrb[0].mxu0
        %v1629 = vadd.f32 0.0, %v1628
        %v1630 = vpop.f32.mrb[0].mxu0
        %1631 = vmatprep.mubr.f32.mxu0 0.0
        %1632 = vmatmul.mubr.f32.gmra.mrb[0].mxu0 %v1055
        %v1633 = vpop.f32.mrb[0].mxu0
        %v1634 = vadd.f32 0.0, %v1633
        %v1635 = vpop.f32.mrb[0].mxu0
        %1636 = vmatprep.mubr.f32.mxu0 0.0
        %1637 = vmatmul.mubr.f32.gmra.mrb[0].mxu0 %v1060
        %v1638 = vpop.f32.mrb[0].mxu0
        %v1639 = vadd.f32 0.0, %v1638
        %v1640 = vpop.f32.mrb[0].mxu0
        %1641 = vmatprep.mubr.f32.mxu0 0.0
        %1642 = vmatmul.mubr.f32.gmra.mrb[0].mxu0 %v1061
        %v1643 = vpop.f32.mrb[0].mxu0
        %v1644 = vadd.f32 0.0, %v1643
        %v1645 = vpop.f32.mrb[0].mxu0
        %1646 = vmatprep.mubr.f32.mxu0 0.0
        %1647 = vmatmul.mubr.f32.gmra.mrb[0].mxu0 %v1062
        %v1648 = vpop.f32.mrb[0].mxu0
        %v1649 = vadd.f32 0.0, %v1648
        %v1650 = vpop.f32.mrb[0].mxu0
        %1651 = vmatprep.mubr.f32.mxu0 0.0
        %1652 = vmatmul.mubr.f32.gmra.mrb[0].mxu0 %v1063
        %v1653 = vpop.f32.mrb[0].mxu0
        %v1654 = vadd.f32 0.0, %v1653
        %v1655 = vpop.f32.mrb[0].mxu0
        %1656 = vmatprep.mubr.f32.mxu0 0.0
        %1657 = vmatmul.mubr.f32.gmra.mrb[0].mxu0 %v1064
        %v1658 = vpop.f32.mrb[0].mxu0
        %v1659 = vadd.f32 0.0, %v1658
        %v1660 = vpop.f32.mrb[0].mxu0
        %1661 = vmatprep.mubr.f32.mxu0 0.0
        %1662 = vmatmul.mubr.f32.gmra.mrb[0].mxu0 %v1065
        %v1663 = vpop.f32.mrb[0].mxu0
        %v1664 = vadd.f32 0.0, %v1663
        %v1665 = vpop.f32.mrb[0].mxu0
        %1666 = vmatprep.mubr.f32.mxu0 0.0
        %1667 = vmatmul.mubr.f32.gmra.mrb[0].mxu0 %v1066
        %v1668 = vpop.f32.mrb[0].mxu0
        %v1669 = vadd.f32 0.0, %v1668
        %v1670 = vpop.f32.mrb[0].mxu0
        %1671 = vmatprep.mubr.f32.mxu0 0.0
        %1672 = vmatmul.mubr.f32.gmra.mrb[0].mxu0 %v1067
        %v1673 = vpop.f32.mrb[0].mxu0
        %v1674 = vadd.f32 0.0, %v1673
        %v1675 = vpop.f32.mrb[0].mxu0
        %1676 = vmatprep.mubr.f32.mxu0 0.0
        %1677 = vmatmul.mubr.f32.gmra.mrb[0].mxu0 %v1068
        %v1678 = vpop.f32.mrb[0].mxu0
        %v1679 = vadd.f32 0.0, %v1678
        %v1680 = vpop.f32.mrb[0].mxu0
        %1681 = vmatprep.mubr.f32.mxu0 0.0
        %1682 = vmatmul.mubr.f32.gmra.mrb[0].mxu0 %v1069
        %v1683 = vpop.f32.mrb[0].mxu0
        %v1684 = vadd.f32 0.0, %v1683
        %v1685 = vpop.f32.mrb[0].mxu0
        %1686 = vmatprep.mubr.f32.mxu0 0.0
        %1687 = vmatmul.mubr.f32.gmra.mrb[0].mxu0 %v1070
        %v1688 = vpop.f32.mrb[0].mxu0
        %v1689 = vadd.f32 0.0, %v1688
        %v1690 = vpop.f32.mrb[0].mxu0
        %1691 = vmatprep.mubr.f32.mxu0 0.0
        %1692 = vmatmul.mubr.f32.gmra.mrb[0].mxu0 %v1071
        %v1693 = vpop.f32.mrb[0].mxu0
        %v1694 = vadd.f32 0.0, %v1693
        %v1695 = vpop.f32.mrb[0].mxu0
        %1696 = vmatprep.mubr.f32.mxu0 0.0
        %1697 = vmatmul.mubr.f32.gmra.mrb[0].mxu0 %v1072
        %v1698 = vpop.f32.mrb[0].mxu0
        %v1699 = vadd.f32 0.0, %v1698
        %v1700 = vpop.f32.mrb[0].mxu0
        %1701 = vmatprep.mubr.f32.mxu0 0.0
        %1702 = vmatmul.mubr.f32.gmra.mrb[0].mxu0 %v1073
        %v1703 = vpop.f32.mrb[0].mxu0
        %v1704 = vadd.f32 0.0, %v1703
        %v1705 = vpop.f32.mrb[0].mxu0
        %1706 = vmatprep.mubr.f32.mxu0 0.0
        %1707 = vmatmul.mubr.f32.gmra.mrb[0].mxu0 %v1074
        %v1708 = vpop.f32.mrb[0].mxu0
        %v1709 = vadd.f32 0.0, %v1708
        %v1710 = vpop.f32.mrb[0].mxu0
        %1711 = vmatprep.mubr.f32.mxu0 0.0
        %1712 = vmatmul.mubr.f32.gmra.mrb[0].mxu0 %v1075
        %v1713 = vpop.f32.mrb[0].mxu0
        %v1714 = vadd.f32 0.0, %v1713
        %v1715 = vpop.f32.mrb[0].mxu0
        %1716 = vmatprep.mubr.f32.mxu0 0.0
        %1717 = vmatmul.mubr.f32.gmra.mrb[0].mxu0 %v1076
        %v1718 = vpop.f32.mrb[0].mxu0
        %v1719 = vadd.f32 0.0, %v1718
        %v1720 = vpop.f32.mrb[0].mxu0
        %1721 = vmatprep.mubr.f32.mxu0 0.0
        %1722 = vmatmul.mubr.f32.gmra.mrb[0].mxu0 %v1077
        %v1723 = vpop.f32.mrb[0].mxu0
        %v1724 = vadd.f32 0.0, %v1723
        %v1725 = vpop.f32.mrb[0].mxu0
        %1726 = vmatprep.mubr.f32.mxu0 0.0
        %1727 = vmatmul.mubr.f32.gmra.mrb[0].mxu0 %v1078
        %v1728 = vpop.f32.mrb[0].mxu0
        %v1729 = vadd.f32 0.0, %v1728
        %v1730 = vpop.f32.mrb[0].mxu0
        %1731 = vmatprep.mubr.f32.mxu0 0.0
        %1732 = vmatmul.mubr.f32.gmra.mrb[0].mxu0 %v1079
        %v1733 = vpop.f32.mrb[0].mxu0
        %v1734 = vadd.f32 0.0, %v1733
        %v1735 = vpop.f32.mrb[0].mxu0
        %1736 = vmatprep.mubr.f32.mxu0 0.0
        %1737 = vmatmul.mubr.f32.gmra.mrb[0].mxu0 %v1080
        %v1738 = vpop.f32.mrb[0].mxu0
        %v1739 = vadd.f32 0.0, %v1738
        %v1740 = vpop.f32.mrb[0].mxu0
        %1741 = vmatprep.mubr.f32.mxu0 0.0
        %1742 = vmatmul.mubr.f32.gmra.mrb[0].mxu0 %v1081
        %v1743 = vpop.f32.mrb[0].mxu0
        %v1744 = vadd.f32 0.0, %v1743
        %v1745 = vpop.f32.mrb[0].mxu0
        %1746 = vmatprep.mubr.f32.mxu0 0.0
        %1747 = vmatmul.mubr.f32.gmra.mrb[0].mxu0 %v1082
        %v1748 = vpop.f32.mrb[0].mxu0
        %v1749 = vadd.f32 0.0, %v1748
        %v1750 = vpop.f32.mrb[0].mxu0
        %1751 = vmatprep.mubr.f32.mxu0 0.0
        %1752 = vmatmul.mubr.f32.gmra.mrb[0].mxu0 %v1083
        %v1753 = vpop.f32.mrb[0].mxu0
        %v1754 = vadd.f32 0.0, %v1753
        %v1755 = vpop.f32.mrb[0].mxu0
        %1756 = vmatprep.mubr.f32.mxu0 0.0
        %1757 = vmatmul.mubr.f32.gmra.mrb[0].mxu0 %v1084
        %v1758 = vpop.f32.mrb[0].mxu0
        %v1759 = vadd.f32 0.0, %v1758
        %v1760 = vpop.f32.mrb[0].mxu0
        %1761 = vmatprep.mubr.f32.mxu0 0.0
        %1762 = vmatmul.mubr.f32.gmra.mrb[0].mxu0 %v1085
        %v1763 = vpop.f32.mrb[0].mxu0
        %v1764 = vadd.f32 0.0, %v1763
        %v1765 = vpop.f32.mrb[0].mxu0
        %1766 = vmatprep.mubr.f32.mxu0 0.0
        %1767 = vmatmul.mubr.f32.gmra.mrb[0].mxu0 %v1086
        %v1768 = vpop.f32.mrb[0].mxu0
        %v1769 = vadd.f32 0.0, %v1768
        %v1770 = vpop.f32.mrb[0].mxu0
        %1771 = vmatprep.mubr.f32.mxu0 0.0
        %1772 = vmatmul.mubr.f32.gmra.mrb[0].mxu0 %v1087
        %v1773 = vpop.f32.mrb[0].mxu0
        %v1774 = vadd.f32 0.0, %v1773
        %v1775 = vpop.f32.mrb[0].mxu0
        %1776 = vmatprep.mubr.f32.mxu0 0.0
        %1777 = vmatmul.mubr.f32.gmra.mrb[0].mxu0 %v1088
        %v1778 = vpop.f32.mrb[0].mxu0
        %v1779 = vadd.f32 0.0, %v1778
        %v1780 = vpop.f32.mrb[0].mxu0
        %1781 = vmatprep.mubr.f32.mxu0 0.0
        %1782 = vmatmul.mubr.f32.gmra.mrb[0].mxu0 %v1089
        %v1783 = vpop.f32.mrb[0].mxu0
        %v1784 = vadd.f32 0.0, %v1783
        %v1785 = vpop.f32.mrb[0].mxu0
        %1786 = vmatprep.mubr.f32.mxu0 0.0
        %1787 = vmatmul.mubr.f32.gmra.mrb[0].mxu0 %v1090
        %v1788 = vpop.f32.mrb[0].mxu0
        %v1789 = vadd.f32 0.0, %v1788
        %v1790 = vpop.f32.mrb[0].mxu0
        %1791 = vmatprep.mubr.f32.mxu0 0.0
        %1792 = vmatmul.mubr.f32.gmra.mrb[0].mxu0 %v1091
        %v1793 = vpop.f32.mrb[0].mxu0
        %v1794 = vadd.f32 0.0, %v1793
        %v1795 = vpop.f32.mrb[0].mxu0
        %1796 = vdwg.mxu0
        %1797 = vmax.xlane.f32.xlu0 %v952
        %v1798 = vpop.xlane.xlu0 %1797
        %1799 = vmax.xlane.f32.xlu0 %v953
        %v1800 = vpop.xlane.xlu0 %1799
        %1801 = vmax.xlane.f32.xlu0 %v954
        %v1802 = vpop.xlane.xlu0 %1801
        %1803 = vmax.xlane.f32.xlu0 %v955
        %v1804 = vpop.xlane.xlu0 %1803
        %1805 = vmax.xlane.f32.xlu0 %v956
        %v1806 = vpop.xlane.xlu0 %1805
        %1807 = vmax.xlane.f32.xlu0 %v957
        %v1808 = vpop.xlane.xlu0 %1807
        %1809 = vmax.xlane.f32.xlu0 %v958
        %v1810 = vpop.xlane.xlu0 %1809
        %1811 = vmax.xlane.f32.xlu0 %v959
        %v1812 = vpop.xlane.xlu0 %1811
        %1813 = vmax.xlane.f32.xlu0 %v960
        %v1814 = vpop.xlane.xlu0 %1813
        %1815 = vmax.xlane.f32.xlu0 %v961
        %v1816 = vpop.xlane.xlu0 %1815
        %1817 = vmax.xlane.f32.xlu0 %v962
        %v1818 = vpop.xlane.xlu0 %1817
        %1819 = vmax.xlane.f32.xlu0 %v963
        %v1820 = vpop.xlane.xlu0 %1819
        %1821 = vmax.xlane.f32.xlu0 %v964
        %v1822 = vpop.xlane.xlu0 %1821
        %1823 = vmax.xlane.f32.xlu0 %v965
        %v1824 = vpop.xlane.xlu0 %1823
        %1825 = vmax.xlane.f32.xlu0 %v966
        %v1826 = vpop.xlane.xlu0 %1825
        %1827 = vmax.xlane.f32.xlu0 %v967
        %v1828 = vpop.xlane.xlu0 %1827
        %1829 = vmax.xlane.f32.xlu0 %v968
        %v1830 = vpop.xlane.xlu0 %1829
        %1831 = vmax.xlane.f32.xlu0 %v969
        %v1832 = vpop.xlane.xlu0 %1831
        %1833 = vmax.xlane.f32.xlu0 %v970
        %v1834 = vpop.xlane.xlu0 %1833
        %1835 = vmax.xlane.f32.xlu0 %v971
        %v1836 = vpop.xlane.xlu0 %1835
        %1837 = vmax.xlane.f32.xlu0 %v972
        %v1838 = vpop.xlane.xlu0 %1837
        %1839 = vmax.xlane.f32.xlu0 %v973
        %v1840 = vpop.xlane.xlu0 %1839
        %1841 = vmax.xlane.f32.xlu0 %v974
        %v1842 = vpop.xlane.xlu0 %1841
        %1843 = vmax.xlane.f32.xlu0 %v975
        %v1844 = vpop.xlane.xlu0 %1843
        %1845 = vmax.xlane.f32.xlu0 %v976
        %v1846 = vpop.xlane.xlu0 %1845
        %1847 = vmax.xlane.f32.xlu0 %v977
        %v1848 = vpop.xlane.xlu0 %1847
        %1849 = vmax.xlane.f32.xlu0 %v978
        %v1850 = vpop.xlane.xlu0 %1849
        %1851 = vmax.xlane.f32.xlu0 %v979
        %v1852 = vpop.xlane.xlu0 %1851
        %1853 = vmax.xlane.f32.xlu0 %v980
        %v1854 = vpop.xlane.xlu0 %1853
        %1855 = vmax.xlane.f32.xlu0 %v981
        %v1856 = vpop.xlane.xlu0 %1855
        %1857 = vmax.xlane.f32.xlu0 %v982
        %v1858 = vpop.xlane.xlu0 %1857
        %1859 = vmax.xlane.f32.xlu0 %v983
        %v1860 = vpop.xlane.xlu0 %1859
        %1861 = vmax.xlane.f32.xlu0 %v988
        %v1862 = vpop.xlane.xlu0 %1861
        %1863 = vmax.xlane.f32.xlu0 %v989
        %v1864 = vpop.xlane.xlu0 %1863
        %1865 = vmax.xlane.f32.xlu0 %v990
        %v1866 = vpop.xlane.xlu0 %1865
        %1867 = vmax.xlane.f32.xlu0 %v991
        %v1868 = vpop.xlane.xlu0 %1867
        %1869 = vmax.xlane.f32.xlu0 %v992
        %v1870 = vpop.xlane.xlu0 %1869
        %1871 = vmax.xlane.f32.xlu0 %v993
        %v1872 = vpop.xlane.xlu0 %1871
        %1873 = vmax.xlane.f32.xlu0 %v994
        %v1874 = vpop.xlane.xlu0 %1873
        %1875 = vmax.xlane.f32.xlu0 %v995
        %v1876 = vpop.xlane.xlu0 %1875
        %1877 = vmax.xlane.f32.xlu0 %v996
        %v1878 = vpop.xlane.xlu0 %1877
        %1879 = vmax.xlane.f32.xlu0 %v997
        %v1880 = vpop.xlane.xlu0 %1879
        %1881 = vmax.xlane.f32.xlu0 %v998
        %v1882 = vpop.xlane.xlu0 %1881
        %1883 = vmax.xlane.f32.xlu0 %v999
        %v1884 = vpop.xlane.xlu0 %1883
        %1885 = vmax.xlane.f32.xlu0 %v1000
        %v1886 = vpop.xlane.xlu0 %1885
        %1887 = vmax.xlane.f32.xlu0 %v1001
        %v1888 = vpop.xlane.xlu0 %1887
        %1889 = vmax.xlane.f32.xlu0 %v1002
        %v1890 = vpop.xlane.xlu0 %1889
        %1891 = vmax.xlane.f32.xlu0 %v1003
        %v1892 = vpop.xlane.xlu0 %1891
        %1893 = vmax.xlane.f32.xlu0 %v1004
        %v1894 = vpop.xlane.xlu0 %1893
        %1895 = vmax.xlane.f32.xlu0 %v1005
        %v1896 = vpop.xlane.xlu0 %1895
        %1897 = vmax.xlane.f32.xlu0 %v1006
        %v1898 = vpop.xlane.xlu0 %1897
        %1899 = vmax.xlane.f32.xlu0 %v1007
        %v1900 = vpop.xlane.xlu0 %1899
        %1901 = vmax.xlane.f32.xlu0 %v1008
        %v1902 = vpop.xlane.xlu0 %1901
        %1903 = vmax.xlane.f32.xlu0 %v1009
        %v1904 = vpop.xlane.xlu0 %1903
        %1905 = vmax.xlane.f32.xlu0 %v1010
        %v1906 = vpop.xlane.xlu0 %1905
        %1907 = vmax.xlane.f32.xlu0 %v1011
        %v1908 = vpop.xlane.xlu0 %1907
        %1909 = vmax.xlane.f32.xlu0 %v1012
        %v1910 = vpop.xlane.xlu0 %1909
        %1911 = vmax.xlane.f32.xlu0 %v1013
        %v1912 = vpop.xlane.xlu0 %1911
        %1913 = vmax.xlane.f32.xlu0 %v1014
        %v1914 = vpop.xlane.xlu0 %1913
        %1915 = vmax.xlane.f32.xlu0 %v1015
        %v1916 = vpop.xlane.xlu0 %1915
        %1917 = vmax.xlane.f32.xlu0 %v1016
        %v1918 = vpop.xlane.xlu0 %1917
        %1919 = vmax.xlane.f32.xlu0 %v1017
        %v1920 = vpop.xlane.xlu0 %1919
        %1921 = vmax.xlane.f32.xlu0 %v1018
        %v1922 = vpop.xlane.xlu0 %1921
        %1923 = vmax.xlane.f32.xlu0 %v1019
        %v1924 = vpop.xlane.xlu0 %1923
        %1925 = vmax.xlane.f32.xlu0 %v1024
        %v1926 = vpop.xlane.xlu0 %1925
        %1927 = vmax.xlane.f32.xlu0 %v1025
        %v1928 = vpop.xlane.xlu0 %1927
        %1929 = vmax.xlane.f32.xlu0 %v1026
        %v1930 = vpop.xlane.xlu0 %1929
        %1931 = vmax.xlane.f32.xlu0 %v1027
        %v1932 = vpop.xlane.xlu0 %1931
        %1933 = vmax.xlane.f32.xlu0 %v1028
        %v1934 = vpop.xlane.xlu0 %1933
        %1935 = vmax.xlane.f32.xlu0 %v1029
        %v1936 = vpop.xlane.xlu0 %1935
        %1937 = vmax.xlane.f32.xlu0 %v1030
        %v1938 = vpop.xlane.xlu0 %1937
        %1939 = vmax.xlane.f32.xlu0 %v1031
        %v1940 = vpop.xlane.xlu0 %1939
        %1941 = vmax.xlane.f32.xlu0 %v1032
        %v1942 = vpop.xlane.xlu0 %1941
        %1943 = vmax.xlane.f32.xlu0 %v1033
        %v1944 = vpop.xlane.xlu0 %1943
        %1945 = vmax.xlane.f32.xlu0 %v1034
        %v1946 = vpop.xlane.xlu0 %1945
        %1947 = vmax.xlane.f32.xlu0 %v1035
        %v1948 = vpop.xlane.xlu0 %1947
        %1949 = vmax.xlane.f32.xlu0 %v1036
        %v1950 = vpop.xlane.xlu0 %1949
        %1951 = vmax.xlane.f32.xlu0 %v1037
        %v1952 = vpop.xlane.xlu0 %1951
        %1953 = vmax.xlane.f32.xlu0 %v1038
        %v1954 = vpop.xlane.xlu0 %1953
        %1955 = vmax.xlane.f32.xlu0 %v1039
        %v1956 = vpop.xlane.xlu0 %1955
        %1957 = vmax.xlane.f32.xlu0 %v1040
        %v1958 = vpop.xlane.xlu0 %1957
        %1959 = vmax.xlane.f32.xlu0 %v1041
        %v1960 = vpop.xlane.xlu0 %1959
        %1961 = vmax.xlane.f32.xlu0 %v1042
        %v1962 = vpop.xlane.xlu0 %1961
        %1963 = vmax.xlane.f32.xlu0 %v1043
        %v1964 = vpop.xlane.xlu0 %1963
        %1965 = vmax.xlane.f32.xlu0 %v1044
        %v1966 = vpop.xlane.xlu0 %1965
        %1967 = vmax.xlane.f32.xlu0 %v1045
        %v1968 = vpop.xlane.xlu0 %1967
        %1969 = vmax.xlane.f32.xlu0 %v1046
        %v1970 = vpop.xlane.xlu0 %1969
        %1971 = vmax.xlane.f32.xlu0 %v1047
        %v1972 = vpop.xlane.xlu0 %1971
        %1973 = vmax.xlane.f32.xlu0 %v1048
        %v1974 = vpop.xlane.xlu0 %1973
        %1975 = vmax.xlane.f32.xlu0 %v1049
        %v1976 = vpop.xlane.xlu0 %1975
        %1977 = vmax.xlane.f32.xlu0 %v1050
        %v1978 = vpop.xlane.xlu0 %1977
        %1979 = vmax.xlane.f32.xlu0 %v1051
        %v1980 = vpop.xlane.xlu0 %1979
        %1981 = vmax.xlane.f32.xlu0 %v1052
        %v1982 = vpop.xlane.xlu0 %1981
        %1983 = vmax.xlane.f32.xlu0 %v1053
        %v1984 = vpop.xlane.xlu0 %1983
        %1985 = vmax.xlane.f32.xlu0 %v1054
        %v1986 = vpop.xlane.xlu0 %1985
        %1987 = vmax.xlane.f32.xlu0 %v1055
        %v1988 = vpop.xlane.xlu0 %1987
        %1989 = vmax.xlane.f32.xlu0 %v1060
        %v1990 = vpop.xlane.xlu0 %1989
        %1991 = vmax.xlane.f32.xlu0 %v1061
        %v1992 = vpop.xlane.xlu0 %1991
        %1993 = vmax.xlane.f32.xlu0 %v1062
        %v1994 = vpop.xlane.xlu0 %1993
        %1995 = vmax.xlane.f32.xlu0 %v1063
        %v1996 = vpop.xlane.xlu0 %1995
        %1997 = vmax.xlane.f32.xlu0 %v1064
        %v1998 = vpop.xlane.xlu0 %1997
        %1999 = vmax.xlane.f32.xlu0 %v1065
        %v2000 = vpop.xlane.xlu0 %1999
        %2001 = vmax.xlane.f32.xlu0 %v1066
        %v2002 = vpop.xlane.xlu0 %2001
        %2003 = vmax.xlane.f32.xlu0 %v1067
        %v2004 = vpop.xlane.xlu0 %2003
        %2005 = vmax.xlane.f32.xlu0 %v1068
        %v2006 = vpop.xlane.xlu0 %2005
        %2007 = vmax.xlane.f32.xlu0 %v1069
        %v2008 = vpop.xlane.xlu0 %2007
        %2009 = vmax.xlane.f32.xlu0 %v1070
        %v2010 = vpop.xlane.xlu0 %2009
        %2011 = vmax.xlane.f32.xlu0 %v1071
        %v2012 = vpop.xlane.xlu0 %2011
        %2013 = vmax.xlane.f32.xlu0 %v1072
        %v2014 = vpop.xlane.xlu0 %2013
        %2015 = vmax.xlane.f32.xlu0 %v1073
        %v2016 = vpop.xlane.xlu0 %2015
        %2017 = vmax.xlane.f32.xlu0 %v1074
        %v2018 = vpop.xlane.xlu0 %2017
        %2019 = vmax.xlane.f32.xlu0 %v1075
        %v2020 = vpop.xlane.xlu0 %2019
        %2021 = vmax.xlane.f32.xlu0 %v1076
        %v2022 = vpop.xlane.xlu0 %2021
        %2023 = vmax.xlane.f32.xlu0 %v1077
        %v2024 = vpop.xlane.xlu0 %2023
        %2025 = vmax.xlane.f32.xlu0 %v1078
        %v2026 = vpop.xlane.xlu0 %2025
        %2027 = vmax.xlane.f32.xlu0 %v1079
        %v2028 = vpop.xlane.xlu0 %2027
        %2029 = vmax.xlane.f32.xlu0 %v1080
        %v2030 = vpop.xlane.xlu0 %2029
        %2031 = vmax.xlane.f32.xlu0 %v1081
        %v2032 = vpop.xlane.xlu0 %2031
        %2033 = vmax.xlane.f32.xlu0 %v1082
        %v2034 = vpop.xlane.xlu0 %2033
        %2035 = vmax.xlane.f32.xlu0 %v1083
        %v2036 = vpop.xlane.xlu0 %2035
        %2037 = vmax.xlane.f32.xlu0 %v1084
        %v2038 = vpop.xlane.xlu0 %2037
        %2039 = vmax.xlane.f32.xlu0 %v1085
        %v2040 = vpop.xlane.xlu0 %2039
        %2041 = vmax.xlane.f32.xlu0 %v1086
        %v2042 = vpop.xlane.xlu0 %2041
        %2043 = vmax.xlane.f32.xlu0 %v1087
        %v2044 = vpop.xlane.xlu0 %2043
        %2045 = vmax.xlane.f32.xlu0 %v1088
        %v2046 = vpop.xlane.xlu0 %2045
        %2047 = vmax.xlane.f32.xlu0 %v1089
        %v2048 = vpop.xlane.xlu0 %2047
        %2049 = vmax.xlane.f32.xlu0 %v1090
        %v2050 = vpop.xlane.xlu0 %2049
        %2051 = vmax.xlane.f32.xlu0 %v1091
        %v2052 = vpop.xlane.xlu0 %2051
        %2117 = vrot.lane.b32.xlu0 %v1319, 1
        %v2118 = vpop.permute.xlu0 %2117
        %2119 = vrot.lane.b32.xlu0 %v1324, 1
        %v2120 = vpop.permute.xlu0 %2119
        %2121 = vrot.lane.b32.xlu0 %v1329, 1
        %v2122 = vpop.permute.xlu0 %2121
        %2123 = vrot.lane.b32.xlu0 %v1334, 1
        %v2124 = vpop.permute.xlu0 %2123
        %2125 = vrot.lane.b32.xlu0 %v1339, 1
        %v2126 = vpop.permute.xlu0 %2125
        %2127 = vrot.lane.b32.xlu0 %v1344, 1
        %v2128 = vpop.permute.xlu0 %2127
        %2129 = vrot.lane.b32.xlu0 %v1349, 1
        %v2130 = vpop.permute.xlu0 %2129
        %2131 = vrot.lane.b32.xlu0 %v1354, 1
        %v2132 = vpop.permute.xlu0 %2131
        %2133 = vrot.lane.b32.xlu0 %v1359, 1
        %v2134 = vpop.permute.xlu0 %2133
        %2135 = vrot.lane.b32.xlu0 %v1364, 1
        %v2136 = vpop.permute.xlu0 %2135
        %2137 = vrot.lane.b32.xlu0 %v1369, 1
        %v2138 = vpop.permute.xlu0 %2137
        %2139 = vrot.lane.b32.xlu0 %v1374, 1
        %v2140 = vpop.permute.xlu0 %2139
        %2141 = vrot.lane.b32.xlu0 %v1379, 1
        %v2142 = vpop.permute.xlu0 %2141
        %2143 = vrot.lane.b32.xlu0 %v1384, 1
        %v2144 = vpop.permute.xlu0 %2143
        %2145 = vrot.lane.b32.xlu0 %v1389, 1
        %v2146 = vpop.permute.xlu0 %2145
        %2147 = vrot.lane.b32.xlu0 %v1394, 1
        %v2148 = vpop.permute.xlu0 %2147
        %2149 = vrot.lane.b32.xlu0 %v1399, 1
        %v2150 = vpop.permute.xlu0 %2149
        %2151 = vrot.lane.b32.xlu0 %v1404, 1
        %v2152 = vpop.permute.xlu0 %2151
        %2153 = vrot.lane.b32.xlu0 %v1409, 1
        %v2154 = vpop.permute.xlu0 %2153
        %2155 = vrot.lane.b32.xlu0 %v1414, 1
        %v2156 = vpop.permute.xlu0 %2155
        %2157 = vrot.lane.b32.xlu0 %v1419, 1
        %v2158 = vpop.permute.xlu0 %2157
        %2159 = vrot.lane.b32.xlu0 %v1424, 1
        %v2160 = vpop.permute.xlu0 %2159
        %2161 = vrot.lane.b32.xlu0 %v1429, 1
        %v2162 = vpop.permute.xlu0 %2161
        %2163 = vrot.lane.b32.xlu0 %v1434, 1
        %v2164 = vpop.permute.xlu0 %2163
        %2165 = vrot.lane.b32.xlu0 %v1439, 1
        %v2166 = vpop.permute.xlu0 %2165
        %2167 = vrot.lane.b32.xlu0 %v1444, 1
        %v2168 = vpop.permute.xlu0 %2167
        %2169 = vrot.lane.b32.xlu0 %v1449, 1
        %v2170 = vpop.permute.xlu0 %2169
        %2171 = vrot.lane.b32.xlu0 %v1454, 1
        %v2172 = vpop.permute.xlu0 %2171
        %2173 = vrot.lane.b32.xlu0 %v1459, 1
        %v2174 = vpop.permute.xlu0 %2173
        %2175 = vrot.lane.b32.xlu0 %v1464, 1
        %v2176 = vpop.permute.xlu0 %2175
        %2177 = vrot.lane.b32.xlu0 %v1469, 1
        %v2178 = vpop.permute.xlu0 %2177
        %2179 = vrot.lane.b32.xlu0 %v1474, 1
        %v2180 = vpop.permute.xlu0 %2179
        %2181 = vrot.lane.b32.xlu0 %v1862, 1
        %v2182 = vpop.permute.xlu0 %2181
        %2183 = vrot.lane.b32.xlu0 %v1864, 1
        %v2184 = vpop.permute.xlu0 %2183
        %2185 = vrot.lane.b32.xlu0 %v1866, 1
        %v2186 = vpop.permute.xlu0 %2185
        %2187 = vrot.lane.b32.xlu0 %v1868, 1
        %v2188 = vpop.permute.xlu0 %2187
        %2189 = vrot.lane.b32.xlu0 %v1870, 1
        %v2190 = vpop.permute.xlu0 %2189
        %2191 = vrot.lane.b32.xlu0 %v1872, 1
        %v2192 = vpop.permute.xlu0 %2191
        %2193 = vrot.lane.b32.xlu0 %v1874, 1
        %v2194 = vpop.permute.xlu0 %2193
        %2195 = vrot.lane.b32.xlu0 %v1876, 1
        %v2196 = vpop.permute.xlu0 %2195
        %2197 = vrot.lane.b32.xlu0 %v1878, 1
        %v2198 = vpop.permute.xlu0 %2197
        %2199 = vrot.lane.b32.xlu0 %v1880, 1
        %v2200 = vpop.permute.xlu0 %2199
        %2201 = vrot.lane.b32.xlu0 %v1882, 1
        %v2202 = vpop.permute.xlu0 %2201
        %2203 = vrot.lane.b32.xlu0 %v1884, 1
        %v2204 = vpop.permute.xlu0 %2203
        %2205 = vrot.lane.b32.xlu0 %v1886, 1
        %v2206 = vpop.permute.xlu0 %2205
        %2207 = vrot.lane.b32.xlu0 %v1888, 1
        %v2208 = vpop.permute.xlu0 %2207
        %2209 = vrot.lane.b32.xlu0 %v1890, 1
        %v2210 = vpop.permute.xlu0 %2209
        %2211 = vrot.lane.b32.xlu0 %v1892, 1
        %v2212 = vpop.permute.xlu0 %2211
        %2213 = vrot.lane.b32.xlu0 %v1894, 1
        %v2214 = vpop.permute.xlu0 %2213
        %2215 = vrot.lane.b32.xlu0 %v1896, 1
        %v2216 = vpop.permute.xlu0 %2215
        %2217 = vrot.lane.b32.xlu0 %v1898, 1
        %v2218 = vpop.permute.xlu0 %2217
        %2219 = vrot.lane.b32.xlu0 %v1900, 1
        %v2220 = vpop.permute.xlu0 %2219
        %2221 = vrot.lane.b32.xlu0 %v1902, 1
        %v2222 = vpop.permute.xlu0 %2221
        %2223 = vrot.lane.b32.xlu0 %v1904, 1
        %v2224 = vpop.permute.xlu0 %2223
        %2225 = vrot.lane.b32.xlu0 %v1906, 1
        %v2226 = vpop.permute.xlu0 %2225
        %2227 = vrot.lane.b32.xlu0 %v1908, 1
        %v2228 = vpop.permute.xlu0 %2227
        %2229 = vrot.lane.b32.xlu0 %v1910, 1
        %v2230 = vpop.permute.xlu0 %2229
        %2231 = vrot.lane.b32.xlu0 %v1912, 1
        %v2232 = vpop.permute.xlu0 %2231
        %2233 = vrot.lane.b32.xlu0 %v1914, 1
        %v2234 = vpop.permute.xlu0 %2233
        %2235 = vrot.lane.b32.xlu0 %v1916, 1
        %v2236 = vpop.permute.xlu0 %2235
        %2237 = vrot.lane.b32.xlu0 %v1918, 1
        %v2238 = vpop.permute.xlu0 %2237
        %2239 = vrot.lane.b32.xlu0 %v1920, 1
        %v2240 = vpop.permute.xlu0 %2239
        %2241 = vrot.lane.b32.xlu0 %v1922, 1
        %v2242 = vpop.permute.xlu0 %2241
        %2243 = vrot.lane.b32.xlu0 %v1924, 1
        %v2244 = vpop.permute.xlu0 %2243
        %2373 = vrot.lane.b32.xlu0 %v1479, 2
        %v2374 = vpop.permute.xlu0 %2373
        %2375 = vrot.lane.b32.xlu0 %v1484, 2
        %v2376 = vpop.permute.xlu0 %2375
        %2377 = vrot.lane.b32.xlu0 %v1489, 2
        %v2378 = vpop.permute.xlu0 %2377
        %2379 = vrot.lane.b32.xlu0 %v1494, 2
        %v2380 = vpop.permute.xlu0 %2379
        %2381 = vrot.lane.b32.xlu0 %v1499, 2
        %v2382 = vpop.permute.xlu0 %2381
        %2383 = vrot.lane.b32.xlu0 %v1504, 2
        %v2384 = vpop.permute.xlu0 %2383
        %2385 = vrot.lane.b32.xlu0 %v1509, 2
        %v2386 = vpop.permute.xlu0 %2385
        %2387 = vrot.lane.b32.xlu0 %v1514, 2
        %v2388 = vpop.permute.xlu0 %2387
        %2389 = vrot.lane.b32.xlu0 %v1519, 2
        %v2390 = vpop.permute.xlu0 %2389
        %2391 = vrot.lane.b32.xlu0 %v1524, 2
        %v2392 = vpop.permute.xlu0 %2391
        %2393 = vrot.lane.b32.xlu0 %v1529, 2
        %v2394 = vpop.permute.xlu0 %2393
        %2395 = vrot.lane.b32.xlu0 %v1534, 2
        %v2396 = vpop.permute.xlu0 %2395
        %2397 = vrot.lane.b32.xlu0 %v1539, 2
        %v2398 = vpop.permute.xlu0 %2397
        %2399 = vrot.lane.b32.xlu0 %v1544, 2
        %v2400 = vpop.permute.xlu0 %2399
        %2401 = vrot.lane.b32.xlu0 %v1549, 2
        %v2402 = vpop.permute.xlu0 %2401
        %2403 = vrot.lane.b32.xlu0 %v1554, 2
        %v2404 = vpop.permute.xlu0 %2403
        %2405 = vrot.lane.b32.xlu0 %v1559, 2
        %v2406 = vpop.permute.xlu0 %2405
        %2407 = vrot.lane.b32.xlu0 %v1564, 2
        %v2408 = vpop.permute.xlu0 %2407
        %2409 = vrot.lane.b32.xlu0 %v1569, 2
        %v2410 = vpop.permute.xlu0 %2409
        %2411 = vrot.lane.b32.xlu0 %v1574, 2
        %v2412 = vpop.permute.xlu0 %2411
        %2413 = vrot.lane.b32.xlu0 %v1579, 2
        %v2414 = vpop.permute.xlu0 %2413
        %2415 = vrot.lane.b32.xlu0 %v1584, 2
        %v2416 = vpop.permute.xlu0 %2415
        %2417 = vrot.lane.b32.xlu0 %v1589, 2
        %v2418 = vpop.permute.xlu0 %2417
        %2419 = vrot.lane.b32.xlu0 %v1594, 2
        %v2420 = vpop.permute.xlu0 %2419
        %2421 = vrot.lane.b32.xlu0 %v1599, 2
        %v2422 = vpop.permute.xlu0 %2421
        %2423 = vrot.lane.b32.xlu0 %v1604, 2
        %v2424 = vpop.permute.xlu0 %2423
        %2425 = vrot.lane.b32.xlu0 %v1609, 2
        %v2426 = vpop.permute.xlu0 %2425
        %2427 = vrot.lane.b32.xlu0 %v1614, 2
        %v2428 = vpop.permute.xlu0 %2427
        %2429 = vrot.lane.b32.xlu0 %v1619, 2
        %v2430 = vpop.permute.xlu0 %2429
        %2431 = vrot.lane.b32.xlu0 %v1624, 2
        %v2432 = vpop.permute.xlu0 %2431
        %2433 = vrot.lane.b32.xlu0 %v1629, 2
        %v2434 = vpop.permute.xlu0 %2433
        %2435 = vrot.lane.b32.xlu0 %v1634, 2
        %v2436 = vpop.permute.xlu0 %2435
        %2437 = vrot.lane.b32.xlu0 %v1926, 2
        %v2438 = vpop.permute.xlu0 %2437
        %2439 = vrot.lane.b32.xlu0 %v1928, 2
        %v2440 = vpop.permute.xlu0 %2439
        %2441 = vrot.lane.b32.xlu0 %v1930, 2
        %v2442 = vpop.permute.xlu0 %2441
        %2443 = vrot.lane.b32.xlu0 %v1932, 2
        %v2444 = vpop.permute.xlu0 %2443
        %2445 = vrot.lane.b32.xlu0 %v1934, 2
        %v2446 = vpop.permute.xlu0 %2445
        %2447 = vrot.lane.b32.xlu0 %v1936, 2
        %v2448 = vpop.permute.xlu0 %2447
        %2449 = vrot.lane.b32.xlu0 %v1938, 2
        %v2450 = vpop.permute.xlu0 %2449
        %2451 = vrot.lane.b32.xlu0 %v1940, 2
        %v2452 = vpop.permute.xlu0 %2451
        %2453 = vrot.lane.b32.xlu0 %v1942, 2
        %v2454 = vpop.permute.xlu0 %2453
        %2455 = vrot.lane.b32.xlu0 %v1944, 2
        %v2456 = vpop.permute.xlu0 %2455
        %2457 = vrot.lane.b32.xlu0 %v1946, 2
        %v2458 = vpop.permute.xlu0 %2457
        %2459 = vrot.lane.b32.xlu0 %v1948, 2
        %v2460 = vpop.permute.xlu0 %2459
        %2461 = vrot.lane.b32.xlu0 %v1950, 2
        %v2462 = vpop.permute.xlu0 %2461
        %2463 = vrot.lane.b32.xlu0 %v1952, 2
        %v2464 = vpop.permute.xlu0 %2463
        %2465 = vrot.lane.b32.xlu0 %v1954, 2
        %v2466 = vpop.permute.xlu0 %2465
        %2467 = vrot.lane.b32.xlu0 %v1956, 2
        %v2468 = vpop.permute.xlu0 %2467
        %2469 = vrot.lane.b32.xlu0 %v1958, 2
        %v2470 = vpop.permute.xlu0 %2469
        %2471 = vrot.lane.b32.xlu0 %v1960, 2
        %v2472 = vpop.permute.xlu0 %2471
        %2473 = vrot.lane.b32.xlu0 %v1962, 2
        %v2474 = vpop.permute.xlu0 %2473
        %2475 = vrot.lane.b32.xlu0 %v1964, 2
        %v2476 = vpop.permute.xlu0 %2475
        %2477 = vrot.lane.b32.xlu0 %v1966, 2
        %v2478 = vpop.permute.xlu0 %2477
        %2479 = vrot.lane.b32.xlu0 %v1968, 2
        %v2480 = vpop.permute.xlu0 %2479
        %2481 = vrot.lane.b32.xlu0 %v1970, 2
        %v2482 = vpop.permute.xlu0 %2481
        %2483 = vrot.lane.b32.xlu0 %v1972, 2
        %v2484 = vpop.permute.xlu0 %2483
        %2485 = vrot.lane.b32.xlu0 %v1974, 2
        %v2486 = vpop.permute.xlu0 %2485
        %2487 = vrot.lane.b32.xlu0 %v1976, 2
        %v2488 = vpop.permute.xlu0 %2487
        %2489 = vrot.lane.b32.xlu0 %v1978, 2
        %v2490 = vpop.permute.xlu0 %2489
        %2491 = vrot.lane.b32.xlu0 %v1980, 2
        %v2492 = vpop.permute.xlu0 %2491
        %2493 = vrot.lane.b32.xlu0 %v1982, 2
        %v2494 = vpop.permute.xlu0 %2493
        %2495 = vrot.lane.b32.xlu0 %v1984, 2
        %v2496 = vpop.permute.xlu0 %2495
        %2497 = vrot.lane.b32.xlu0 %v1986, 2
        %v2498 = vpop.permute.xlu0 %2497
        %2499 = vrot.lane.b32.xlu0 %v1988, 2
        %v2500 = vpop.permute.xlu0 %2499
        %2629 = vrot.lane.b32.xlu0 %v1639, 3
        %v2630 = vpop.permute.xlu0 %2629
        %2631 = vrot.lane.b32.xlu0 %v1644, 3
        %v2632 = vpop.permute.xlu0 %2631
        %2633 = vrot.lane.b32.xlu0 %v1649, 3
        %v2634 = vpop.permute.xlu0 %2633
        %2635 = vrot.lane.b32.xlu0 %v1654, 3
        %v2636 = vpop.permute.xlu0 %2635
        %2637 = vrot.lane.b32.xlu0 %v1659, 3
        %v2638 = vpop.permute.xlu0 %2637
        %2639 = vrot.lane.b32.xlu0 %v1664, 3
        %v2640 = vpop.permute.xlu0 %2639
        %2641 = vrot.lane.b32.xlu0 %v1669, 3
        %v2642 = vpop.permute.xlu0 %2641
        %2643 = vrot.lane.b32.xlu0 %v1674, 3
        %v2644 = vpop.permute.xlu0 %2643
        %2645 = vrot.lane.b32.xlu0 %v1679, 3
        %v2646 = vpop.permute.xlu0 %2645
        %2647 = vrot.lane.b32.xlu0 %v1684, 3
        %v2648 = vpop.permute.xlu0 %2647
        %2649 = vrot.lane.b32.xlu0 %v1689, 3
        %v2650 = vpop.permute.xlu0 %2649
        %2651 = vrot.lane.b32.xlu0 %v1694, 3
        %v2652 = vpop.permute.xlu0 %2651
        %2653 = vrot.lane.b32.xlu0 %v1699, 3
        %v2654 = vpop.permute.xlu0 %2653
        %2655 = vrot.lane.b32.xlu0 %v1704, 3
        %v2656 = vpop.permute.xlu0 %2655
        %2657 = vrot.lane.b32.xlu0 %v1709, 3
        %v2658 = vpop.permute.xlu0 %2657
        %2659 = vrot.lane.b32.xlu0 %v1714, 3
        %v2660 = vpop.permute.xlu0 %2659
        %2661 = vrot.lane.b32.xlu0 %v1719, 3
        %v2662 = vpop.permute.xlu0 %2661
        %2663 = vrot.lane.b32.xlu0 %v1724, 3
        %v2664 = vpop.permute.xlu0 %2663
        %2665 = vrot.lane.b32.xlu0 %v1729, 3
        %v2666 = vpop.permute.xlu0 %2665
        %2667 = vrot.lane.b32.xlu0 %v1734, 3
        %v2668 = vpop.permute.xlu0 %2667
        %2669 = vrot.lane.b32.xlu0 %v1739, 3
        %v2670 = vpop.permute.xlu0 %2669
        %2671 = vrot.lane.b32.xlu0 %v1744, 3
        %v2672 = vpop.permute.xlu0 %2671
        %2673 = vrot.lane.b32.xlu0 %v1749, 3
        %v2674 = vpop.permute.xlu0 %2673
        %2675 = vrot.lane.b32.xlu0 %v1754, 3
        %v2676 = vpop.permute.xlu0 %2675
        %2677 = vrot.lane.b32.xlu0 %v1759, 3
        %v2678 = vpop.permute.xlu0 %2677
        %2679 = vrot.lane.b32.xlu0 %v1764, 3
        %v2680 = vpop.permute.xlu0 %2679
        %2681 = vrot.lane.b32.xlu0 %v1769, 3
        %v2682 = vpop.permute.xlu0 %2681
        %2683 = vrot.lane.b32.xlu0 %v1774, 3
        %v2684 = vpop.permute.xlu0 %2683
        %2685 = vrot.lane.b32.xlu0 %v1779, 3
        %v2686 = vpop.permute.xlu0 %2685
        %2687 = vrot.lane.b32.xlu0 %v1784, 3
        %v2688 = vpop.permute.xlu0 %2687
        %2689 = vrot.lane.b32.xlu0 %v1789, 3
        %v2690 = vpop.permute.xlu0 %2689
        %2691 = vrot.lane.b32.xlu0 %v1794, 3
        %v2692 = vpop.permute.xlu0 %2691
        %2693 = vrot.lane.b32.xlu0 %v1990, 3
        %v2694 = vpop.permute.xlu0 %2693
        %2695 = vrot.lane.b32.xlu0 %v1992, 3
        %v2696 = vpop.permute.xlu0 %2695
        %2697 = vrot.lane.b32.xlu0 %v1994, 3
        %v2698 = vpop.permute.xlu0 %2697
        %2699 = vrot.lane.b32.xlu0 %v1996, 3
        %v2700 = vpop.permute.xlu0 %2699
        %2701 = vrot.lane.b32.xlu0 %v1998, 3
        %v2702 = vpop.permute.xlu0 %2701
        %2703 = vrot.lane.b32.xlu0 %v2000, 3
        %v2704 = vpop.permute.xlu0 %2703
        %2705 = vrot.lane.b32.xlu0 %v2002, 3
        %v2706 = vpop.permute.xlu0 %2705
        %2707 = vrot.lane.b32.xlu0 %v2004, 3
        %v2708 = vpop.permute.xlu0 %2707
        %2709 = vrot.lane.b32.xlu0 %v2006, 3
        %v2710 = vpop.permute.xlu0 %2709
        %2711 = vrot.lane.b32.xlu0 %v2008, 3
        %v2712 = vpop.permute.xlu0 %2711
        %2713 = vrot.lane.b32.xlu0 %v2010, 3
        %v2714 = vpop.permute.xlu0 %2713
        %2715 = vrot.lane.b32.xlu0 %v2012, 3
        %v2716 = vpop.permute.xlu0 %2715
        %2717 = vrot.lane.b32.xlu0 %v2014, 3
        %v2718 = vpop.permute.xlu0 %2717
        %2719 = vrot.lane.b32.xlu0 %v2016, 3
        %v2720 = vpop.permute.xlu0 %2719
        %2721 = vrot.lane.b32.xlu0 %v2018, 3
        %v2722 = vpop.permute.xlu0 %2721
        %2723 = vrot.lane.b32.xlu0 %v2020, 3
        %v2724 = vpop.permute.xlu0 %2723
        %2725 = vrot.lane.b32.xlu0 %v2022, 3
        %v2726 = vpop.permute.xlu0 %2725
        %2727 = vrot.lane.b32.xlu0 %v2024, 3
        %v2728 = vpop.permute.xlu0 %2727
        %2729 = vrot.lane.b32.xlu0 %v2026, 3
        %v2730 = vpop.permute.xlu0 %2729
        %2731 = vrot.lane.b32.xlu0 %v2028, 3
        %v2732 = vpop.permute.xlu0 %2731
        %2733 = vrot.lane.b32.xlu0 %v2030, 3
        %v2734 = vpop.permute.xlu0 %2733
        %2735 = vrot.lane.b32.xlu0 %v2032, 3
        %v2736 = vpop.permute.xlu0 %2735
        %2737 = vrot.lane.b32.xlu0 %v2034, 3
        %v2738 = vpop.permute.xlu0 %2737
        %2739 = vrot.lane.b32.xlu0 %v2036, 3
        %v2740 = vpop.permute.xlu0 %2739
        %2741 = vrot.lane.b32.xlu0 %v2038, 3
        %v2742 = vpop.permute.xlu0 %2741
        %2743 = vrot.lane.b32.xlu0 %v2040, 3
        %v2744 = vpop.permute.xlu0 %2743
        %2745 = vrot.lane.b32.xlu0 %v2042, 3
        %v2746 = vpop.permute.xlu0 %2745
        %2747 = vrot.lane.b32.xlu0 %v2044, 3
        %v2748 = vpop.permute.xlu0 %2747
        %2749 = vrot.lane.b32.xlu0 %v2046, 3
        %v2750 = vpop.permute.xlu0 %2749
        %2751 = vrot.lane.b32.xlu0 %v2048, 3
        %v2752 = vpop.permute.xlu0 %2751
        %2753 = vrot.lane.b32.xlu0 %v2050, 3
        %v2754 = vpop.permute.xlu0 %2753
        %2755 = vrot.lane.b32.xlu0 %v2052, 3
        %v2756 = vpop.permute.xlu0 %2755
        %vm2821 = vcmask 7168
        %v2822 = vsel %vm2821, %v1159, %v2118
        %v2823 = vsel %vm2821, %v1164, %v2120
        %v2824 = vsel %vm2821, %v1169, %v2122
        %v2825 = vsel %vm2821, %v1174, %v2124
        %v2826 = vsel %vm2821, %v1179, %v2126
        %v2827 = vsel %vm2821, %v1184, %v2128
        %v2828 = vsel %vm2821, %v1189, %v2130
        %v2829 = vsel %vm2821, %v1194, %v2132
        %v2830 = vsel %vm2821, %v1199, %v2134
        %v2831 = vsel %vm2821, %v1204, %v2136
        %v2832 = vsel %vm2821, %v1209, %v2138
        %v2833 = vsel %vm2821, %v1214, %v2140
        %v2834 = vsel %vm2821, %v1219, %v2142
        %v2835 = vsel %vm2821, %v1224, %v2144
        %v2836 = vsel %vm2821, %v1229, %v2146
        %v2837 = vsel %vm2821, %v1234, %v2148
        %v2838 = vsel %vm2821, %v1239, %v2150
        %v2839 = vsel %vm2821, %v1244, %v2152
        %v2840 = vsel %vm2821, %v1249, %v2154
        %v2841 = vsel %vm2821, %v1254, %v2156
        %v2842 = vsel %vm2821, %v1259, %v2158
        %v2843 = vsel %vm2821, %v1264, %v2160
        %v2844 = vsel %vm2821, %v1269, %v2162
        %v2845 = vsel %vm2821, %v1274, %v2164
        %v2846 = vsel %vm2821, %v1279, %v2166
        %v2847 = vsel %vm2821, %v1284, %v2168
        %v2848 = vsel %vm2821, %v1289, %v2170
        %v2849 = vsel %vm2821, %v1294, %v2172
        %v2850 = vsel %vm2821, %v1299, %v2174
        %v2851 = vsel %vm2821, %v1304, %v2176
        %v2852 = vsel %vm2821, %v1309, %v2178
        %v2853 = vsel %vm2821, %v1314, %v2180
        %v2854 = vsel %vm2821, %v1798, %v2182
        %v2855 = vsel %vm2821, %v1800, %v2184
        %v2856 = vsel %vm2821, %v1802, %v2186
        %v2857 = vsel %vm2821, %v1804, %v2188
        %v2858 = vsel %vm2821, %v1806, %v2190
        %v2859 = vsel %vm2821, %v1808, %v2192
        %v2860 = vsel %vm2821, %v1810, %v2194
        %v2861 = vsel %vm2821, %v1812, %v2196
        %v2862 = vsel %vm2821, %v1814, %v2198
        %v2863 = vsel %vm2821, %v1816, %v2200
        %v2864 = vsel %vm2821, %v1818, %v2202
        %v2865 = vsel %vm2821, %v1820, %v2204
        %v2866 = vsel %vm2821, %v1822, %v2206
        %v2867 = vsel %vm2821, %v1824, %v2208
        %v2868 = vsel %vm2821, %v1826, %v2210
        %v2869 = vsel %vm2821, %v1828, %v2212
        %v2870 = vsel %vm2821, %v1830, %v2214
        %v2871 = vsel %vm2821, %v1832, %v2216
        %v2872 = vsel %vm2821, %v1834, %v2218
        %v2873 = vsel %vm2821, %v1836, %v2220
        %v2874 = vsel %vm2821, %v1838, %v2222
        %v2875 = vsel %vm2821, %v1840, %v2224
        %v2876 = vsel %vm2821, %v1842, %v2226
        %v2877 = vsel %vm2821, %v1844, %v2228
        %v2878 = vsel %vm2821, %v1846, %v2230
        %v2879 = vsel %vm2821, %v1848, %v2232
        %v2880 = vsel %vm2821, %v1850, %v2234
        %v2881 = vsel %vm2821, %v1852, %v2236
        %v2882 = vsel %vm2821, %v1854, %v2238
        %v2883 = vsel %vm2821, %v1856, %v2240
        %v2884 = vsel %vm2821, %v1858, %v2242
        %v2885 = vsel %vm2821, %v1860, %v2244
        %vm2886 = vcmask 15360
        %v2887 = vsel %vm2886, %v2822, %v2374
        %v2888 = vsel %vm2886, %v2823, %v2376
        %v2889 = vsel %vm2886, %v2824, %v2378
        %v2890 = vsel %vm2886, %v2825, %v2380
        %v2891 = vsel %vm2886, %v2826, %v2382
        %v2892 = vsel %vm2886, %v2827, %v2384
        %v2893 = vsel %vm2886, %v2828, %v2386
        %v2894 = vsel %vm2886, %v2829, %v2388
        %v2895 = vsel %vm2886, %v2830, %v2390
        %v2896 = vsel %vm2886, %v2831, %v2392
        %v2897 = vsel %vm2886, %v2832, %v2394
        %v2898 = vsel %vm2886, %v2833, %v2396
        %v2899 = vsel %vm2886, %v2834, %v2398
        %v2900 = vsel %vm2886, %v2835, %v2400
        %v2901 = vsel %vm2886, %v2836, %v2402
        %v2902 = vsel %vm2886, %v2837, %v2404
        %v2903 = vsel %vm2886, %v2838, %v2406
        %v2904 = vsel %vm2886, %v2839, %v2408
        %v2905 = vsel %vm2886, %v2840, %v2410
        %v2906 = vsel %vm2886, %v2841, %v2412
        %v2907 = vsel %vm2886, %v2842, %v2414
        %v2908 = vsel %vm2886, %v2843, %v2416
        %v2909 = vsel %vm2886, %v2844, %v2418
        %v2910 = vsel %vm2886, %v2845, %v2420
        %v2911 = vsel %vm2886, %v2846, %v2422
        %v2912 = vsel %vm2886, %v2847, %v2424
        %v2913 = vsel %vm2886, %v2848, %v2426
        %v2914 = vsel %vm2886, %v2849, %v2428
        %v2915 = vsel %vm2886, %v2850, %v2430
        %v2916 = vsel %vm2886, %v2851, %v2432
        %v2917 = vsel %vm2886, %v2852, %v2434
        %v2918 = vsel %vm2886, %v2853, %v2436
        %v2919 = vsel %vm2886, %v2854, %v2438
        %v2920 = vsel %vm2886, %v2855, %v2440
        %v2921 = vsel %vm2886, %v2856, %v2442
        %v2922 = vsel %vm2886, %v2857, %v2444
        %v2923 = vsel %vm2886, %v2858, %v2446
        %v2924 = vsel %vm2886, %v2859, %v2448
        %v2925 = vsel %vm2886, %v2860, %v2450
        %v2926 = vsel %vm2886, %v2861, %v2452
        %v2927 = vsel %vm2886, %v2862, %v2454
        %v2928 = vsel %vm2886, %v2863, %v2456
        %v2929 = vsel %vm2886, %v2864, %v2458
        %v2930 = vsel %vm2886, %v2865, %v2460
        %v2931 = vsel %vm2886, %v2866, %v2462
        %v2932 = vsel %vm2886, %v2867, %v2464
        %v2933 = vsel %vm2886, %v2868, %v2466
        %v2934 = vsel %vm2886, %v2869, %v2468
        %v2935 = vsel %vm2886, %v2870, %v2470
        %v2936 = vsel %vm2886, %v2871, %v2472
        %v2937 = vsel %vm2886, %v2872, %v2474
        %v2938 = vsel %vm2886, %v2873, %v2476
        %v2939 = vsel %vm2886, %v2874, %v2478
        %v2940 = vsel %vm2886, %v2875, %v2480
        %v2941 = vsel %vm2886, %v2876, %v2482
        %v2942 = vsel %vm2886, %v2877, %v2484
        %v2943 = vsel %vm2886, %v2878, %v2486
        %v2944 = vsel %vm2886, %v2879, %v2488
        %v2945 = vsel %vm2886, %v2880, %v2490
        %v2946 = vsel %vm2886, %v2881, %v2492
        %v2947 = vsel %vm2886, %v2882, %v2494
        %v2948 = vsel %vm2886, %v2883, %v2496
        %v2949 = vsel %vm2886, %v2884, %v2498
        %v2950 = vsel %vm2886, %v2885, %v2500
        %vm2951 = vcmask 23552
        %v2952 = vsel %vm2951, %v2887, %v2630
        %v2953 = vsel %vm2951, %v2888, %v2632
        %v2954 = vsel %vm2951, %v2889, %v2634
        %v2955 = vsel %vm2951, %v2890, %v2636
        %v2956 = vsel %vm2951, %v2891, %v2638
        %v2957 = vsel %vm2951, %v2892, %v2640
        %v2958 = vsel %vm2951, %v2893, %v2642
        %v2959 = vsel %vm2951, %v2894, %v2644
        %v2960 = vsel %vm2951, %v2895, %v2646
        %v2961 = vsel %vm2951, %v2896, %v2648
        %v2962 = vsel %vm2951, %v2897, %v2650
        %v2963 = vsel %vm2951, %v2898, %v2652
        %v2964 = vsel %vm2951, %v2899, %v2654
        %v2965 = vsel %vm2951, %v2900, %v2656
        %v2966 = vsel %vm2951, %v2901, %v2658
        %v2967 = vsel %vm2951, %v2902, %v2660
        %v2968 = vsel %vm2951, %v2903, %v2662
        %v2969 = vsel %vm2951, %v2904, %v2664
        %v2970 = vsel %vm2951, %v2905, %v2666
        %v2971 = vsel %vm2951, %v2906, %v2668
        %v2972 = vsel %vm2951, %v2907, %v2670
        %v2973 = vsel %vm2951, %v2908, %v2672
        %v2974 = vsel %vm2951, %v2909, %v2674
        %v2975 = vsel %vm2951, %v2910, %v2676
        %v2976 = vsel %vm2951, %v2911, %v2678
        %v2977 = vsel %vm2951, %v2912, %v2680
        %v2978 = vsel %vm2951, %v2913, %v2682
        %v2979 = vsel %vm2951, %v2914, %v2684
        %v2980 = vsel %vm2951, %v2915, %v2686
        %v2981 = vsel %vm2951, %v2916, %v2688
        %v2982 = vsel %vm2951, %v2917, %v2690
        %v2983 = vsel %vm2951, %v2918, %v2692
        %v2984 = vsel %vm2951, %v2919, %v2694
        %v2985 = vsel %vm2951, %v2920, %v2696
        %v2986 = vsel %vm2951, %v2921, %v2698
        %v2987 = vsel %vm2951, %v2922, %v2700
        %v2988 = vsel %vm2951, %v2923, %v2702
        %v2989 = vsel %vm2951, %v2924, %v2704
        %v2990 = vsel %vm2951, %v2925, %v2706
        %v2991 = vsel %vm2951, %v2926, %v2708
        %v2992 = vsel %vm2951, %v2927, %v2710
        %v2993 = vsel %vm2951, %v2928, %v2712
        %v2994 = vsel %vm2951, %v2929, %v2714
        %v2995 = vsel %vm2951, %v2930, %v2716
        %v2996 = vsel %vm2951, %v2931, %v2718
        %v2997 = vsel %vm2951, %v2932, %v2720
        %v2998 = vsel %vm2951, %v2933, %v2722
        %v2999 = vsel %vm2951, %v2934, %v2724
        %v3000 = vsel %vm2951, %v2935, %v2726
        %v3001 = vsel %vm2951, %v2936, %v2728
        %v3002 = vsel %vm2951, %v2937, %v2730
        %v3003 = vsel %vm2951, %v2938, %v2732
        %v3004 = vsel %vm2951, %v2939, %v2734
        %v3005 = vsel %vm2951, %v2940, %v2736
        %v3006 = vsel %vm2951, %v2941, %v2738
        %v3007 = vsel %vm2951, %v2942, %v2740
        %v3008 = vsel %vm2951, %v2943, %v2742
        %v3009 = vsel %vm2951, %v2944, %v2744
        %v3010 = vsel %vm2951, %v2945, %v2746
        %v3011 = vsel %vm2951, %v2946, %v2748
        %v3012 = vsel %vm2951, %v2947, %v2750
        %v3013 = vsel %vm2951, %v2948, %v2752
        %v3014 = vsel %vm2951, %v2949, %v2754
        %v3015 = vsel %vm2951, %v2950, %v2756
        %v3016 = vld [vmem:[#allocation6] sm:$0xff]
        %v3017 = vld [vmem:[#allocation6 + $0x8] sm:$0xff]
        %v3018 = vld [vmem:[#allocation6 + $0x10] sm:$0xff]
        %v3019 = vld [vmem:[#allocation6 + $0x18] sm:$0xff]
        %v3020 = vld [vmem:[#allocation6 + $0x20] sm:$0xff]
        %v3021 = vld [vmem:[#allocation6 + $0x28] sm:$0xff]
        %v3022 = vld [vmem:[#allocation6 + $0x30] sm:$0xff]
        %v3023 = vld [vmem:[#allocation6 + $0x38] sm:$0xff]
        %v3024 = vld [vmem:[#allocation6 + $0x40] sm:$0xff]
        %v3025 = vld [vmem:[#allocation6 + $0x48] sm:$0xff]
        %v3026 = vld [vmem:[#allocation6 + $0x50] sm:$0xff]
        %v3027 = vld [vmem:[#allocation6 + $0x58] sm:$0xff]
        %v3028 = vld [vmem:[#allocation6 + $0x60] sm:$0xff]
        %v3029 = vld [vmem:[#allocation6 + $0x68] sm:$0xff]
        %v3030 = vld [vmem:[#allocation6 + $0x70] sm:$0xff]
        %v3031 = vld [vmem:[#allocation6 + $0x78] sm:$0xff]
        %v3032 = vld [vmem:[#allocation6 + $0x80] sm:$0xff]
        %v3033 = vld [vmem:[#allocation6 + $0x88] sm:$0xff]
        %v3034 = vld [vmem:[#allocation6 + $0x90] sm:$0xff]
        %v3035 = vld [vmem:[#allocation6 + $0x98] sm:$0xff]
        %v3036 = vld [vmem:[#allocation6 + $0xa0] sm:$0xff]
        %v3037 = vld [vmem:[#allocation6 + $0xa8] sm:$0xff]
        %v3038 = vld [vmem:[#allocation6 + $0xb0] sm:$0xff]
        %v3039 = vld [vmem:[#allocation6 + $0xb8] sm:$0xff]
        %v3040 = vld [vmem:[#allocation6 + $0xc0] sm:$0xff]
        %v3041 = vld [vmem:[#allocation6 + $0xc8] sm:$0xff]
        %v3042 = vld [vmem:[#allocation6 + $0xd0] sm:$0xff]
        %v3043 = vld [vmem:[#allocation6 + $0xd8] sm:$0xff]
        %v3044 = vld [vmem:[#allocation6 + $0xe0] sm:$0xff]
        %v3045 = vld [vmem:[#allocation6 + $0xe8] sm:$0xff]
        %v3046 = vld [vmem:[#allocation6 + $0xf0] sm:$0xff]
        %v3047 = vld [vmem:[#allocation6 + $0xf8] sm:$0xff]
        %v3048 = vld [vmem:[#allocation6 + $0x100] sm:$0xff]
        %v3049 = vld [vmem:[#allocation6 + $0x108] sm:$0xff]
        %v3050 = vld [vmem:[#allocation6 + $0x110] sm:$0xff]
        %v3051 = vld [vmem:[#allocation6 + $0x118] sm:$0xff]
        %v3052 = vld [vmem:[#allocation6 + $0x120] sm:$0xff]
        %v3053 = vld [vmem:[#allocation6 + $0x128] sm:$0xff]
        %v3054 = vld [vmem:[#allocation6 + $0x130] sm:$0xff]
        %v3055 = vld [vmem:[#allocation6 + $0x138] sm:$0xff]
        %v3056 = vld [vmem:[#allocation6 + $0x140] sm:$0xff]
        %v3057 = vld [vmem:[#allocation6 + $0x148] sm:$0xff]
        %v3058 = vld [vmem:[#allocation6 + $0x150] sm:$0xff]
        %v3059 = vld [vmem:[#allocation6 + $0x158] sm:$0xff]
        %v3060 = vld [vmem:[#allocation6 + $0x160] sm:$0xff]
        %v3061 = vld [vmem:[#allocation6 + $0x168] sm:$0xff]
        %v3062 = vld [vmem:[#allocation6 + $0x170] sm:$0xff]
        %v3063 = vld [vmem:[#allocation6 + $0x178] sm:$0xff]
        %v3064 = vld [vmem:[#allocation6 + $0x180] sm:$0xff]
        %v3065 = vld [vmem:[#allocation6 + $0x188] sm:$0xff]
        %v3066 = vld [vmem:[#allocation6 + $0x190] sm:$0xff]
        %v3067 = vld [vmem:[#allocation6 + $0x198] sm:$0xff]
        %v3068 = vld [vmem:[#allocation6 + $0x1a0] sm:$0xff]
        %v3069 = vld [vmem:[#allocation6 + $0x1a8] sm:$0xff]
        %v3070 = vld [vmem:[#allocation6 + $0x1b0] sm:$0xff]
        %v3071 = vld [vmem:[#allocation6 + $0x1b8] sm:$0xff]
        %v3072 = vld [vmem:[#allocation6 + $0x1c0] sm:$0xff]
        %v3073 = vld [vmem:[#allocation6 + $0x1c8] sm:$0xff]
        %v3074 = vld [vmem:[#allocation6 + $0x1d0] sm:$0xff]
        %v3075 = vld [vmem:[#allocation6 + $0x1d8] sm:$0xff]
        %v3076 = vld [vmem:[#allocation6 + $0x1e0] sm:$0xff]
        %v3077 = vld [vmem:[#allocation6 + $0x1e8] sm:$0xff]
        %v3078 = vld [vmem:[#allocation6 + $0x1f0] sm:$0xff]
        %v3079 = vld [vmem:[#allocation6 + $0x1f8] sm:$0xff]
        %v3080 = vld [vmem:[#allocation6 + $0x200] sm:$0xff]
        %v3081 = vld [vmem:[#allocation6 + $0x208] sm:$0xff]
        %v3082 = vld [vmem:[#allocation6 + $0x210] sm:$0xff]
        %v3083 = vld [vmem:[#allocation6 + $0x218] sm:$0xff]
        %v3084 = vld [vmem:[#allocation6 + $0x220] sm:$0xff]
        %v3085 = vld [vmem:[#allocation6 + $0x228] sm:$0xff]
        %v3086 = vld [vmem:[#allocation6 + $0x230] sm:$0xff]
        %v3087 = vld [vmem:[#allocation6 + $0x238] sm:$0xff]
        %v3088 = vld [vmem:[#allocation6 + $0x240] sm:$0xff]
        %v3089 = vld [vmem:[#allocation6 + $0x248] sm:$0xff]
        %v3090 = vld [vmem:[#allocation6 + $0x250] sm:$0xff]
        %v3091 = vld [vmem:[#allocation6 + $0x258] sm:$0xff]
        %v3092 = vld [vmem:[#allocation6 + $0x260] sm:$0xff]
        %v3093 = vld [vmem:[#allocation6 + $0x268] sm:$0xff]
        %v3094 = vld [vmem:[#allocation6 + $0x270] sm:$0xff]
        %v3095 = vld [vmem:[#allocation6 + $0x278] sm:$0xff]
        %v3096 = vld [vmem:[#allocation6 + $0x280] sm:$0xff]
        %v3097 = vld [vmem:[#allocation6 + $0x288] sm:$0xff]
        %v3098 = vld [vmem:[#allocation6 + $0x290] sm:$0xff]
        %v3099 = vld [vmem:[#allocation6 + $0x298] sm:$0xff]
        %v3100 = vld [vmem:[#allocation6 + $0x2a0] sm:$0xff]
        %v3101 = vld [vmem:[#allocation6 + $0x2a8] sm:$0xff]
        %v3102 = vld [vmem:[#allocation6 + $0x2b0] sm:$0xff]
        %v3103 = vld [vmem:[#allocation6 + $0x2b8] sm:$0xff]
        %v3104 = vld [vmem:[#allocation6 + $0x2c0] sm:$0xff]
        %v3105 = vld [vmem:[#allocation6 + $0x2c8] sm:$0xff]
        %v3106 = vld [vmem:[#allocation6 + $0x2d0] sm:$0xff]
        %v3107 = vld [vmem:[#allocation6 + $0x2d8] sm:$0xff]
        %v3108 = vld [vmem:[#allocation6 + $0x2e0] sm:$0xff]
        %v3109 = vld [vmem:[#allocation6 + $0x2e8] sm:$0xff]
        %v3110 = vld [vmem:[#allocation6 + $0x2f0] sm:$0xff]
        %v3111 = vld [vmem:[#allocation6 + $0x2f8] sm:$0xff]
        %v3112 = vld [vmem:[#allocation6 + $0x300] sm:$0xff]
        %v3113 = vld [vmem:[#allocation6 + $0x308] sm:$0xff]
        %v3114 = vld [vmem:[#allocation6 + $0x310] sm:$0xff]
        %v3115 = vld [vmem:[#allocation6 + $0x318] sm:$0xff]
        %v3116 = vld [vmem:[#allocation6 + $0x320] sm:$0xff]
        %v3117 = vld [vmem:[#allocation6 + $0x328] sm:$0xff]
        %v3118 = vld [vmem:[#allocation6 + $0x330] sm:$0xff]
        %v3119 = vld [vmem:[#allocation6 + $0x338] sm:$0xff]
        %v3120 = vld [vmem:[#allocation6 + $0x340] sm:$0xff]
        %v3121 = vld [vmem:[#allocation6 + $0x348] sm:$0xff]
        %v3122 = vld [vmem:[#allocation6 + $0x350] sm:$0xff]
        %v3123 = vld [vmem:[#allocation6 + $0x358] sm:$0xff]
        %v3124 = vld [vmem:[#allocation6 + $0x360] sm:$0xff]
        %v3125 = vld [vmem:[#allocation6 + $0x368] sm:$0xff]
        %v3126 = vld [vmem:[#allocation6 + $0x370] sm:$0xff]
        %v3127 = vld [vmem:[#allocation6 + $0x378] sm:$0xff]
        %v3128 = vld [vmem:[#allocation6 + $0x380] sm:$0xff]
        %v3129 = vld [vmem:[#allocation6 + $0x388] sm:$0xff]
        %v3130 = vld [vmem:[#allocation6 + $0x390] sm:$0xff]
        %v3131 = vld [vmem:[#allocation6 + $0x398] sm:$0xff]
        %v3132 = vld [vmem:[#allocation6 + $0x3a0] sm:$0xff]
        %v3133 = vld [vmem:[#allocation6 + $0x3a8] sm:$0xff]
        %v3134 = vld [vmem:[#allocation6 + $0x3b0] sm:$0xff]
        %v3135 = vld [vmem:[#allocation6 + $0x3b8] sm:$0xff]
        %v3136 = vld [vmem:[#allocation6 + $0x3c0] sm:$0xff]
        %v3137 = vld [vmem:[#allocation6 + $0x3c8] sm:$0xff]
        %v3138 = vld [vmem:[#allocation6 + $0x3d0] sm:$0xff]
        %v3139 = vld [vmem:[#allocation6 + $0x3d8] sm:$0xff]
        %v3140 = vld [vmem:[#allocation6 + $0x3e0] sm:$0xff]
        %v3141 = vld [vmem:[#allocation6 + $0x3e8] sm:$0xff]
        %v3142 = vld [vmem:[#allocation6 + $0x3f0] sm:$0xff]
        %v3143 = vld [vmem:[#allocation6 + $0x3f8] sm:$0xff]
        %s3144 = sld [smem:[#allocation2]]
        %v3145 = vstv %s3144
        %3146 = vmatprep.subr.mxu0 0.0
        %3147 = vmatpush1.msra.mxu0 %v2952
        %3148 = vmatprep.subr.mxu0 0.0
        %3149 = vmatpush1.msra.mxu0 %v2953
        %3150 = vmatprep.subr.mxu0 0.0
        %3151 = vmatpush1.msra.mxu0 %v2954
        %3152 = vmatprep.subr.mxu0 0.0
        %3153 = vmatpush1.msra.mxu0 %v2955
        %3154 = vmatprep.subr.mxu0 0.0
        %3155 = vmatpush1.msra.mxu0 %v2956
        %3156 = vmatprep.subr.mxu0 0.0
        %3157 = vmatpush1.msra.mxu0 %v2957
        %3158 = vmatprep.subr.mxu0 0.0
        %3159 = vmatpush1.msra.mxu0 %v2958
        %3160 = vmatprep.subr.mxu0 0.0
        %3161 = vmatpush1.msra.mxu0 %v2959
        %3162 = vmatprep.subr.mxu0 0.0
        %3163 = vmatpush1.msra.mxu0 %v2960
        %3164 = vmatprep.subr.mxu0 0.0
        %3165 = vmatpush1.msra.mxu0 %v2961
        %3166 = vmatprep.subr.mxu0 0.0
        %3167 = vmatpush1.msra.mxu0 %v2962
        %3168 = vmatprep.subr.mxu0 0.0
        %3169 = vmatpush1.msra.mxu0 %v2963
        %3170 = vmatprep.subr.mxu0 0.0
        %3171 = vmatpush1.msra.mxu0 %v2964
        %3172 = vmatprep.subr.mxu0 0.0
        %3173 = vmatpush1.msra.mxu0 %v2965
        %3174 = vmatprep.subr.mxu0 0.0
        %3175 = vmatpush1.msra.mxu0 %v2966
        %3176 = vmatprep.subr.mxu0 0.0
        %3177 = vmatpush1.msra.mxu0 %v2967
        %3178 = vmatprep.subr.mxu0 0.0
        %3179 = vmatpush1.msra.mxu0 %v2968
        %3180 = vmatprep.subr.mxu0 0.0
        %3181 = vmatpush1.msra.mxu0 %v2969
        %3182 = vmatprep.subr.mxu0 0.0
        %3183 = vmatpush1.msra.mxu0 %v2970
        %3184 = vmatprep.subr.mxu0 0.0
        %3185 = vmatpush1.msra.mxu0 %v2971
        %3186 = vmatprep.subr.mxu0 0.0
        %3187 = vmatpush1.msra.mxu0 %v2972
        %3188 = vmatprep.subr.mxu0 0.0
        %3189 = vmatpush1.msra.mxu0 %v2973
        %3190 = vmatprep.subr.mxu0 0.0
        %3191 = vmatpush1.msra.mxu0 %v2974
        %3192 = vmatprep.subr.mxu0 0.0
        %3193 = vmatpush1.msra.mxu0 %v2975
        %3194 = vmatprep.subr.mxu0 0.0
        %3195 = vmatpush1.msra.mxu0 %v2976
        %3196 = vmatprep.subr.mxu0 0.0
        %3197 = vmatpush1.msra.mxu0 %v2977
        %3198 = vmatprep.subr.mxu0 0.0
        %3199 = vmatpush1.msra.mxu0 %v2978
        %3200 = vmatprep.subr.mxu0 0.0
        %3201 = vmatpush1.msra.mxu0 %v2979
        %3202 = vmatprep.subr.mxu0 0.0
        %3203 = vmatpush1.msra.mxu0 %v2980
        %3204 = vmatprep.subr.mxu0 0.0
        %3205 = vmatpush1.msra.mxu0 %v2981
        %3206 = vmatprep.subr.mxu0 0.0
        %3207 = vmatpush1.msra.mxu0 %v2982
        %3208 = vmatprep.subr.mxu0 0.0
        %3209 = vmatpush1.msra.mxu0 %v2983
        %3210 = vmatprep.mubr.f32.mxu0 %v3017
        %3211 = vmatmul.mubr.f32.gmra.mrb[0].mxu0 %v3016
        %v3212 = vpop.f32.mrb[0].mxu0
        %v3213 = vadd.f32 %v3145, %v3212
        %v3214 = vpop.f32.mrb[0].mxu0
        %3215 = vmatprep.mubr.f32.mxu0 %v3021
        %3216 = vmatmul.mubr.f32.gmra.mrb[0].mxu0 %v3020
        %v3217 = vpop.f32.mrb[0].mxu0
        %v3218 = vadd.f32 %v3145, %v3217
        %v3219 = vpop.f32.mrb[0].mxu0
        %3220 = vmatprep.mubr.f32.mxu0 %v3025
        %3221 = vmatmul.mubr.f32.gmra.mrb[0].mxu0 %v3024
        %v3222 = vpop.f32.mrb[0].mxu0
        %v3223 = vadd.f32 %v3145, %v3222
        %v3224 = vpop.f32.mrb[0].mxu0
        %3225 = vmatprep.mubr.f32.mxu0 %v3029
        %3226 = vmatmul.mubr.f32.gmra.mrb[0].mxu0 %v3028
        %v3227 = vpop.f32.mrb[0].mxu0
        %v3228 = vadd.f32 %v3145, %v3227
        %v3229 = vpop.f32.mrb[0].mxu0
        %3230 = vmatprep.mubr.f32.mxu0 %v3033
        %3231 = vmatmul.mubr.f32.gmra.mrb[0].mxu0 %v3032
        %v3232 = vpop.f32.mrb[0].mxu0
        %v3233 = vadd.f32 %v3145, %v3232
        %v3234 = vpop.f32.mrb[0].mxu0
        %3235 = vmatprep.mubr.f32.mxu0 %v3037
        %3236 = vmatmul.mubr.f32.gmra.mrb[0].mxu0 %v3036
        %v3237 = vpop.f32.mrb[0].mxu0
        %v3238 = vadd.f32 %v3145, %v3237
        %v3239 = vpop.f32.mrb[0].mxu0
        %3240 = vmatprep.mubr.f32.mxu0 %v3041
        %3241 = vmatmul.mubr.f32.gmra.mrb[0].mxu0 %v3040
        %v3242 = vpop.f32.mrb[0].mxu0
        %v3243 = vadd.f32 %v3145, %v3242
        %v3244 = vpop.f32.mrb[0].mxu0
        %3245 = vmatprep.mubr.f32.mxu0 %v3045
        %3246 = vmatmul.mubr.f32.gmra.mrb[0].mxu0 %v3044
        %v3247 = vpop.f32.mrb[0].mxu0
        %v3248 = vadd.f32 %v3145, %v3247
        %v3249 = vpop.f32.mrb[0].mxu0
        %3250 = vmatprep.mubr.f32.mxu0 %v3049
        %3251 = vmatmul.mubr.f32.gmra.mrb[0].mxu0 %v3048
        %v3252 = vpop.f32.mrb[0].mxu0
        %v3253 = vadd.f32 %v3145, %v3252
        %v3254 = vpop.f32.mrb[0].mxu0
        %3255 = vmatprep.mubr.f32.mxu0 %v3053
        %3256 = vmatmul.mubr.f32.gmra.mrb[0].mxu0 %v3052
        %v3257 = vpop.f32.mrb[0].mxu0
        %v3258 = vadd.f32 %v3145, %v3257
        %v3259 = vpop.f32.mrb[0].mxu0
        %3260 = vmatprep.mubr.f32.mxu0 %v3057
        %3261 = vmatmul.mubr.f32.gmra.mrb[0].mxu0 %v3056
        %v3262 = vpop.f32.mrb[0].mxu0
        %v3263 = vadd.f32 %v3145, %v3262
        %v3264 = vpop.f32.mrb[0].mxu0
        %3265 = vmatprep.mubr.f32.mxu0 %v3061
        %3266 = vmatmul.mubr.f32.gmra.mrb[0].mxu0 %v3060
        %v3267 = vpop.f32.mrb[0].mxu0
        %v3268 = vadd.f32 %v3145, %v3267
        %v3269 = vpop.f32.mrb[0].mxu0
        %3270 = vmatprep.mubr.f32.mxu0 %v3065
        %3271 = vmatmul.mubr.f32.gmra.mrb[0].mxu0 %v3064
        %v3272 = vpop.f32.mrb[0].mxu0
        %v3273 = vadd.f32 %v3145, %v3272
        %v3274 = vpop.f32.mrb[0].mxu0
        %3275 = vmatprep.mubr.f32.mxu0 %v3069
        %3276 = vmatmul.mubr.f32.gmra.mrb[0].mxu0 %v3068
        %v3277 = vpop.f32.mrb[0].mxu0
        %v3278 = vadd.f32 %v3145, %v3277
        %v3279 = vpop.f32.mrb[0].mxu0
        %3280 = vmatprep.mubr.f32.mxu0 %v3073
        %3281 = vmatmul.mubr.f32.gmra.mrb[0].mxu0 %v3072
        %v3282 = vpop.f32.mrb[0].mxu0
        %v3283 = vadd.f32 %v3145, %v3282
        %v3284 = vpop.f32.mrb[0].mxu0
        %3285 = vmatprep.mubr.f32.mxu0 %v3077
        %3286 = vmatmul.mubr.f32.gmra.mrb[0].mxu0 %v3076
        %v3287 = vpop.f32.mrb[0].mxu0
        %v3288 = vadd.f32 %v3145, %v3287
        %v3289 = vpop.f32.mrb[0].mxu0
        %3290 = vmatprep.mubr.f32.mxu0 %v3081
        %3291 = vmatmul.mubr.f32.gmra.mrb[0].mxu0 %v3080
        %v3292 = vpop.f32.mrb[0].mxu0
        %v3293 = vadd.f32 %v3145, %v3292
        %v3294 = vpop.f32.mrb[0].mxu0
        %3295 = vmatprep.mubr.f32.mxu0 %v3085
        %3296 = vmatmul.mubr.f32.gmra.mrb[0].mxu0 %v3084
        %v3297 = vpop.f32.mrb[0].mxu0
        %v3298 = vadd.f32 %v3145, %v3297
        %v3299 = vpop.f32.mrb[0].mxu0
        %3300 = vmatprep.mubr.f32.mxu0 %v3089
        %3301 = vmatmul.mubr.f32.gmra.mrb[0].mxu0 %v3088
        %v3302 = vpop.f32.mrb[0].mxu0
        %v3303 = vadd.f32 %v3145, %v3302
        %v3304 = vpop.f32.mrb[0].mxu0
        %3305 = vmatprep.mubr.f32.mxu0 %v3093
        %3306 = vmatmul.mubr.f32.gmra.mrb[0].mxu0 %v3092
        %v3307 = vpop.f32.mrb[0].mxu0
        %v3308 = vadd.f32 %v3145, %v3307
        %v3309 = vpop.f32.mrb[0].mxu0
        %3310 = vmatprep.mubr.f32.mxu0 %v3097
        %3311 = vmatmul.mubr.f32.gmra.mrb[0].mxu0 %v3096
        %v3312 = vpop.f32.mrb[0].mxu0
        %v3313 = vadd.f32 %v3145, %v3312
        %v3314 = vpop.f32.mrb[0].mxu0
        %3315 = vmatprep.mubr.f32.mxu0 %v3101
        %3316 = vmatmul.mubr.f32.gmra.mrb[0].mxu0 %v3100
        %v3317 = vpop.f32.mrb[0].mxu0
        %v3318 = vadd.f32 %v3145, %v3317
        %v3319 = vpop.f32.mrb[0].mxu0
        %3320 = vmatprep.mubr.f32.mxu0 %v3105
        %3321 = vmatmul.mubr.f32.gmra.mrb[0].mxu0 %v3104
        %v3322 = vpop.f32.mrb[0].mxu0
        %v3323 = vadd.f32 %v3145, %v3322
        %v3324 = vpop.f32.mrb[0].mxu0
        %3325 = vmatprep.mubr.f32.mxu0 %v3109
        %3326 = vmatmul.mubr.f32.gmra.mrb[0].mxu0 %v3108
        %v3327 = vpop.f32.mrb[0].mxu0
        %v3328 = vadd.f32 %v3145, %v3327
        %v3329 = vpop.f32.mrb[0].mxu0
        %3330 = vmatprep.mubr.f32.mxu0 %v3113
        %3331 = vmatmul.mubr.f32.gmra.mrb[0].mxu0 %v3112
        %v3332 = vpop.f32.mrb[0].mxu0
        %v3333 = vadd.f32 %v3145, %v3332
        %v3334 = vpop.f32.mrb[0].mxu0
        %3335 = vmatprep.mubr.f32.mxu0 %v3117
        %3336 = vmatmul.mubr.f32.gmra.mrb[0].mxu0 %v3116
        %v3337 = vpop.f32.mrb[0].mxu0
        %v3338 = vadd.f32 %v3145, %v3337
        %v3339 = vpop.f32.mrb[0].mxu0
        %3340 = vmatprep.mubr.f32.mxu0 %v3121
        %3341 = vmatmul.mubr.f32.gmra.mrb[0].mxu0 %v3120
        %v3342 = vpop.f32.mrb[0].mxu0
        %v3343 = vadd.f32 %v3145, %v3342
        %v3344 = vpop.f32.mrb[0].mxu0
        %3345 = vmatprep.mubr.f32.mxu0 %v3125
        %3346 = vmatmul.mubr.f32.gmra.mrb[0].mxu0 %v3124
        %v3347 = vpop.f32.mrb[0].mxu0
        %v3348 = vadd.f32 %v3145, %v3347
        %v3349 = vpop.f32.mrb[0].mxu0
        %3350 = vmatprep.mubr.f32.mxu0 %v3129
        %3351 = vmatmul.mubr.f32.gmra.mrb[0].mxu0 %v3128
        %v3352 = vpop.f32.mrb[0].mxu0
        %v3353 = vadd.f32 %v3145, %v3352
        %v3354 = vpop.f32.mrb[0].mxu0
        %3355 = vmatprep.mubr.f32.mxu0 %v3133
        %3356 = vmatmul.mubr.f32.gmra.mrb[0].mxu0 %v3132
        %v3357 = vpop.f32.mrb[0].mxu0
        %v3358 = vadd.f32 %v3145, %v3357
        %v3359 = vpop.f32.mrb[0].mxu0
        %3360 = vmatprep.mubr.f32.mxu0 %v3137
        %3361 = vmatmul.mubr.f32.gmra.mrb[0].mxu0 %v3136
        %v3362 = vpop.f32.mrb[0].mxu0
        %v3363 = vadd.f32 %v3145, %v3362
        %v3364 = vpop.f32.mrb[0].mxu0
        %3365 = vmatprep.mubr.f32.mxu0 %v3141
        %3366 = vmatmul.mubr.f32.gmra.mrb[0].mxu0 %v3140
        %v3367 = vpop.f32.mrb[0].mxu0
        %v3368 = vadd.f32 %v3145, %v3367
        %v3369 = vpop.f32.mrb[0].mxu0
        %3370 = vdwg.mxu0
        %3371 = vmatprep.subr.mxu0 0.0
        %3372 = vmatpush1.msra.mxu0 %v2984
        %3373 = vmatprep.subr.mxu0 0.0
        %3374 = vmatpush1.msra.mxu0 %v2985
        %3375 = vmatprep.subr.mxu0 0.0
        %3376 = vmatpush1.msra.mxu0 %v2986
        %3377 = vmatprep.subr.mxu0 0.0
        %3378 = vmatpush1.msra.mxu0 %v2987
        %3379 = vmatprep.subr.mxu0 0.0
        %3380 = vmatpush1.msra.mxu0 %v2988
        %3381 = vmatprep.subr.mxu0 0.0
        %3382 = vmatpush1.msra.mxu0 %v2989
        %3383 = vmatprep.subr.mxu0 0.0
        %3384 = vmatpush1.msra.mxu0 %v2990
        %3385 = vmatprep.subr.mxu0 0.0
        %3386 = vmatpush1.msra.mxu0 %v2991
        %3387 = vmatprep.subr.mxu0 0.0
        %3388 = vmatpush1.msra.mxu0 %v2992
        %3389 = vmatprep.subr.mxu0 0.0
        %3390 = vmatpush1.msra.mxu0 %v2993
        %3391 = vmatprep.subr.mxu0 0.0
        %3392 = vmatpush1.msra.mxu0 %v2994
        %3393 = vmatprep.subr.mxu0 0.0
        %3394 = vmatpush1.msra.mxu0 %v2995
        %3395 = vmatprep.subr.mxu0 0.0
        %3396 = vmatpush1.msra.mxu0 %v2996
        %3397 = vmatprep.subr.mxu0 0.0
        %3398 = vmatpush1.msra.mxu0 %v2997
        %3399 = vmatprep.subr.mxu0 0.0
        %3400 = vmatpush1.msra.mxu0 %v2998
        %3401 = vmatprep.subr.mxu0 0.0
        %3402 = vmatpush1.msra.mxu0 %v2999
        %3403 = vmatprep.subr.mxu0 0.0
        %3404 = vmatpush1.msra.mxu0 %v3000
        %3405 = vmatprep.subr.mxu0 0.0
        %3406 = vmatpush1.msra.mxu0 %v3001
        %3407 = vmatprep.subr.mxu0 0.0
        %3408 = vmatpush1.msra.mxu0 %v3002
        %3409 = vmatprep.subr.mxu0 0.0
        %3410 = vmatpush1.msra.mxu0 %v3003
        %3411 = vmatprep.subr.mxu0 0.0
        %3412 = vmatpush1.msra.mxu0 %v3004
        %3413 = vmatprep.subr.mxu0 0.0
        %3414 = vmatpush1.msra.mxu0 %v3005
        %3415 = vmatprep.subr.mxu0 0.0
        %3416 = vmatpush1.msra.mxu0 %v3006
        %3417 = vmatprep.subr.mxu0 0.0
        %3418 = vmatpush1.msra.mxu0 %v3007
        %3419 = vmatprep.subr.mxu0 0.0
        %3420 = vmatpush1.msra.mxu0 %v3008
        %3421 = vmatprep.subr.mxu0 0.0
        %3422 = vmatpush1.msra.mxu0 %v3009
        %3423 = vmatprep.subr.mxu0 0.0
        %3424 = vmatpush1.msra.mxu0 %v3010
        %3425 = vmatprep.subr.mxu0 0.0
        %3426 = vmatpush1.msra.mxu0 %v3011
        %3427 = vmatprep.subr.mxu0 0.0
        %3428 = vmatpush1.msra.mxu0 %v3012
        %3429 = vmatprep.subr.mxu0 0.0
        %3430 = vmatpush1.msra.mxu0 %v3013
        %3431 = vmatprep.subr.mxu0 0.0
        %3432 = vmatpush1.msra.mxu0 %v3014
        %3433 = vmatprep.subr.mxu0 0.0
        %3434 = vmatpush1.msra.mxu0 %v3015
        %3435 = vmatprep.mubr.f32.mxu0 %v3019
        %3436 = vmatmul.mubr.f32.gmra.mrb[0].mxu0 %v3018
        %v3437 = vpop.f32.mrb[0].mxu0
        %v3438 = vadd.f32 %v3213, %v3437
        %v3439 = vpop.f32.mrb[0].mxu0
        %3440 = vmatprep.mubr.f32.mxu0 %v3023
        %3441 = vmatmul.mubr.f32.gmra.mrb[0].mxu0 %v3022
        %v3442 = vpop.f32.mrb[0].mxu0
        %v3443 = vadd.f32 %v3218, %v3442
        %v3444 = vpop.f32.mrb[0].mxu0
        %3445 = vmatprep.mubr.f32.mxu0 %v3027
        %3446 = vmatmul.mubr.f32.gmra.mrb[0].mxu0 %v3026
        %v3447 = vpop.f32.mrb[0].mxu0
        %v3448 = vadd.f32 %v3223, %v3447
        %v3449 = vpop.f32.mrb[0].mxu0
        %3450 = vmatprep.mubr.f32.mxu0 %v3031
        %3451 = vmatmul.mubr.f32.gmra.mrb[0].mxu0 %v3030
        %v3452 = vpop.f32.mrb[0].mxu0
        %v3453 = vadd.f32 %v3228, %v3452
        %v3454 = vpop.f32.mrb[0].mxu0
        %3455 = vmatprep.mubr.f32.mxu0 %v3035
        %3456 = vmatmul.mubr.f32.gmra.mrb[0].mxu0 %v3034
        %v3457 = vpop.f32.mrb[0].mxu0
        %v3458 = vadd.f32 %v3233, %v3457
        %v3459 = vpop.f32.mrb[0].mxu0
        %3460 = vmatprep.mubr.f32.mxu0 %v3039
        %3461 = vmatmul.mubr.f32.gmra.mrb[0].mxu0 %v3038
        %v3462 = vpop.f32.mrb[0].mxu0
        %v3463 = vadd.f32 %v3238, %v3462
        %v3464 = vpop.f32.mrb[0].mxu0
        %3465 = vmatprep.mubr.f32.mxu0 %v3043
        %3466 = vmatmul.mubr.f32.gmra.mrb[0].mxu0 %v3042
        %v3467 = vpop.f32.mrb[0].mxu0
        %v3468 = vadd.f32 %v3243, %v3467
        %v3469 = vpop.f32.mrb[0].mxu0
        %3470 = vmatprep.mubr.f32.mxu0 %v3047
        %3471 = vmatmul.mubr.f32.gmra.mrb[0].mxu0 %v3046
        %v3472 = vpop.f32.mrb[0].mxu0
        %v3473 = vadd.f32 %v3248, %v3472
        %v3474 = vpop.f32.mrb[0].mxu0
        %3475 = vmatprep.mubr.f32.mxu0 %v3051
        %3476 = vmatmul.mubr.f32.gmra.mrb[0].mxu0 %v3050
        %v3477 = vpop.f32.mrb[0].mxu0
        %v3478 = vadd.f32 %v3253, %v3477
        %v3479 = vpop.f32.mrb[0].mxu0
        %3480 = vmatprep.mubr.f32.mxu0 %v3055
        %3481 = vmatmul.mubr.f32.gmra.mrb[0].mxu0 %v3054
        %v3482 = vpop.f32.mrb[0].mxu0
        %v3483 = vadd.f32 %v3258, %v3482
        %v3484 = vpop.f32.mrb[0].mxu0
        %3485 = vmatprep.mubr.f32.mxu0 %v3059
        %3486 = vmatmul.mubr.f32.gmra.mrb[0].mxu0 %v3058
        %v3487 = vpop.f32.mrb[0].mxu0
        %v3488 = vadd.f32 %v3263, %v3487
        %v3489 = vpop.f32.mrb[0].mxu0
        %3490 = vmatprep.mubr.f32.mxu0 %v3063
        %3491 = vmatmul.mubr.f32.gmra.mrb[0].mxu0 %v3062
        %v3492 = vpop.f32.mrb[0].mxu0
        %v3493 = vadd.f32 %v3268, %v3492
        %v3494 = vpop.f32.mrb[0].mxu0
        %3495 = vmatprep.mubr.f32.mxu0 %v3067
        %3496 = vmatmul.mubr.f32.gmra.mrb[0].mxu0 %v3066
        %v3497 = vpop.f32.mrb[0].mxu0
        %v3498 = vadd.f32 %v3273, %v3497
        %v3499 = vpop.f32.mrb[0].mxu0
        %3500 = vmatprep.mubr.f32.mxu0 %v3071
        %3501 = vmatmul.mubr.f32.gmra.mrb[0].mxu0 %v3070
        %v3502 = vpop.f32.mrb[0].mxu0
        %v3503 = vadd.f32 %v3278, %v3502
        %v3504 = vpop.f32.mrb[0].mxu0
        %3505 = vmatprep.mubr.f32.mxu0 %v3075
        %3506 = vmatmul.mubr.f32.gmra.mrb[0].mxu0 %v3074
        %v3507 = vpop.f32.mrb[0].mxu0
        %v3508 = vadd.f32 %v3283, %v3507
        %v3509 = vpop.f32.mrb[0].mxu0
        %3510 = vmatprep.mubr.f32.mxu0 %v3079
        %3511 = vmatmul.mubr.f32.gmra.mrb[0].mxu0 %v3078
        %v3512 = vpop.f32.mrb[0].mxu0
        %v3513 = vadd.f32 %v3288, %v3512
        %v3514 = vpop.f32.mrb[0].mxu0
        %3515 = vmatprep.mubr.f32.mxu0 %v3083
        %3516 = vmatmul.mubr.f32.gmra.mrb[0].mxu0 %v3082
        %v3517 = vpop.f32.mrb[0].mxu0
        %v3518 = vadd.f32 %v3293, %v3517
        %v3519 = vpop.f32.mrb[0].mxu0
        %3520 = vmatprep.mubr.f32.mxu0 %v3087
        %3521 = vmatmul.mubr.f32.gmra.mrb[0].mxu0 %v3086
        %v3522 = vpop.f32.mrb[0].mxu0
        %v3523 = vadd.f32 %v3298, %v3522
        %v3524 = vpop.f32.mrb[0].mxu0
        %3525 = vmatprep.mubr.f32.mxu0 %v3091
        %3526 = vmatmul.mubr.f32.gmra.mrb[0].mxu0 %v3090
        %v3527 = vpop.f32.mrb[0].mxu0
        %v3528 = vadd.f32 %v3303, %v3527
        %v3529 = vpop.f32.mrb[0].mxu0
        %3530 = vmatprep.mubr.f32.mxu0 %v3095
        %3531 = vmatmul.mubr.f32.gmra.mrb[0].mxu0 %v3094
        %v3532 = vpop.f32.mrb[0].mxu0
        %v3533 = vadd.f32 %v3308, %v3532
        %v3534 = vpop.f32.mrb[0].mxu0
        %3535 = vmatprep.mubr.f32.mxu0 %v3099
        %3536 = vmatmul.mubr.f32.gmra.mrb[0].mxu0 %v3098
        %v3537 = vpop.f32.mrb[0].mxu0
        %v3538 = vadd.f32 %v3313, %v3537
        %v3539 = vpop.f32.mrb[0].mxu0
        %3540 = vmatprep.mubr.f32.mxu0 %v3103
        %3541 = vmatmul.mubr.f32.gmra.mrb[0].mxu0 %v3102
        %v3542 = vpop.f32.mrb[0].mxu0
        %v3543 = vadd.f32 %v3318, %v3542
        %v3544 = vpop.f32.mrb[0].mxu0
        %3545 = vmatprep.mubr.f32.mxu0 %v3107
        %3546 = vmatmul.mubr.f32.gmra.mrb[0].mxu0 %v3106
        %v3547 = vpop.f32.mrb[0].mxu0
        %v3548 = vadd.f32 %v3323, %v3547
        %v3549 = vpop.f32.mrb[0].mxu0
        %3550 = vmatprep.mubr.f32.mxu0 %v3111
        %3551 = vmatmul.mubr.f32.gmra.mrb[0].mxu0 %v3110
        %v3552 = vpop.f32.mrb[0].mxu0
        %v3553 = vadd.f32 %v3328, %v3552
        %v3554 = vpop.f32.mrb[0].mxu0
        %3555 = vmatprep.mubr.f32.mxu0 %v3115
        %3556 = vmatmul.mubr.f32.gmra.mrb[0].mxu0 %v3114
        %v3557 = vpop.f32.mrb[0].mxu0
        %v3558 = vadd.f32 %v3333, %v3557
        %v3559 = vpop.f32.mrb[0].mxu0
        %3560 = vmatprep.mubr.f32.mxu0 %v3119
        %3561 = vmatmul.mubr.f32.gmra.mrb[0].mxu0 %v3118
        %v3562 = vpop.f32.mrb[0].mxu0
        %v3563 = vadd.f32 %v3338, %v3562
        %v3564 = vpop.f32.mrb[0].mxu0
        %3565 = vmatprep.mubr.f32.mxu0 %v3123
        %3566 = vmatmul.mubr.f32.gmra.mrb[0].mxu0 %v3122
        %v3567 = vpop.f32.mrb[0].mxu0
        %v3568 = vadd.f32 %v3343, %v3567
        %v3569 = vpop.f32.mrb[0].mxu0
        %3570 = vmatprep.mubr.f32.mxu0 %v3127
        %3571 = vmatmul.mubr.f32.gmra.mrb[0].mxu0 %v3126
        %v3572 = vpop.f32.mrb[0].mxu0
        %v3573 = vadd.f32 %v3348, %v3572
        %v3574 = vpop.f32.mrb[0].mxu0
        %3575 = vmatprep.mubr.f32.mxu0 %v3131
        %3576 = vmatmul.mubr.f32.gmra.mrb[0].mxu0 %v3130
        %v3577 = vpop.f32.mrb[0].mxu0
        %v3578 = vadd.f32 %v3353, %v3577
        %v3579 = vpop.f32.mrb[0].mxu0
        %3580 = vmatprep.mubr.f32.mxu0 %v3135
        %3581 = vmatmul.mubr.f32.gmra.mrb[0].mxu0 %v3134
        %v3582 = vpop.f32.mrb[0].mxu0
        %v3583 = vadd.f32 %v3358, %v3582
        %v3584 = vpop.f32.mrb[0].mxu0
        %3585 = vmatprep.mubr.f32.mxu0 %v3139
        %3586 = vmatmul.mubr.f32.gmra.mrb[0].mxu0 %v3138
        %v3587 = vpop.f32.mrb[0].mxu0
        %v3588 = vadd.f32 %v3363, %v3587
        %v3589 = vpop.f32.mrb[0].mxu0
        %3590 = vmatprep.mubr.f32.mxu0 %v3143
        %3591 = vmatmul.mubr.f32.gmra.mrb[0].mxu0 %v3142
        %v3592 = vpop.f32.mrb[0].mxu0
        %v3593 = vadd.f32 %v3368, %v3592
        %v3594 = vpop.f32.mrb[0].mxu0
        %3595 = vdwg.mxu0
        %v3596 = vsub.f32 0.0, %v3438
        %v3597 = vsub.f32 0.0, %v3443
        %v3598 = vsub.f32 0.0, %v3448
        %v3599 = vsub.f32 0.0, %v3453
        %v3600 = vsub.f32 0.0, %v3458
        %v3601 = vsub.f32 0.0, %v3463
        %v3602 = vsub.f32 0.0, %v3468
        %v3603 = vsub.f32 0.0, %v3473
        %v3604 = vsub.f32 0.0, %v3478
        %v3605 = vsub.f32 0.0, %v3483
        %v3606 = vsub.f32 0.0, %v3488
        %v3607 = vsub.f32 0.0, %v3493
        %v3608 = vsub.f32 0.0, %v3498
        %v3609 = vsub.f32 0.0, %v3503
        %v3610 = vsub.f32 0.0, %v3508
        %v3611 = vsub.f32 0.0, %v3513
        %v3612 = vsub.f32 0.0, %v3518
        %v3613 = vsub.f32 0.0, %v3523
        %v3614 = vsub.f32 0.0, %v3528
        %v3615 = vsub.f32 0.0, %v3533
        %v3616 = vsub.f32 0.0, %v3538
        %v3617 = vsub.f32 0.0, %v3543
        %v3618 = vsub.f32 0.0, %v3548
        %v3619 = vsub.f32 0.0, %v3553
        %v3620 = vsub.f32 0.0, %v3558
        %v3621 = vsub.f32 0.0, %v3563
        %v3622 = vsub.f32 0.0, %v3568
        %v3623 = vsub.f32 0.0, %v3573
        %v3624 = vsub.f32 0.0, %v3578
        %v3625 = vsub.f32 0.0, %v3583
        %v3626 = vsub.f32 0.0, %v3588
        %v3627 = vsub.f32 0.0, %v3593
        %v3628 = vmul.f32 %v3596, 1.442695
        %v3629 = vpow.pop %v3628
        %v3630 = vmul.f32 %v3597, 1.442695
        %v3631 = vpow.pop %v3630
        %v3632 = vmul.f32 %v3598, 1.442695
        %v3633 = vpow.pop %v3632
        %v3634 = vmul.f32 %v3599, 1.442695
        %v3635 = vpow.pop %v3634
        %v3636 = vmul.f32 %v3600, 1.442695
        %v3637 = vpow.pop %v3636
        %v3638 = vmul.f32 %v3601, 1.442695
        %v3639 = vpow.pop %v3638
        %v3640 = vmul.f32 %v3602, 1.442695
        %v3641 = vpow.pop %v3640
        %v3642 = vmul.f32 %v3603, 1.442695
        %v3643 = vpow.pop %v3642
        %v3644 = vmul.f32 %v3604, 1.442695
        %v3645 = vpow.pop %v3644
        %v3646 = vmul.f32 %v3605, 1.442695
        %v3647 = vpow.pop %v3646
        %v3648 = vmul.f32 %v3606, 1.442695
        %v3649 = vpow.pop %v3648
        %v3650 = vmul.f32 %v3607, 1.442695
        %v3651 = vpow.pop %v3650
        %v3652 = vmul.f32 %v3608, 1.442695
        %v3653 = vpow.pop %v3652
        %v3654 = vmul.f32 %v3609, 1.442695
        %v3655 = vpow.pop %v3654
        %v3656 = vmul.f32 %v3610, 1.442695
        %v3657 = vpow.pop %v3656
        %v3658 = vmul.f32 %v3611, 1.442695
        %v3659 = vpow.pop %v3658
        %v3660 = vmul.f32 %v3612, 1.442695
        %v3661 = vpow.pop %v3660
        %v3662 = vmul.f32 %v3613, 1.442695
        %v3663 = vpow.pop %v3662
        %v3664 = vmul.f32 %v3614, 1.442695
        %v3665 = vpow.pop %v3664
        %v3666 = vmul.f32 %v3615, 1.442695
        %v3667 = vpow.pop %v3666
        %v3668 = vmul.f32 %v3616, 1.442695
        %v3669 = vpow.pop %v3668
        %v3670 = vmul.f32 %v3617, 1.442695
        %v3671 = vpow.pop %v3670
        %v3672 = vmul.f32 %v3618, 1.442695
        %v3673 = vpow.pop %v3672
        %v3674 = vmul.f32 %v3619, 1.442695
        %v3675 = vpow.pop %v3674
        %v3676 = vmul.f32 %v3620, 1.442695
        %v3677 = vpow.pop %v3676
        %v3678 = vmul.f32 %v3621, 1.442695
        %v3679 = vpow.pop %v3678
        %v3680 = vmul.f32 %v3622, 1.442695
        %v3681 = vpow.pop %v3680
        %v3682 = vmul.f32 %v3623, 1.442695
        %v3683 = vpow.pop %v3682
        %v3684 = vmul.f32 %v3624, 1.442695
        %v3685 = vpow.pop %v3684
        %v3686 = vmul.f32 %v3625, 1.442695
        %v3687 = vpow.pop %v3686
        %v3688 = vmul.f32 %v3626, 1.442695
        %v3689 = vpow.pop %v3688
        %v3690 = vmul.f32 %v3627, 1.442695
        %v3691 = vpow.pop %v3690
        %v3692 = vadd.f32 %v3629, 1.0
        %v3693 = vadd.f32 %v3631, 1.0
        %v3694 = vadd.f32 %v3633, 1.0
        %v3695 = vadd.f32 %v3635, 1.0
        %v3696 = vadd.f32 %v3637, 1.0
        %v3697 = vadd.f32 %v3639, 1.0
        %v3698 = vadd.f32 %v3641, 1.0
        %v3699 = vadd.f32 %v3643, 1.0
        %v3700 = vadd.f32 %v3645, 1.0
        %v3701 = vadd.f32 %v3647, 1.0
        %v3702 = vadd.f32 %v3649, 1.0
        %v3703 = vadd.f32 %v3651, 1.0
        %v3704 = vadd.f32 %v3653, 1.0
        %v3705 = vadd.f32 %v3655, 1.0
        %v3706 = vadd.f32 %v3657, 1.0
        %v3707 = vadd.f32 %v3659, 1.0
        %v3708 = vadd.f32 %v3661, 1.0
        %v3709 = vadd.f32 %v3663, 1.0
        %v3710 = vadd.f32 %v3665, 1.0
        %v3711 = vadd.f32 %v3667, 1.0
        %v3712 = vadd.f32 %v3669, 1.0
        %v3713 = vadd.f32 %v3671, 1.0
        %v3714 = vadd.f32 %v3673, 1.0
        %v3715 = vadd.f32 %v3675, 1.0
        %v3716 = vadd.f32 %v3677, 1.0
        %v3717 = vadd.f32 %v3679, 1.0
        %v3718 = vadd.f32 %v3681, 1.0
        %v3719 = vadd.f32 %v3683, 1.0
        %v3720 = vadd.f32 %v3685, 1.0
        %v3721 = vadd.f32 %v3687, 1.0
        %v3722 = vadd.f32 %v3689, 1.0
        %v3723 = vadd.f32 %v3691, 1.0
        %v3724 = vrcp.pop %v3692
        %v3725 = vmul.f32 1.0, %v3724
        %v3726 = vrcp.pop %v3693
        %v3727 = vmul.f32 1.0, %v3726
        %v3728 = vrcp.pop %v3694
        %v3729 = vmul.f32 1.0, %v3728
        %v3730 = vrcp.pop %v3695
        %v3731 = vmul.f32 1.0, %v3730
        %v3732 = vrcp.pop %v3696
        %v3733 = vmul.f32 1.0, %v3732
        %v3734 = vrcp.pop %v3697
        %v3735 = vmul.f32 1.0, %v3734
        %v3736 = vrcp.pop %v3698
        %v3737 = vmul.f32 1.0, %v3736
        %v3738 = vrcp.pop %v3699
        %v3739 = vmul.f32 1.0, %v3738
        %v3740 = vrcp.pop %v3700
        %v3741 = vmul.f32 1.0, %v3740
        %v3742 = vrcp.pop %v3701
        %v3743 = vmul.f32 1.0, %v3742
        %v3744 = vrcp.pop %v3702
        %v3745 = vmul.f32 1.0, %v3744
        %v3746 = vrcp.pop %v3703
        %v3747 = vmul.f32 1.0, %v3746
        %v3748 = vrcp.pop %v3704
        %v3749 = vmul.f32 1.0, %v3748
        %v3750 = vrcp.pop %v3705
        %v3751 = vmul.f32 1.0, %v3750
        %v3752 = vrcp.pop %v3706
        %v3753 = vmul.f32 1.0, %v3752
        %v3754 = vrcp.pop %v3707
        %v3755 = vmul.f32 1.0, %v3754
        %v3756 = vrcp.pop %v3708
        %v3757 = vmul.f32 1.0, %v3756
        %v3758 = vrcp.pop %v3709
        %v3759 = vmul.f32 1.0, %v3758
        %v3760 = vrcp.pop %v3710
        %v3761 = vmul.f32 1.0, %v3760
        %v3762 = vrcp.pop %v3711
        %v3763 = vmul.f32 1.0, %v3762
        %v3764 = vrcp.pop %v3712
        %v3765 = vmul.f32 1.0, %v3764
        %v3766 = vrcp.pop %v3713
        %v3767 = vmul.f32 1.0, %v3766
        %v3768 = vrcp.pop %v3714
        %v3769 = vmul.f32 1.0, %v3768
        %v3770 = vrcp.pop %v3715
        %v3771 = vmul.f32 1.0, %v3770
        %v3772 = vrcp.pop %v3716
        %v3773 = vmul.f32 1.0, %v3772
        %v3774 = vrcp.pop %v3717
        %v3775 = vmul.f32 1.0, %v3774
        %v3776 = vrcp.pop %v3718
        %v3777 = vmul.f32 1.0, %v3776
        %v3778 = vrcp.pop %v3719
        %v3779 = vmul.f32 1.0, %v3778
        %v3780 = vrcp.pop %v3720
        %v3781 = vmul.f32 1.0, %v3780
        %v3782 = vrcp.pop %v3721
        %v3783 = vmul.f32 1.0, %v3782
        %v3784 = vrcp.pop %v3722
        %v3785 = vmul.f32 1.0, %v3784
        %v3786 = vrcp.pop %v3723
        %v3787 = vmul.f32 1.0, %v3786
        %3789 = vset.pattern.permute.xlu0 0
        %3790 = vperm.xlu0 %3789, %v3725
        %v3791 = vpop.permute.xlu0 %3790
        %3794 = vset.pattern.permute.xlu0 0
        %3795 = vperm.xlu0 %3794, %v3727
        %v3796 = vpop.permute.xlu0 %3795
        %3799 = vset.pattern.permute.xlu0 0
        %3800 = vperm.xlu0 %3799, %v3729
        %v3801 = vpop.permute.xlu0 %3800
        %3804 = vset.pattern.permute.xlu0 0
        %3805 = vperm.xlu0 %3804, %v3731
        %v3806 = vpop.permute.xlu0 %3805
        %3809 = vset.pattern.permute.xlu0 0
        %3810 = vperm.xlu0 %3809, %v3733
        %v3811 = vpop.permute.xlu0 %3810
        %3814 = vset.pattern.permute.xlu0 0
        %3815 = vperm.xlu0 %3814, %v3735
        %v3816 = vpop.permute.xlu0 %3815
        %3819 = vset.pattern.permute.xlu0 0
        %3820 = vperm.xlu0 %3819, %v3737
        %v3821 = vpop.permute.xlu0 %3820
        %3824 = vset.pattern.permute.xlu0 0
        %3825 = vperm.xlu0 %3824, %v3739
        %v3826 = vpop.permute.xlu0 %3825
        %3829 = vset.pattern.permute.xlu0 0
        %3830 = vperm.xlu0 %3829, %v3741
        %v3831 = vpop.permute.xlu0 %3830
        %3834 = vset.pattern.permute.xlu0 0
        %3835 = vperm.xlu0 %3834, %v3743
        %v3836 = vpop.permute.xlu0 %3835
        %3839 = vset.pattern.permute.xlu0 0
        %3840 = vperm.xlu0 %3839, %v3745
        %v3841 = vpop.permute.xlu0 %3840
        %3844 = vset.pattern.permute.xlu0 0
        %3845 = vperm.xlu0 %3844, %v3747
        %v3846 = vpop.permute.xlu0 %3845
        %3849 = vset.pattern.permute.xlu0 0
        %3850 = vperm.xlu0 %3849, %v3749
        %v3851 = vpop.permute.xlu0 %3850
        %3854 = vset.pattern.permute.xlu0 0
        %3855 = vperm.xlu0 %3854, %v3751
        %v3856 = vpop.permute.xlu0 %3855
        %3859 = vset.pattern.permute.xlu0 0
        %3860 = vperm.xlu0 %3859, %v3753
        %v3861 = vpop.permute.xlu0 %3860
        %3864 = vset.pattern.permute.xlu0 0
        %3865 = vperm.xlu0 %3864, %v3755
        %v3866 = vpop.permute.xlu0 %3865
        %3869 = vset.pattern.permute.xlu0 0
        %3870 = vperm.xlu0 %3869, %v3757
        %v3871 = vpop.permute.xlu0 %3870
        %3874 = vset.pattern.permute.xlu0 0
        %3875 = vperm.xlu0 %3874, %v3759
        %v3876 = vpop.permute.xlu0 %3875
        %3879 = vset.pattern.permute.xlu0 0
        %3880 = vperm.xlu0 %3879, %v3761
        %v3881 = vpop.permute.xlu0 %3880
        %3884 = vset.pattern.permute.xlu0 0
        %3885 = vperm.xlu0 %3884, %v3763
        %v3886 = vpop.permute.xlu0 %3885
        %3889 = vset.pattern.permute.xlu0 0
        %3890 = vperm.xlu0 %3889, %v3765
        %v3891 = vpop.permute.xlu0 %3890
        %3894 = vset.pattern.permute.xlu0 0
        %3895 = vperm.xlu0 %3894, %v3767
        %v3896 = vpop.permute.xlu0 %3895
        %3899 = vset.pattern.permute.xlu0 0
        %3900 = vperm.xlu0 %3899, %v3769
        %v3901 = vpop.permute.xlu0 %3900
        %3904 = vset.pattern.permute.xlu0 0
        %3905 = vperm.xlu0 %3904, %v3771
        %v3906 = vpop.permute.xlu0 %3905
        %3909 = vset.pattern.permute.xlu0 0
        %3910 = vperm.xlu0 %3909, %v3773
        %v3911 = vpop.permute.xlu0 %3910
        %3914 = vset.pattern.permute.xlu0 0
        %3915 = vperm.xlu0 %3914, %v3775
        %v3916 = vpop.permute.xlu0 %3915
        %3919 = vset.pattern.permute.xlu0 0
        %3920 = vperm.xlu0 %3919, %v3777
        %v3921 = vpop.permute.xlu0 %3920
        %3924 = vset.pattern.permute.xlu0 0
        %3925 = vperm.xlu0 %3924, %v3779
        %v3926 = vpop.permute.xlu0 %3925
        %3929 = vset.pattern.permute.xlu0 0
        %3930 = vperm.xlu0 %3929, %v3781
        %v3931 = vpop.permute.xlu0 %3930
        %3934 = vset.pattern.permute.xlu0 0
        %3935 = vperm.xlu0 %3934, %v3783
        %v3936 = vpop.permute.xlu0 %3935
        %3939 = vset.pattern.permute.xlu0 0
        %3940 = vperm.xlu0 %3939, %v3785
        %v3941 = vpop.permute.xlu0 %3940
        %3944 = vset.pattern.permute.xlu0 0
        %3945 = vperm.xlu0 %3944, %v3787
        %v3946 = vpop.permute.xlu0 %3945
        %v3948 = vmul.f32 %v952, %v3791
        %v3949 = vmul.f32 %v953, %v3796
        %v3950 = vmul.f32 %v954, %v3801
        %v3951 = vmul.f32 %v955, %v3806
        %v3952 = vmul.f32 %v956, %v3811
        %v3953 = vmul.f32 %v957, %v3816
        %v3954 = vmul.f32 %v958, %v3821
        %v3955 = vmul.f32 %v959, %v3826
        %v3956 = vmul.f32 %v960, %v3831
        %v3957 = vmul.f32 %v961, %v3836
        %v3958 = vmul.f32 %v962, %v3841
        %v3959 = vmul.f32 %v963, %v3846
        %v3960 = vmul.f32 %v964, %v3851
        %v3961 = vmul.f32 %v965, %v3856
        %v3962 = vmul.f32 %v966, %v3861
        %v3963 = vmul.f32 %v967, %v3866
        %v3964 = vmul.f32 %v968, %v3871
        %v3965 = vmul.f32 %v969, %v3876
        %v3966 = vmul.f32 %v970, %v3881
        %v3967 = vmul.f32 %v971, %v3886
        %v3968 = vmul.f32 %v972, %v3891
        %v3969 = vmul.f32 %v973, %v3896
        %v3970 = vmul.f32 %v974, %v3901
        %v3971 = vmul.f32 %v975, %v3906
        %v3972 = vmul.f32 %v976, %v3911
        %v3973 = vmul.f32 %v977, %v3916
        %v3974 = vmul.f32 %v978, %v3921
        %v3975 = vmul.f32 %v979, %v3926
        %v3976 = vmul.f32 %v980, %v3931
        %v3977 = vmul.f32 %v981, %v3936
        %v3978 = vmul.f32 %v982, %v3941
        %v3979 = vmul.f32 %v983, %v3946
        %3980 = vst [vmem:[%s313] sm:$0xff] %v3948
        %3981 = vst [vmem:[%s313 + $0x8] sm:$0xff] %v3949
        %3982 = vst [vmem:[%s313 + $0x10] sm:$0xff] %v3950
        %3983 = vst [vmem:[%s313 + $0x18] sm:$0xff] %v3951
        %3984 = vst [vmem:[%s313 + $0x20] sm:$0xff] %v3952
        %3985 = vst [vmem:[%s313 + $0x28] sm:$0xff] %v3953
        %3986 = vst [vmem:[%s313 + $0x30] sm:$0xff] %v3954
        %3987 = vst [vmem:[%s313 + $0x38] sm:$0xff] %v3955
        %3988 = vst [vmem:[%s313 + $0x40] sm:$0xff] %v3956
        %3989 = vst [vmem:[%s313 + $0x48] sm:$0xff] %v3957
        %3990 = vst [vmem:[%s313 + $0x50] sm:$0xff] %v3958
        %3991 = vst [vmem:[%s313 + $0x58] sm:$0xff] %v3959
        %3992 = vst [vmem:[%s313 + $0x60] sm:$0xff] %v3960
        %3993 = vst [vmem:[%s313 + $0x68] sm:$0xff] %v3961
        %3994 = vst [vmem:[%s313 + $0x70] sm:$0xff] %v3962
        %3995 = vst [vmem:[%s313 + $0x78] sm:$0xff] %v3963
        %3996 = vst [vmem:[%s313 + $0x80] sm:$0xff] %v3964
        %3997 = vst [vmem:[%s313 + $0x88] sm:$0xff] %v3965
        %3998 = vst [vmem:[%s313 + $0x90] sm:$0xff] %v3966
        %3999 = vst [vmem:[%s313 + $0x98] sm:$0xff] %v3967
        %4000 = vst [vmem:[%s313 + $0xa0] sm:$0xff] %v3968
        %4001 = vst [vmem:[%s313 + $0xa8] sm:$0xff] %v3969
        %4002 = vst [vmem:[%s313 + $0xb0] sm:$0xff] %v3970
        %4003 = vst [vmem:[%s313 + $0xb8] sm:$0xff] %v3971
        %4004 = vst [vmem:[%s313 + $0xc0] sm:$0xff] %v3972
        %4005 = vst [vmem:[%s313 + $0xc8] sm:$0xff] %v3973
        %4006 = vst [vmem:[%s313 + $0xd0] sm:$0xff] %v3974
        %4007 = vst [vmem:[%s313 + $0xd8] sm:$0xff] %v3975
        %4008 = vst [vmem:[%s313 + $0xe0] sm:$0xff] %v3976
        %4009 = vst [vmem:[%s313 + $0xe8] sm:$0xff] %v3977
        %4010 = vst [vmem:[%s313 + $0xf0] sm:$0xff] %v3978
        %4011 = vst [vmem:[%s313 + $0xf8] sm:$0xff] %v3979
        %4012 = vset.pattern.permute.xlu0 1
        %4013 = vperm.xlu0 %4012, %v3725
        %v4014 = vpop.permute.xlu0 %4013
        %4016 = vset.pattern.permute.xlu0 1
        %4017 = vperm.xlu0 %4016, %v3727
        %v4018 = vpop.permute.xlu0 %4017
        %4020 = vset.pattern.permute.xlu0 1
        %4021 = vperm.xlu0 %4020, %v3729
        %v4022 = vpop.permute.xlu0 %4021
        %4024 = vset.pattern.permute.xlu0 1
        %4025 = vperm.xlu0 %4024, %v3731
        %v4026 = vpop.permute.xlu0 %4025
        %4028 = vset.pattern.permute.xlu0 1
        %4029 = vperm.xlu0 %4028, %v3733
        %v4030 = vpop.permute.xlu0 %4029
        %4032 = vset.pattern.permute.xlu0 1
        %4033 = vperm.xlu0 %4032, %v3735
        %v4034 = vpop.permute.xlu0 %4033
        %4036 = vset.pattern.permute.xlu0 1
        %4037 = vperm.xlu0 %4036, %v3737
        %v4038 = vpop.permute.xlu0 %4037
        %4040 = vset.pattern.permute.xlu0 1
        %4041 = vperm.xlu0 %4040, %v3739
        %v4042 = vpop.permute.xlu0 %4041
        %4044 = vset.pattern.permute.xlu0 1
        %4045 = vperm.xlu0 %4044, %v3741
        %v4046 = vpop.permute.xlu0 %4045
        %4048 = vset.pattern.permute.xlu0 1
        %4049 = vperm.xlu0 %4048, %v3743
        %v4050 = vpop.permute.xlu0 %4049
        %4052 = vset.pattern.permute.xlu0 1
        %4053 = vperm.xlu0 %4052, %v3745
        %v4054 = vpop.permute.xlu0 %4053
        %4056 = vset.pattern.permute.xlu0 1
        %4057 = vperm.xlu0 %4056, %v3747
        %v4058 = vpop.permute.xlu0 %4057
        %4060 = vset.pattern.permute.xlu0 1
        %4061 = vperm.xlu0 %4060, %v3749
        %v4062 = vpop.permute.xlu0 %4061
        %4064 = vset.pattern.permute.xlu0 1
        %4065 = vperm.xlu0 %4064, %v3751
        %v4066 = vpop.permute.xlu0 %4065
        %4068 = vset.pattern.permute.xlu0 1
        %4069 = vperm.xlu0 %4068, %v3753
        %v4070 = vpop.permute.xlu0 %4069
        %4072 = vset.pattern.permute.xlu0 1
        %4073 = vperm.xlu0 %4072, %v3755
        %v4074 = vpop.permute.xlu0 %4073
        %4076 = vset.pattern.permute.xlu0 1
        %4077 = vperm.xlu0 %4076, %v3757
        %v4078 = vpop.permute.xlu0 %4077
        %4080 = vset.pattern.permute.xlu0 1
        %4081 = vperm.xlu0 %4080, %v3759
        %v4082 = vpop.permute.xlu0 %4081
        %4084 = vset.pattern.permute.xlu0 1
        %4085 = vperm.xlu0 %4084, %v3761
        %v4086 = vpop.permute.xlu0 %4085
        %4088 = vset.pattern.permute.xlu0 1
        %4089 = vperm.xlu0 %4088, %v3763
        %v4090 = vpop.permute.xlu0 %4089
        %4092 = vset.pattern.permute.xlu0 1
        %4093 = vperm.xlu0 %4092, %v3765
        %v4094 = vpop.permute.xlu0 %4093
        %4096 = vset.pattern.permute.xlu0 1
        %4097 = vperm.xlu0 %4096, %v3767
        %v4098 = vpop.permute.xlu0 %4097
        %4100 = vset.pattern.permute.xlu0 1
        %4101 = vperm.xlu0 %4100, %v3769
        %v4102 = vpop.permute.xlu0 %4101
        %4104 = vset.pattern.permute.xlu0 1
        %4105 = vperm.xlu0 %4104, %v3771
        %v4106 = vpop.permute.xlu0 %4105
        %4108 = vset.pattern.permute.xlu0 1
        %4109 = vperm.xlu0 %4108, %v3773
        %v4110 = vpop.permute.xlu0 %4109
        %4112 = vset.pattern.permute.xlu0 1
        %4113 = vperm.xlu0 %4112, %v3775
        %v4114 = vpop.permute.xlu0 %4113
        %4116 = vset.pattern.permute.xlu0 1
        %4117 = vperm.xlu0 %4116, %v3777
        %v4118 = vpop.permute.xlu0 %4117
        %4120 = vset.pattern.permute.xlu0 1
        %4121 = vperm.xlu0 %4120, %v3779
        %v4122 = vpop.permute.xlu0 %4121
        %4124 = vset.pattern.permute.xlu0 1
        %4125 = vperm.xlu0 %4124, %v3781
        %v4126 = vpop.permute.xlu0 %4125
        %4128 = vset.pattern.permute.xlu0 1
        %4129 = vperm.xlu0 %4128, %v3783
        %v4130 = vpop.permute.xlu0 %4129
        %4132 = vset.pattern.permute.xlu0 1
        %4133 = vperm.xlu0 %4132, %v3785
        %v4134 = vpop.permute.xlu0 %4133
        %4136 = vset.pattern.permute.xlu0 1
        %4137 = vperm.xlu0 %4136, %v3787
        %v4138 = vpop.permute.xlu0 %4137
        %v4140 = vmul.f32 %v988, %v4014
        %v4141 = vmul.f32 %v989, %v4018
        %v4142 = vmul.f32 %v990, %v4022
        %v4143 = vmul.f32 %v991, %v4026
        %v4144 = vmul.f32 %v992, %v4030
        %v4145 = vmul.f32 %v993, %v4034
        %v4146 = vmul.f32 %v994, %v4038
        %v4147 = vmul.f32 %v995, %v4042
        %v4148 = vmul.f32 %v996, %v4046
        %v4149 = vmul.f32 %v997, %v4050
        %v4150 = vmul.f32 %v998, %v4054
        %v4151 = vmul.f32 %v999, %v4058
        %v4152 = vmul.f32 %v1000, %v4062
        %v4153 = vmul.f32 %v1001, %v4066
        %v4154 = vmul.f32 %v1002, %v4070
        %v4155 = vmul.f32 %v1003, %v4074
        %v4156 = vmul.f32 %v1004, %v4078
        %v4157 = vmul.f32 %v1005, %v4082
        %v4158 = vmul.f32 %v1006, %v4086
        %v4159 = vmul.f32 %v1007, %v4090
        %v4160 = vmul.f32 %v1008, %v4094
        %v4161 = vmul.f32 %v1009, %v4098
        %v4162 = vmul.f32 %v1010, %v4102
        %v4163 = vmul.f32 %v1011, %v4106
        %v4164 = vmul.f32 %v1012, %v4110
        %v4165 = vmul.f32 %v1013, %v4114
        %v4166 = vmul.f32 %v1014, %v4118
        %v4167 = vmul.f32 %v1015, %v4122
        %v4168 = vmul.f32 %v1016, %v4126
        %v4169 = vmul.f32 %v1017, %v4130
        %v4170 = vmul.f32 %v1018, %v4134
        %v4171 = vmul.f32 %v1019, %v4138
        %s4172 = scalar_lea.vmem %s313, 256 [#allocation8]
        %4173 = vst [vmem:[%s4172] sm:$0xff] %v4140
        %4174 = vst [vmem:[%s4172 + $0x8] sm:$0xff] %v4141
        %4175 = vst [vmem:[%s4172 + $0x10] sm:$0xff] %v4142
        %4176 = vst [vmem:[%s4172 + $0x18] sm:$0xff] %v4143
        %4177 = vst [vmem:[%s4172 + $0x20] sm:$0xff] %v4144
        %4178 = vst [vmem:[%s4172 + $0x28] sm:$0xff] %v4145
        %4179 = vst [vmem:[%s4172 + $0x30] sm:$0xff] %v4146
        %4180 = vst [vmem:[%s4172 + $0x38] sm:$0xff] %v4147
        %4181 = vst [vmem:[%s4172 + $0x40] sm:$0xff] %v4148
        %4182 = vst [vmem:[%s4172 + $0x48] sm:$0xff] %v4149
        %4183 = vst [vmem:[%s4172 + $0x50] sm:$0xff] %v4150
        %4184 = vst [vmem:[%s4172 + $0x58] sm:$0xff] %v4151
        %4185 = vst [vmem:[%s4172 + $0x60] sm:$0xff] %v4152
        %4186 = vst [vmem:[%s4172 + $0x68] sm:$0xff] %v4153
        %4187 = vst [vmem:[%s4172 + $0x70] sm:$0xff] %v4154
        %4188 = vst [vmem:[%s4172 + $0x78] sm:$0xff] %v4155
        %4189 = vst [vmem:[%s4172 + $0x80] sm:$0xff] %v4156
        %4190 = vst [vmem:[%s4172 + $0x88] sm:$0xff] %v4157
        %4191 = vst [vmem:[%s4172 + $0x90] sm:$0xff] %v4158
        %4192 = vst [vmem:[%s4172 + $0x98] sm:$0xff] %v4159
        %4193 = vst [vmem:[%s4172 + $0xa0] sm:$0xff] %v4160
        %4194 = vst [vmem:[%s4172 + $0xa8] sm:$0xff] %v4161
        %4195 = vst [vmem:[%s4172 + $0xb0] sm:$0xff] %v4162
        %4196 = vst [vmem:[%s4172 + $0xb8] sm:$0xff] %v4163
        %4197 = vst [vmem:[%s4172 + $0xc0] sm:$0xff] %v4164
        %4198 = vst [vmem:[%s4172 + $0xc8] sm:$0xff] %v4165
        %4199 = vst [vmem:[%s4172 + $0xd0] sm:$0xff] %v4166
        %4200 = vst [vmem:[%s4172 + $0xd8] sm:$0xff] %v4167
        %4201 = vst [vmem:[%s4172 + $0xe0] sm:$0xff] %v4168
        %4202 = vst [vmem:[%s4172 + $0xe8] sm:$0xff] %v4169
        %4203 = vst [vmem:[%s4172 + $0xf0] sm:$0xff] %v4170
        %4204 = vst [vmem:[%s4172 + $0xf8] sm:$0xff] %v4171
        %4205 = vset.pattern.permute.xlu0 2
        %4206 = vperm.xlu0 %4205, %v3725
        %v4207 = vpop.permute.xlu0 %4206
        %4209 = vset.pattern.permute.xlu0 2
        %4210 = vperm.xlu0 %4209, %v3727
        %v4211 = vpop.permute.xlu0 %4210
        %4213 = vset.pattern.permute.xlu0 2
        %4214 = vperm.xlu0 %4213, %v3729
        %v4215 = vpop.permute.xlu0 %4214
        %4217 = vset.pattern.permute.xlu0 2
        %4218 = vperm.xlu0 %4217, %v3731
        %v4219 = vpop.permute.xlu0 %4218
        %4221 = vset.pattern.permute.xlu0 2
        %4222 = vperm.xlu0 %4221, %v3733
        %v4223 = vpop.permute.xlu0 %4222
        %4225 = vset.pattern.permute.xlu0 2
        %4226 = vperm.xlu0 %4225, %v3735
        %v4227 = vpop.permute.xlu0 %4226
        %4229 = vset.pattern.permute.xlu0 2
        %4230 = vperm.xlu0 %4229, %v3737
        %v4231 = vpop.permute.xlu0 %4230
        %4233 = vset.pattern.permute.xlu0 2
        %4234 = vperm.xlu0 %4233, %v3739
        %v4235 = vpop.permute.xlu0 %4234
        %4237 = vset.pattern.permute.xlu0 2
        %4238 = vperm.xlu0 %4237, %v3741
        %v4239 = vpop.permute.xlu0 %4238
        %4241 = vset.pattern.permute.xlu0 2
        %4242 = vperm.xlu0 %4241, %v3743
        %v4243 = vpop.permute.xlu0 %4242
        %4245 = vset.pattern.permute.xlu0 2
        %4246 = vperm.xlu0 %4245, %v3745
        %v4247 = vpop.permute.xlu0 %4246
        %4249 = vset.pattern.permute.xlu0 2
        %4250 = vperm.xlu0 %4249, %v3747
        %v4251 = vpop.permute.xlu0 %4250
        %4253 = vset.pattern.permute.xlu0 2
        %4254 = vperm.xlu0 %4253, %v3749
        %v4255 = vpop.permute.xlu0 %4254
        %4257 = vset.pattern.permute.xlu0 2
        %4258 = vperm.xlu0 %4257, %v3751
        %v4259 = vpop.permute.xlu0 %4258
        %4261 = vset.pattern.permute.xlu0 2
        %4262 = vperm.xlu0 %4261, %v3753
        %v4263 = vpop.permute.xlu0 %4262
        %4265 = vset.pattern.permute.xlu0 2
        %4266 = vperm.xlu0 %4265, %v3755
        %v4267 = vpop.permute.xlu0 %4266
        %4269 = vset.pattern.permute.xlu0 2
        %4270 = vperm.xlu0 %4269, %v3757
        %v4271 = vpop.permute.xlu0 %4270
        %4273 = vset.pattern.permute.xlu0 2
        %4274 = vperm.xlu0 %4273, %v3759
        %v4275 = vpop.permute.xlu0 %4274
        %4277 = vset.pattern.permute.xlu0 2
        %4278 = vperm.xlu0 %4277, %v3761
        %v4279 = vpop.permute.xlu0 %4278
        %4281 = vset.pattern.permute.xlu0 2
        %4282 = vperm.xlu0 %4281, %v3763
        %v4283 = vpop.permute.xlu0 %4282
        %4285 = vset.pattern.permute.xlu0 2
        %4286 = vperm.xlu0 %4285, %v3765
        %v4287 = vpop.permute.xlu0 %4286
        %4289 = vset.pattern.permute.xlu0 2
        %4290 = vperm.xlu0 %4289, %v3767
        %v4291 = vpop.permute.xlu0 %4290
        %4293 = vset.pattern.permute.xlu0 2
        %4294 = vperm.xlu0 %4293, %v3769
        %v4295 = vpop.permute.xlu0 %4294
        %4297 = vset.pattern.permute.xlu0 2
        %4298 = vperm.xlu0 %4297, %v3771
        %v4299 = vpop.permute.xlu0 %4298
        %4301 = vset.pattern.permute.xlu0 2
        %4302 = vperm.xlu0 %4301, %v3773
        %v4303 = vpop.permute.xlu0 %4302
        %4305 = vset.pattern.permute.xlu0 2
        %4306 = vperm.xlu0 %4305, %v3775
        %v4307 = vpop.permute.xlu0 %4306
        %4309 = vset.pattern.permute.xlu0 2
        %4310 = vperm.xlu0 %4309, %v3777
        %v4311 = vpop.permute.xlu0 %4310
        %4313 = vset.pattern.permute.xlu0 2
        %4314 = vperm.xlu0 %4313, %v3779
        %v4315 = vpop.permute.xlu0 %4314
        %4317 = vset.pattern.permute.xlu0 2
        %4318 = vperm.xlu0 %4317, %v3781
        %v4319 = vpop.permute.xlu0 %4318
        %4321 = vset.pattern.permute.xlu0 2
        %4322 = vperm.xlu0 %4321, %v3783
        %v4323 = vpop.permute.xlu0 %4322
        %4325 = vset.pattern.permute.xlu0 2
        %4326 = vperm.xlu0 %4325, %v3785
        %v4327 = vpop.permute.xlu0 %4326
        %4329 = vset.pattern.permute.xlu0 2
        %4330 = vperm.xlu0 %4329, %v3787
        %v4331 = vpop.permute.xlu0 %4330
        %v4333 = vmul.f32 %v1024, %v4207
        %v4334 = vmul.f32 %v1025, %v4211
        %v4335 = vmul.f32 %v1026, %v4215
        %v4336 = vmul.f32 %v1027, %v4219
        %v4337 = vmul.f32 %v1028, %v4223
        %v4338 = vmul.f32 %v1029, %v4227
        %v4339 = vmul.f32 %v1030, %v4231
        %v4340 = vmul.f32 %v1031, %v4235
        %v4341 = vmul.f32 %v1032, %v4239
        %v4342 = vmul.f32 %v1033, %v4243
        %v4343 = vmul.f32 %v1034, %v4247
        %v4344 = vmul.f32 %v1035, %v4251
        %v4345 = vmul.f32 %v1036, %v4255
        %v4346 = vmul.f32 %v1037, %v4259
        %v4347 = vmul.f32 %v1038, %v4263
        %v4348 = vmul.f32 %v1039, %v4267
        %v4349 = vmul.f32 %v1040, %v4271
        %v4350 = vmul.f32 %v1041, %v4275
        %v4351 = vmul.f32 %v1042, %v4279
        %v4352 = vmul.f32 %v1043, %v4283
        %v4353 = vmul.f32 %v1044, %v4287
        %v4354 = vmul.f32 %v1045, %v4291
        %v4355 = vmul.f32 %v1046, %v4295
        %v4356 = vmul.f32 %v1047, %v4299
        %v4357 = vmul.f32 %v1048, %v4303
        %v4358 = vmul.f32 %v1049, %v4307
        %v4359 = vmul.f32 %v1050, %v4311
        %v4360 = vmul.f32 %v1051, %v4315
        %v4361 = vmul.f32 %v1052, %v4319
        %v4362 = vmul.f32 %v1053, %v4323
        %v4363 = vmul.f32 %v1054, %v4327
        %v4364 = vmul.f32 %v1055, %v4331
        %s4365 = scalar_lea.vmem %s313, 512 [#allocation8]
        %4366 = vst [vmem:[%s4365] sm:$0xff] %v4333
        %4367 = vst [vmem:[%s4365 + $0x8] sm:$0xff] %v4334
        %4368 = vst [vmem:[%s4365 + $0x10] sm:$0xff] %v4335
        %4369 = vst [vmem:[%s4365 + $0x18] sm:$0xff] %v4336
        %4370 = vst [vmem:[%s4365 + $0x20] sm:$0xff] %v4337
        %4371 = vst [vmem:[%s4365 + $0x28] sm:$0xff] %v4338
        %4372 = vst [vmem:[%s4365 + $0x30] sm:$0xff] %v4339
        %4373 = vst [vmem:[%s4365 + $0x38] sm:$0xff] %v4340
        %4374 = vst [vmem:[%s4365 + $0x40] sm:$0xff] %v4341
        %4375 = vst [vmem:[%s4365 + $0x48] sm:$0xff] %v4342
        %4376 = vst [vmem:[%s4365 + $0x50] sm:$0xff] %v4343
        %4377 = vst [vmem:[%s4365 + $0x58] sm:$0xff] %v4344
        %4378 = vst [vmem:[%s4365 + $0x60] sm:$0xff] %v4345
        %4379 = vst [vmem:[%s4365 + $0x68] sm:$0xff] %v4346
        %4380 = vst [vmem:[%s4365 + $0x70] sm:$0xff] %v4347
        %4381 = vst [vmem:[%s4365 + $0x78] sm:$0xff] %v4348
        %4382 = vst [vmem:[%s4365 + $0x80] sm:$0xff] %v4349
        %4383 = vst [vmem:[%s4365 + $0x88] sm:$0xff] %v4350
        %4384 = vst [vmem:[%s4365 + $0x90] sm:$0xff] %v4351
        %4385 = vst [vmem:[%s4365 + $0x98] sm:$0xff] %v4352
        %4386 = vst [vmem:[%s4365 + $0xa0] sm:$0xff] %v4353
        %4387 = vst [vmem:[%s4365 + $0xa8] sm:$0xff] %v4354
        %4388 = vst [vmem:[%s4365 + $0xb0] sm:$0xff] %v4355
        %4389 = vst [vmem:[%s4365 + $0xb8] sm:$0xff] %v4356
        %4390 = vst [vmem:[%s4365 + $0xc0] sm:$0xff] %v4357
        %4391 = vst [vmem:[%s4365 + $0xc8] sm:$0xff] %v4358
        %4392 = vst [vmem:[%s4365 + $0xd0] sm:$0xff] %v4359
        %4393 = vst [vmem:[%s4365 + $0xd8] sm:$0xff] %v4360
        %4394 = vst [vmem:[%s4365 + $0xe0] sm:$0xff] %v4361
        %4395 = vst [vmem:[%s4365 + $0xe8] sm:$0xff] %v4362
        %4396 = vst [vmem:[%s4365 + $0xf0] sm:$0xff] %v4363
        %4397 = vst [vmem:[%s4365 + $0xf8] sm:$0xff] %v4364
        %4398 = vset.pattern.permute.xlu0 3
        %4399 = vperm.xlu0 %4398, %v3725
        %v4400 = vpop.permute.xlu0 %4399
        %4402 = vset.pattern.permute.xlu0 3
        %4403 = vperm.xlu0 %4402, %v3727
        %v4404 = vpop.permute.xlu0 %4403
        %4406 = vset.pattern.permute.xlu0 3
        %4407 = vperm.xlu0 %4406, %v3729
        %v4408 = vpop.permute.xlu0 %4407
        %4410 = vset.pattern.permute.xlu0 3
        %4411 = vperm.xlu0 %4410, %v3731
        %v4412 = vpop.permute.xlu0 %4411
        %4414 = vset.pattern.permute.xlu0 3
        %4415 = vperm.xlu0 %4414, %v3733
        %v4416 = vpop.permute.xlu0 %4415
        %4418 = vset.pattern.permute.xlu0 3
        %4419 = vperm.xlu0 %4418, %v3735
        %v4420 = vpop.permute.xlu0 %4419
        %4422 = vset.pattern.permute.xlu0 3
        %4423 = vperm.xlu0 %4422, %v3737
        %v4424 = vpop.permute.xlu0 %4423
        %4426 = vset.pattern.permute.xlu0 3
        %4427 = vperm.xlu0 %4426, %v3739
        %v4428 = vpop.permute.xlu0 %4427
        %4430 = vset.pattern.permute.xlu0 3
        %4431 = vperm.xlu0 %4430, %v3741
        %v4432 = vpop.permute.xlu0 %4431
        %4434 = vset.pattern.permute.xlu0 3
        %4435 = vperm.xlu0 %4434, %v3743
        %v4436 = vpop.permute.xlu0 %4435
        %4438 = vset.pattern.permute.xlu0 3
        %4439 = vperm.xlu0 %4438, %v3745
        %v4440 = vpop.permute.xlu0 %4439
        %4442 = vset.pattern.permute.xlu0 3
        %4443 = vperm.xlu0 %4442, %v3747
        %v4444 = vpop.permute.xlu0 %4443
        %4446 = vset.pattern.permute.xlu0 3
        %4447 = vperm.xlu0 %4446, %v3749
        %v4448 = vpop.permute.xlu0 %4447
        %4450 = vset.pattern.permute.xlu0 3
        %4451 = vperm.xlu0 %4450, %v3751
        %v4452 = vpop.permute.xlu0 %4451
        %4454 = vset.pattern.permute.xlu0 3
        %4455 = vperm.xlu0 %4454, %v3753
        %v4456 = vpop.permute.xlu0 %4455
        %4458 = vset.pattern.permute.xlu0 3
        %4459 = vperm.xlu0 %4458, %v3755
        %v4460 = vpop.permute.xlu0 %4459
        %4462 = vset.pattern.permute.xlu0 3
        %4463 = vperm.xlu0 %4462, %v3757
        %v4464 = vpop.permute.xlu0 %4463
        %4466 = vset.pattern.permute.xlu0 3
        %4467 = vperm.xlu0 %4466, %v3759
        %v4468 = vpop.permute.xlu0 %4467
        %4470 = vset.pattern.permute.xlu0 3
        %4471 = vperm.xlu0 %4470, %v3761
        %v4472 = vpop.permute.xlu0 %4471
        %4474 = vset.pattern.permute.xlu0 3
        %4475 = vperm.xlu0 %4474, %v3763
        %v4476 = vpop.permute.xlu0 %4475
        %4478 = vset.pattern.permute.xlu0 3
        %4479 = vperm.xlu0 %4478, %v3765
        %v4480 = vpop.permute.xlu0 %4479
        %4482 = vset.pattern.permute.xlu0 3
        %4483 = vperm.xlu0 %4482, %v3767
        %v4484 = vpop.permute.xlu0 %4483
        %4486 = vset.pattern.permute.xlu0 3
        %4487 = vperm.xlu0 %4486, %v3769
        %v4488 = vpop.permute.xlu0 %4487
        %4490 = vset.pattern.permute.xlu0 3
        %4491 = vperm.xlu0 %4490, %v3771
        %v4492 = vpop.permute.xlu0 %4491
        %4494 = vset.pattern.permute.xlu0 3
        %4495 = vperm.xlu0 %4494, %v3773
        %v4496 = vpop.permute.xlu0 %4495
        %4498 = vset.pattern.permute.xlu0 3
        %4499 = vperm.xlu0 %4498, %v3775
        %v4500 = vpop.permute.xlu0 %4499
        %4502 = vset.pattern.permute.xlu0 3
        %4503 = vperm.xlu0 %4502, %v3777
        %v4504 = vpop.permute.xlu0 %4503
        %4506 = vset.pattern.permute.xlu0 3
        %4507 = vperm.xlu0 %4506, %v3779
        %v4508 = vpop.permute.xlu0 %4507
        %4510 = vset.pattern.permute.xlu0 3
        %4511 = vperm.xlu0 %4510, %v3781
        %v4512 = vpop.permute.xlu0 %4511
        %4514 = vset.pattern.permute.xlu0 3
        %4515 = vperm.xlu0 %4514, %v3783
        %v4516 = vpop.permute.xlu0 %4515
        %4518 = vset.pattern.permute.xlu0 3
        %4519 = vperm.xlu0 %4518, %v3785
        %v4520 = vpop.permute.xlu0 %4519
        %4522 = vset.pattern.permute.xlu0 3
        %4523 = vperm.xlu0 %4522, %v3787
        %v4524 = vpop.permute.xlu0 %4523
        %v4526 = vmul.f32 %v1060, %v4400
        %v4527 = vmul.f32 %v1061, %v4404
        %v4528 = vmul.f32 %v1062, %v4408
        %v4529 = vmul.f32 %v1063, %v4412
        %v4530 = vmul.f32 %v1064, %v4416
        %v4531 = vmul.f32 %v1065, %v4420
        %v4532 = vmul.f32 %v1066, %v4424
        %v4533 = vmul.f32 %v1067, %v4428
        %v4534 = vmul.f32 %v1068, %v4432
        %v4535 = vmul.f32 %v1069, %v4436
        %v4536 = vmul.f32 %v1070, %v4440
        %v4537 = vmul.f32 %v1071, %v4444
        %v4538 = vmul.f32 %v1072, %v4448
        %v4539 = vmul.f32 %v1073, %v4452
        %v4540 = vmul.f32 %v1074, %v4456
        %v4541 = vmul.f32 %v1075, %v4460
        %v4542 = vmul.f32 %v1076, %v4464
        %v4543 = vmul.f32 %v1077, %v4468
        %v4544 = vmul.f32 %v1078, %v4472
        %v4545 = vmul.f32 %v1079, %v4476
        %v4546 = vmul.f32 %v1080, %v4480
        %v4547 = vmul.f32 %v1081, %v4484
        %v4548 = vmul.f32 %v1082, %v4488
        %v4549 = vmul.f32 %v1083, %v4492
        %v4550 = vmul.f32 %v1084, %v4496
        %v4551 = vmul.f32 %v1085, %v4500
        %v4552 = vmul.f32 %v1086, %v4504
        %v4553 = vmul.f32 %v1087, %v4508
        %v4554 = vmul.f32 %v1088, %v4512
        %v4555 = vmul.f32 %v1089, %v4516
        %v4556 = vmul.f32 %v1090, %v4520
        %v4557 = vmul.f32 %v1091, %v4524
        %s4558 = scalar_lea.vmem %s313, 768 [#allocation8]
        %4559 = vst [vmem:[%s4558] sm:$0xff] %v4526
        %4560 = vst [vmem:[%s4558 + $0x8] sm:$0xff] %v4527
        %4561 = vst [vmem:[%s4558 + $0x10] sm:$0xff] %v4528
        %4562 = vst [vmem:[%s4558 + $0x18] sm:$0xff] %v4529
        %4563 = vst [vmem:[%s4558 + $0x20] sm:$0xff] %v4530
        %4564 = vst [vmem:[%s4558 + $0x28] sm:$0xff] %v4531
        %4565 = vst [vmem:[%s4558 + $0x30] sm:$0xff] %v4532
        %4566 = vst [vmem:[%s4558 + $0x38] sm:$0xff] %v4533
        %4567 = vst [vmem:[%s4558 + $0x40] sm:$0xff] %v4534
        %4568 = vst [vmem:[%s4558 + $0x48] sm:$0xff] %v4535
        %4569 = vst [vmem:[%s4558 + $0x50] sm:$0xff] %v4536
        %4570 = vst [vmem:[%s4558 + $0x58] sm:$0xff] %v4537
        %4571 = vst [vmem:[%s4558 + $0x60] sm:$0xff] %v4538
        %4572 = vst [vmem:[%s4558 + $0x68] sm:$0xff] %v4539
        %4573 = vst [vmem:[%s4558 + $0x70] sm:$0xff] %v4540
        %4574 = vst [vmem:[%s4558 + $0x78] sm:$0xff] %v4541
        %4575 = vst [vmem:[%s4558 + $0x80] sm:$0xff] %v4542
        %4576 = vst [vmem:[%s4558 + $0x88] sm:$0xff] %v4543
        %4577 = vst [vmem:[%s4558 + $0x90] sm:$0xff] %v4544
        %4578 = vst [vmem:[%s4558 + $0x98] sm:$0xff] %v4545
        %4579 = vst [vmem:[%s4558 + $0xa0] sm:$0xff] %v4546
        %4580 = vst [vmem:[%s4558 + $0xa8] sm:$0xff] %v4547
        %4581 = vst [vmem:[%s4558 + $0xb0] sm:$0xff] %v4548
        %4582 = vst [vmem:[%s4558 + $0xb8] sm:$0xff] %v4549
        %4583 = vst [vmem:[%s4558 + $0xc0] sm:$0xff] %v4550
        %4584 = vst [vmem:[%s4558 + $0xc8] sm:$0xff] %v4551
        %4585 = vst [vmem:[%s4558 + $0xd0] sm:$0xff] %v4552
        %4586 = vst [vmem:[%s4558 + $0xd8] sm:$0xff] %v4553
        %4587 = vst [vmem:[%s4558 + $0xe0] sm:$0xff] %v4554
        %4588 = vst [vmem:[%s4558 + $0xe8] sm:$0xff] %v4555
        %4589 = vst [vmem:[%s4558 + $0xf0] sm:$0xff] %v4556
        %4590 = vst [vmem:[%s4558 + $0xf8] sm:$0xff] %v4557
        %s4591 = sand.u32 %s186, 1
        %s4592 = scalar_lea.sflag [#allocation5], %s4591
        %s4593 = sand.u32 %s186, 1
        %s4594 = smul.addr %s4593, 1024
        %s4595 = scalar_lea.vmem [#allocation8], %s4594
        // Predicated region
        $region57: #{tpu_custom_call.1} parent=47 // pred_check
          %p4596 = pneg %p196
        $region58: #{tpu_custom_call.1} parent=47 // pred_check_branch
          %4598 = sbr.rel (%p4596) target = $region60
        $region59: #{tpu_custom_call.1} parent=47 // pred_region
          %s4599 = smul.u32 4, %s26
          %s4601 = ssub.s32 16384, 16384
          %4602 = vsyncadd %s4592, %s4601
          %s4603 = smul.addr %s4599, 32
          %s4604 = smul.addr %s4603, 128
          %s4605 = scalar_lea.hbm %s7, %s4604
          %s4606 = sshll.u32 %s4595, 4
          %s4607 = int_to_ptr.vmem [resolvable:$true] %s4606
          %4612 = dma.vmem_to_hbm [thread:$0]  %s4607, 16384, %s4605, %s4592, 128, 128, 8
        $region60: #{tpu_custom_call.1} parent=47 // pred_fallthru
          _
      $region48: #{tpu_custom_call.1} parent=5 // pred_fallthru
        _
      %p4613 = scmp.le.s32.totalorder 2, %s21
      // Predicated region
      $region61: #{tpu_custom_call.1} parent=5 // pred_check
        %p4614 = pneg %p4613
      $region62: #{tpu_custom_call.1} parent=5 // pred_check_branch
        %4616 = sbr.rel (%p4614) target = $region64
      $region63: #{tpu_custom_call.1} parent=5 // pred_region
        %s4617 = ssub.s32 %s21, 2
        // Predicated region
        $region65: #{tpu_custom_call.1} parent=63 // pred_check
          %p4618 = pneg %p202
        $region66: #{tpu_custom_call.1} parent=63 // pred_check_branch
          %4620 = sbr.rel (%p4618) target = $region68
        $region67: #{tpu_custom_call.1} parent=63 // pred_region
          %s4621 = sand.u32 %s187, 1
          %s4622 = scalar_lea.sflag [#allocation5], %s4621
          %s4623 = sand.u32 %s187, 1
          %s4624 = smul.addr %s4623, 1024
          %s4625 = scalar_lea.vmem [#allocation8], %s4624
          %4626 = dma.done %s4622, 16384
        $region68: #{tpu_custom_call.1} parent=63 // pred_fallthru
          _
      $region64: #{tpu_custom_call.1} parent=5 // pred_fallthru
        _
    $region6: #{tpu_custom_call.1} parent=1 // loop_footer
      %s25 = sadd.s32 1, %s21
    $region7: #{tpu_custom_call.1} parent=1 // loop_footer_branch
      %20 = sbr.rel target = $region3
    $region8: #{tpu_custom_call.1} parent=1 // loop_exit
      _
    %4627 = vsyncpa [#allocation4], 1
    %s4628 = scalar_lea.sflag [#allocation4], 1
    %4629 = vsyncpa %s4628, 1
    %4630 = vsyncpa [#allocation7], 1
    %4631 = vsyncpa [#allocation5], 1
    %s4632 = scalar_lea.sflag [#allocation5], 1
    %4633 = vsyncpa %s4632, 1

</llo_original>
